<compile_context>
chip_gen: v6e
topology: v6e:2x2x1
jax: 0.10.0
libtpu: 0.0.40
codegen_flags: <defaults>
</compile_context>

<pallas_src>
import functools

import jax
import jax.numpy as jnp
import numpy as np
from jax.experimental import pallas as pl
from jax.experimental.pallas import tpu as pltpu


# Tap order t = (dy+1)*3 + (dx+1) == ky*3 + kx; must match the host-side
# packing of the HWIO weights into (C_out, 9*C_in).
_TAPS = [(dy, dx) for dy in (-1, 0, 1) for dx in (-1, 0, 1)]


def _fused_kernel(x_ref, m_ref, w_ref, b_ref, o_ref, col_ref, *, W):
    """One grid step == B images, lane-concatenated.

    x_ref  : (B, C, L)        input images, flat spatial on the lane axis
    m_ref  : (9, C, B*L)      per-tap validity masks (0./1.), resident
    w_ref  : (5, C, 9*C)      packed conv weights (final conv zero-padded), resident
    b_ref  : (5, C, 1)        packed biases, resident
    o_ref  : (B, C, L)        output images (rows >= n_out are exact zeros)
    col_ref: (9*C, B*L)       persistent im2col scratch
    """
    B, C, L = x_ref.shape
    Lt = B * L

    def lane_roll(a, a2, off):
        # result[:, i] == a[:, (i + off) % Lt]   (== pltpu.roll(a, -off, axis=-1))
        if off == 0:
            return a
        s = off % Lt                               # static, non-negative
        return a2[:, s:s + Lt]

    def conv3x3(a, idx):
        # a: (C, Lt) f32 -> (C, Lt) f32; one im2col MXU matmul with K = 9*C.
        a2 = jnp.concatenate([a, a], axis=-1)      # lane-aligned doubling (roll source)
        for t, (dy, dx) in enumerate(_TAPS):
            rows = slice(t * C, (t + 1) * C)
            if dy == 0 and dx == 0:
                col_ref[rows, :] = a               # center tap: always valid, no mask
            else:
                # Wrapped / cross-image / cross-row lanes are zeroed by the mask.
                col_ref[rows, :] = lane_roll(a, a2, dy * W + dx) * m_ref[t]
        return jnp.dot(w_ref[idx], col_ref[...],
                       preferred_element_type=jnp.float32) + b_ref[idx]

    # Lane-concatenate the B images of this grid step into one (C, B*L) slab.
    if B == 1:
        x = x_ref[0].astype(jnp.float32)
    else:
        x = jnp.concatenate([x_ref[b] for b in range(B)], axis=-1).astype(jnp.float32)

    # residual block 1: x += conv2(relu(conv1(x)))
    x = x + conv3x3(jnp.maximum(conv3x3(x, 0), 0.0), 1)
    # residual block 2
    x = x + conv3x3(jnp.maximum(conv3x3(x, 2), 0.0), 3)
    # final projection conv (weight/bias rows >= n_out are zero padding -> zeros)
    y = conv3x3(x, 4)

    for b in range(B):                             # lane-aligned (C, L) stores
        o_ref[b] = y[:, b * L:(b + 1) * L].astype(o_ref.dtype)


# ---------------------------------------------------------------------------
# Host-side packing helpers (pure layout plumbing, all tiny / one-time).
# ---------------------------------------------------------------------------
def _pack_conv(w, b, c_rows):
    """HWIO (3,3,Cin,Cout) + (Cout,) -> ((c_rows, 9*Cin), (c_rows, 1)), zero padded."""
    cout, cin = w.shape[3], w.shape[2]
    wm = jnp.transpose(w, (3, 0, 1, 2)).reshape(cout, 9 * cin)   # [co, t*Cin + ci]
    bm = b.reshape(cout, 1)
    if cout < c_rows:
        wm = jnp.concatenate([wm, jnp.zeros((c_rows - cout, 9 * cin), wm.dtype)], 0)
        bm = jnp.concatenate([bm, jnp.zeros((c_rows - cout, 1), bm.dtype)], 0)
    return wm, bm


def _tap_masks(H, W, C, B):
    """(9, C, B*H*W) 0/1 masks: tap (dy,dx) valid at output pixel (y,x).
    Pre-broadcast over channels and tiled over the B lane-packed images so the
    kernel never emits a broadcast."""
    y, x = np.mgrid[0:H, 0:W]
    m = np.stack([((y + dy >= 0) & (y + dy < H) & (x + dx >= 0) & (x + dx < W))
                  for dy, dx in _TAPS]).astype(np.float32).reshape(9, 1, H * W)
    m = np.broadcast_to(m, (9, C, H * W))
    m = np.tile(m, (1, 1, B))
    return jnp.asarray(np.ascontiguousarray(m))


def _pick_images_per_step(n, max_b=8):
    """Largest divisor of n that is <= max_b while keeping >= 2 grid steps
    (v7x shards the parallel grid axis across its 2 TensorCores)."""
    best = 1
    for b in range(1, min(n, max_b) + 1):
        if n % b == 0 and (n // b >= 2 or n == 1):
            best = b
    return best


def masked_res_seq(x, params, *, max_images_per_step=8):
    """x: (N, C, H, W) float32 (NCHW, same as the PyTorch module).
    params = (rb1, rb2, final); rb = (w1, b1, w2, b2), final = (w, b);
    conv weights in HWIO (3, 3, Cin, Cout), biases (Cout,)."""
    rb1, rb2, final = params
    N, C, H, W = x.shape
    L = H * W
    n_out = final[0].shape[-1]
    assert rb1[0].shape[2] == C and final[0].shape[2] == C and n_out <= C

    B = _pick_images_per_step(N, max_images_per_step)
    G = N // B

    convs = [(rb1[0], rb1[1]), (rb1[2], rb1[3]),
             (rb2[0], rb2[1]), (rb2[2], rb2[3]), final]
    packed = [_pack_conv(w, b, C) for w, b in convs]
    wstack = jnp.stack([p[0] for p in packed])            # (5, C, 9*C)  ~11 KB
    bstack = jnp.stack([p[1] for p in packed])            # (5, C, 1)
    masks = _tap_masks(H, W, C, B)                        # (9, C, B*L)

    xf = x.reshape(N, C, L)                               # free reshape (contiguous)

    out_flat = pl.pallas_call(
        functools.partial(_fused_kernel, W=W),
        out_shape=jax.ShapeDtypeStruct((N, C, L), x.dtype),
        grid=(G,),
        in_specs=[
            pl.BlockSpec((B, C, L), lambda g: (g, 0, 0)),
            pl.BlockSpec((9, C, B * L), lambda g: (0, 0, 0)),   # resident masks
            pl.BlockSpec((5, C, 9 * C), lambda g: (0, 0, 0)),   # resident weights
            pl.BlockSpec((5, C, 1), lambda g: (0, 0, 0)),       # resident biases
        ],
        out_specs=pl.BlockSpec((B, C, L), lambda g: (g, 0, 0)),
        scratch_shapes=[pltpu.VMEM((9 * C, B * L), jnp.float32)],
        compiler_params=pltpu.CompilerParams(
            dimension_semantics=("parallel",),
            # Actual usage is only a few MiB even at B=8; stay well under the
            # v7x 64 MiB-per-TC budget while not depending on the default.
            vmem_limit_bytes=16 * 1024 * 1024,
        ),
    )(xf, masks, wstack, bstack)

    # Rows >= n_out of the padded final conv are exact zeros; drop them here.
    return out_flat[:, :n_out, :].reshape(N, n_out, H, W)


# ---------------------------------------------------------------------------
# Deterministic parameter init (PyTorch-Conv2d-style uniform bounds).
# ---------------------------------------------------------------------------
def _init_conv(key, cin, cout):
    kw, kb = jax.random.split(key)
    bound = 1.0 / np.sqrt(cin * 9)
    w = jax.random.uniform(kw, (3, 3, cin, cout), jnp.float32, -bound, bound)
    b = jax.random.uniform(kb, (cout,), jnp.float32, -bound, bound)
    return w, b


def init_params(key, n_inputs, n_feats, n_outputs):
    assert n_inputs == n_feats  # default-config path of MaskedResSeq
    ks = jax.random.split(key, 5)
    rb1 = _init_conv(ks[0], n_feats, n_feats) + _init_conv(ks[1], n_feats, n_feats)
    rb2 = _init_conv(ks[2], n_feats, n_feats) + _init_conv(ks[3], n_feats, n_feats)
    final = _init_conv(ks[4], n_feats, n_outputs)
    return rb1, rb2, final


# ---------------------------------------------------------------------------
# Pure-JAX reference (NCHW) for the in-script correctness check.
# ---------------------------------------------------------------------------
def _conv_ref(x, w, b):
    out = jax.lax.conv_general_dilated(
        x, w, window_strides=(1, 1), padding="SAME",
        dimension_numbers=("NCHW", "HWIO", "NCHW"))
    return out + b.reshape(1, -1, 1, 1)


def _resblock_ref(x, w1, b1, w2, b2):
    return x + _conv_ref(jnp.maximum(_conv_ref(x, w1, b1), 0.0), w2, b2)


def masked_res_seq_ref(x, params):
    rb1, rb2, final = params
    x = _resblock_ref(x, *rb1)
    x = _resblock_ref(x, *rb2)
    return _conv_ref(x, *final)


if __name__ == "__main__":
    # Small shapes consistent with the module: n_inputs = n_feats = 8,
    # n_outputs = 3, depth = 4, batch = 4 (-> 2 grid steps of 2 lane-packed
    # images each), spatial = 16x16 (NCHW like torch).
    N, H, W = 4, 16, 16
    n_inputs = n_feats = 8
    n_outputs = 3

    key = jax.random.PRNGKey(0)
    kx, kp = jax.random.split(key)
    x = jax.random.normal(kx, (N, n_inputs, H, W), jnp.float32)
    params = init_params(kp, n_inputs, n_feats, n_outputs)

    out = jax.block_until_ready(masked_res_seq(x, params))

    ref = masked_res_seq_ref(x, params)
    if not np.allclose(np.asarray(out), np.asarray(ref), rtol=1e-3, atol=1e-3):
        err = float(np.max(np.abs(np.asarray(out) - np.asarray(ref))))
        raise AssertionError(
            f"Pallas MaskedResSeq does not match JAX reference (max abs err {err})")

    print("KERNEL_OK")
</pallas_src>

<mosaic_0001>
module attributes {stable_mosaic.version = 11 : i64} {
  func.func @_fused_kernel(%arg0: i32, %arg1: memref<2x8x256xf32, #tpu.memory_space<vmem>>, %arg2: memref<9x8x512xf32, #tpu.memory_space<vmem>>, %arg3: memref<5x8x72xf32, #tpu.memory_space<vmem>>, %arg4: memref<5x8x1xf32, #tpu.memory_space<vmem>>, %arg5: memref<2x8x256xf32, #tpu.memory_space<vmem>>, %arg6: memref<72x512xf32, #tpu.memory_space<vmem>>) attributes {dimension_semantics = [#tpu.dimension_semantics<parallel>], iteration_bounds = array<i64: 2>, scalar_prefetch = 0 : i64, scratch_operands = 1 : i64, tpu.core_type = #tpu.core_type<tc>, window_params = [{transform_indices = @transform_0, window_bounds = array<i64: 2, 8, 256>}, {pipeline_mode = #tpu.pipeline_mode<synchronous>, transform_indices = @transform_1, window_bounds = array<i64: 9, 8, 512>}, {pipeline_mode = #tpu.pipeline_mode<synchronous>, transform_indices = @transform_2, window_bounds = array<i64: 5, 8, 72>}, {pipeline_mode = #tpu.pipeline_mode<synchronous>, transform_indices = @transform_3, window_bounds = array<i64: 5, 8, 1>}, {transform_indices = @transform_4, window_bounds = array<i64: 2, 8, 256>}]} {
    %c0 = arith.constant 0 : index
    %c0_0 = arith.constant 0 : index
    %c0_1 = arith.constant 0 : index
    %0 = vector.load %arg1[%c0, %c0_0, %c0_1] : memref<2x8x256xf32, #tpu.memory_space<vmem>>, vector<1x8x256xf32>
    %1 = vector.shape_cast %0 : vector<1x8x256xf32> to vector<8x256xf32>
    %c1 = arith.constant 1 : index
    %c0_2 = arith.constant 0 : index
    %c0_3 = arith.constant 0 : index
    %2 = vector.load %arg1[%c1, %c0_2, %c0_3] : memref<2x8x256xf32, #tpu.memory_space<vmem>>, vector<1x8x256xf32>
    %3 = vector.shape_cast %2 : vector<1x8x256xf32> to vector<8x256xf32>
    %4 = tpu.concatenate %1, %3 in 1 : vector<8x256xf32>, vector<8x256xf32> -> vector<8x512xf32>
    %5 = tpu.concatenate %4, %4 in 1 : vector<8x512xf32>, vector<8x512xf32> -> vector<8x1024xf32>
    %6 = vector.extract_strided_slice %5 {offsets = [0, 495], sizes = [8, 512], strides = [1, 1]} : vector<8x1024xf32> to vector<8x512xf32>
    %c0_4 = arith.constant 0 : index
    %c0_5 = arith.constant 0 : index
    %c0_6 = arith.constant 0 : index
    %7 = vector.load %arg2[%c0_4, %c0_5, %c0_6] : memref<9x8x512xf32, #tpu.memory_space<vmem>>, vector<1x8x512xf32>
    %8 = vector.shape_cast %7 : vector<1x8x512xf32> to vector<8x512xf32>
    %9 = arith.mulf %6, %8 : vector<8x512xf32>
    %c0_7 = arith.constant 0 : index
    %c0_8 = arith.constant 0 : index
    %10 = vector.load %arg6[%c0_7, %c0_8] : memref<72x512xf32, #tpu.memory_space<vmem>>, vector<8x512xf32>
    tpu.vector_store %arg6[%c0_7, %c0_8], %9 {strides = array<i32>} : memref<72x512xf32, #tpu.memory_space<vmem>>, vector<8x512xf32>,
    %11 = vector.extract_strided_slice %5 {offsets = [0, 496], sizes = [8, 512], strides = [1, 1]} : vector<8x1024xf32> to vector<8x512xf32>
    %c1_9 = arith.constant 1 : index
    %c0_10 = arith.constant 0 : index
    %c0_11 = arith.constant 0 : index
    %12 = vector.load %arg2[%c1_9, %c0_10, %c0_11] : memref<9x8x512xf32, #tpu.memory_space<vmem>>, vector<1x8x512xf32>
    %13 = vector.shape_cast %12 : vector<1x8x512xf32> to vector<8x512xf32>
    %14 = arith.mulf %11, %13 : vector<8x512xf32>
    %c8 = arith.constant 8 : index
    %c0_12 = arith.constant 0 : index
    %15 = vector.load %arg6[%c8, %c0_12] : memref<72x512xf32, #tpu.memory_space<vmem>>, vector<8x512xf32>
    tpu.vector_store %arg6[%c8, %c0_12], %14 {strides = array<i32>} : memref<72x512xf32, #tpu.memory_space<vmem>>, vector<8x512xf32>,
    %16 = vector.extract_strided_slice %5 {offsets = [0, 497], sizes = [8, 512], strides = [1, 1]} : vector<8x1024xf32> to vector<8x512xf32>
    %c2 = arith.constant 2 : index
    %c0_13 = arith.constant 0 : index
    %c0_14 = arith.constant 0 : index
    %17 = vector.load %arg2[%c2, %c0_13, %c0_14] : memref<9x8x512xf32, #tpu.memory_space<vmem>>, vector<1x8x512xf32>
    %18 = vector.shape_cast %17 : vector<1x8x512xf32> to vector<8x512xf32>
    %19 = arith.mulf %16, %18 : vector<8x512xf32>
    %c16 = arith.constant 16 : index
    %c0_15 = arith.constant 0 : index
    %20 = vector.load %arg6[%c16, %c0_15] : memref<72x512xf32, #tpu.memory_space<vmem>>, vector<8x512xf32>
    tpu.vector_store %arg6[%c16, %c0_15], %19 {strides = array<i32>} : memref<72x512xf32, #tpu.memory_space<vmem>>, vector<8x512xf32>,
    %21 = vector.extract_strided_slice %5 {offsets = [0, 511], sizes = [8, 512], strides = [1, 1]} : vector<8x1024xf32> to vector<8x512xf32>
    %c3 = arith.constant 3 : index
    %c0_16 = arith.constant 0 : index
    %c0_17 = arith.constant 0 : index
    %22 = vector.load %arg2[%c3, %c0_16, %c0_17] : memref<9x8x512xf32, #tpu.memory_space<vmem>>, vector<1x8x512xf32>
    %23 = vector.shape_cast %22 : vector<1x8x512xf32> to vector<8x512xf32>
    %24 = arith.mulf %21, %23 : vector<8x512xf32>
    %c24 = arith.constant 24 : index
    %c0_18 = arith.constant 0 : index
    %25 = vector.load %arg6[%c24, %c0_18] : memref<72x512xf32, #tpu.memory_space<vmem>>, vector<8x512xf32>
    tpu.vector_store %arg6[%c24, %c0_18], %24 {strides = array<i32>} : memref<72x512xf32, #tpu.memory_space<vmem>>, vector<8x512xf32>,
    %c32 = arith.constant 32 : index
    %c0_19 = arith.constant 0 : index
    %26 = vector.load %arg6[%c32, %c0_19] : memref<72x512xf32, #tpu.memory_space<vmem>>, vector<8x512xf32>
    tpu.vector_store %arg6[%c32, %c0_19], %4 {strides = array<i32>} : memref<72x512xf32, #tpu.memory_space<vmem>>, vector<8x512xf32>,
    %27 = vector.extract_strided_slice %5 {offsets = [0, 1], sizes = [8, 512], strides = [1, 1]} : vector<8x1024xf32> to vector<8x512xf32>
    %c5 = arith.constant 5 : index
    %c0_20 = arith.constant 0 : index
    %c0_21 = arith.constant 0 : index
    %28 = vector.load %arg2[%c5, %c0_20, %c0_21] : memref<9x8x512xf32, #tpu.memory_space<vmem>>, vector<1x8x512xf32>
    %29 = vector.shape_cast %28 : vector<1x8x512xf32> to vector<8x512xf32>
    %30 = arith.mulf %27, %29 : vector<8x512xf32>
    %c40 = arith.constant 40 : index
    %c0_22 = arith.constant 0 : index
    %31 = vector.load %arg6[%c40, %c0_22] : memref<72x512xf32, #tpu.memory_space<vmem>>, vector<8x512xf32>
    tpu.vector_store %arg6[%c40, %c0_22], %30 {strides = array<i32>} : memref<72x512xf32, #tpu.memory_space<vmem>>, vector<8x512xf32>,
    %32 = vector.extract_strided_slice %5 {offsets = [0, 15], sizes = [8, 512], strides = [1, 1]} : vector<8x1024xf32> to vector<8x512xf32>
    %c6 = arith.constant 6 : index
    %c0_23 = arith.constant 0 : index
    %c0_24 = arith.constant 0 : index
    %33 = vector.load %arg2[%c6, %c0_23, %c0_24] : memref<9x8x512xf32, #tpu.memory_space<vmem>>, vector<1x8x512xf32>
    %34 = vector.shape_cast %33 : vector<1x8x512xf32> to vector<8x512xf32>
    %35 = arith.mulf %32, %34 : vector<8x512xf32>
    %c48 = arith.constant 48 : index
    %c0_25 = arith.constant 0 : index
    %36 = vector.load %arg6[%c48, %c0_25] : memref<72x512xf32, #tpu.memory_space<vmem>>, vector<8x512xf32>
    tpu.vector_store %arg6[%c48, %c0_25], %35 {strides = array<i32>} : memref<72x512xf32, #tpu.memory_space<vmem>>, vector<8x512xf32>,
    %37 = vector.extract_strided_slice %5 {offsets = [0, 16], sizes = [8, 512], strides = [1, 1]} : vector<8x1024xf32> to vector<8x512xf32>
    %c7 = arith.constant 7 : index
    %c0_26 = arith.constant 0 : index
    %c0_27 = arith.constant 0 : index
    %38 = vector.load %arg2[%c7, %c0_26, %c0_27] : memref<9x8x512xf32, #tpu.memory_space<vmem>>, vector<1x8x512xf32>
    %39 = vector.shape_cast %38 : vector<1x8x512xf32> to vector<8x512xf32>
    %40 = arith.mulf %37, %39 : vector<8x512xf32>
    %c56 = arith.constant 56 : index
    %c0_28 = arith.constant 0 : index
    %41 = vector.load %arg6[%c56, %c0_28] : memref<72x512xf32, #tpu.memory_space<vmem>>, vector<8x512xf32>
    tpu.vector_store %arg6[%c56, %c0_28], %40 {strides = array<i32>} : memref<72x512xf32, #tpu.memory_space<vmem>>, vector<8x512xf32>,
    %42 = vector.extract_strided_slice %5 {offsets = [0, 17], sizes = [8, 512], strides = [1, 1]} : vector<8x1024xf32> to vector<8x512xf32>
    %c8_29 = arith.constant 8 : index
    %c0_30 = arith.constant 0 : index
    %c0_31 = arith.constant 0 : index
    %43 = vector.load %arg2[%c8_29, %c0_30, %c0_31] : memref<9x8x512xf32, #tpu.memory_space<vmem>>, vector<1x8x512xf32>
    %44 = vector.shape_cast %43 : vector<1x8x512xf32> to vector<8x512xf32>
    %45 = arith.mulf %42, %44 : vector<8x512xf32>
    %c64 = arith.constant 64 : index
    %c0_32 = arith.constant 0 : index
    %46 = vector.load %arg6[%c64, %c0_32] : memref<72x512xf32, #tpu.memory_space<vmem>>, vector<8x512xf32>
    tpu.vector_store %arg6[%c64, %c0_32], %45 {strides = array<i32>} : memref<72x512xf32, #tpu.memory_space<vmem>>, vector<8x512xf32>,
    %c0_33 = arith.constant 0 : index
    %c0_34 = arith.constant 0 : index
    %c0_35 = arith.constant 0 : index
    %47 = vector.load %arg3[%c0_33, %c0_34, %c0_35] : memref<5x8x72xf32, #tpu.memory_space<vmem>>, vector<1x8x72xf32>
    %48 = vector.shape_cast %47 : vector<1x8x72xf32> to vector<8x72xf32>
    %c0_36 = arith.constant 0 : index
    %c0_37 = arith.constant 0 : index
    %49 = vector.load %arg6[%c0_36, %c0_37] : memref<72x512xf32, #tpu.memory_space<vmem>>, vector<72x512xf32>
    %cst = arith.constant dense<0.000000e+00> : vector<8x512xf32>
    %50 = tpu.matmul %48, %49, %cst {dimension_numbers = #tpu.dot_dimension_numbers<[1], [0], [0], [1], [0, 0, 1, 1], [], []>} : vector<8x72xf32>, vector<72x512xf32>, vector<8x512xf32> -> vector<8x512xf32>
    %c0_38 = arith.constant 0 : index
    %c0_39 = arith.constant 0 : index
    %c0_40 = arith.constant 0 : index
    %51 = vector.load %arg4[%c0_38, %c0_39, %c0_40] : memref<5x8x1xf32, #tpu.memory_space<vmem>>, vector<1x8x1xf32>
    %52 = vector.shape_cast %51 : vector<1x8x1xf32> to vector<8x1xf32>
    %53 = vector.broadcast %52 : vector<8x1xf32> to vector<8x512xf32>
    %54 = arith.addf %50, %53 : vector<8x512xf32>
    %cst_41 = arith.constant 0.000000e+00 : f32
    %55 = vector.broadcast %cst_41 : f32 to vector<8x512xf32>
    %56 = arith.maximumf %54, %55 : vector<8x512xf32>
    %57 = tpu.concatenate %56, %56 in 1 : vector<8x512xf32>, vector<8x512xf32> -> vector<8x1024xf32>
    %58 = vector.extract_strided_slice %57 {offsets = [0, 495], sizes = [8, 512], strides = [1, 1]} : vector<8x1024xf32> to vector<8x512xf32>
    %c0_42 = arith.constant 0 : index
    %c0_43 = arith.constant 0 : index
    %c0_44 = arith.constant 0 : index
    %59 = vector.load %arg2[%c0_42, %c0_43, %c0_44] : memref<9x8x512xf32, #tpu.memory_space<vmem>>, vector<1x8x512xf32>
    %60 = vector.shape_cast %59 : vector<1x8x512xf32> to vector<8x512xf32>
    %61 = arith.mulf %58, %60 : vector<8x512xf32>
    %c0_45 = arith.constant 0 : index
    %c0_46 = arith.constant 0 : index
    %62 = vector.load %arg6[%c0_45, %c0_46] : memref<72x512xf32, #tpu.memory_space<vmem>>, vector<8x512xf32>
    tpu.vector_store %arg6[%c0_45, %c0_46], %61 {strides = array<i32>} : memref<72x512xf32, #tpu.memory_space<vmem>>, vector<8x512xf32>,
    %63 = vector.extract_strided_slice %57 {offsets = [0, 496], sizes = [8, 512], strides = [1, 1]} : vector<8x1024xf32> to vector<8x512xf32>
    %c1_47 = arith.constant 1 : index
    %c0_48 = arith.constant 0 : index
    %c0_49 = arith.constant 0 : index
    %64 = vector.load %arg2[%c1_47, %c0_48, %c0_49] : memref<9x8x512xf32, #tpu.memory_space<vmem>>, vector<1x8x512xf32>
    %65 = vector.shape_cast %64 : vector<1x8x512xf32> to vector<8x512xf32>
    %66 = arith.mulf %63, %65 : vector<8x512xf32>
    %c8_50 = arith.constant 8 : index
    %c0_51 = arith.constant 0 : index
    %67 = vector.load %arg6[%c8_50, %c0_51] : memref<72x512xf32, #tpu.memory_space<vmem>>, vector<8x512xf32>
    tpu.vector_store %arg6[%c8_50, %c0_51], %66 {strides = array<i32>} : memref<72x512xf32, #tpu.memory_space<vmem>>, vector<8x512xf32>,
    %68 = vector.extract_strided_slice %57 {offsets = [0, 497], sizes = [8, 512], strides = [1, 1]} : vector<8x1024xf32> to vector<8x512xf32>
    %c2_52 = arith.constant 2 : index
    %c0_53 = arith.constant 0 : index
    %c0_54 = arith.constant 0 : index
    %69 = vector.load %arg2[%c2_52, %c0_53, %c0_54] : memref<9x8x512xf32, #tpu.memory_space<vmem>>, vector<1x8x512xf32>
    %70 = vector.shape_cast %69 : vector<1x8x512xf32> to vector<8x512xf32>
    %71 = arith.mulf %68, %70 : vector<8x512xf32>
    %c16_55 = arith.constant 16 : index
    %c0_56 = arith.constant 0 : index
    %72 = vector.load %arg6[%c16_55, %c0_56] : memref<72x512xf32, #tpu.memory_space<vmem>>, vector<8x512xf32>
    tpu.vector_store %arg6[%c16_55, %c0_56], %71 {strides = array<i32>} : memref<72x512xf32, #tpu.memory_space<vmem>>, vector<8x512xf32>,
    %73 = vector.extract_strided_slice %57 {offsets = [0, 511], sizes = [8, 512], strides = [1, 1]} : vector<8x1024xf32> to vector<8x512xf32>
    %c3_57 = arith.constant 3 : index
    %c0_58 = arith.constant 0 : index
    %c0_59 = arith.constant 0 : index
    %74 = vector.load %arg2[%c3_57, %c0_58, %c0_59] : memref<9x8x512xf32, #tpu.memory_space<vmem>>, vector<1x8x512xf32>
    %75 = vector.shape_cast %74 : vector<1x8x512xf32> to vector<8x512xf32>
    %76 = arith.mulf %73, %75 : vector<8x512xf32>
    %c24_60 = arith.constant 24 : index
    %c0_61 = arith.constant 0 : index
    %77 = vector.load %arg6[%c24_60, %c0_61] : memref<72x512xf32, #tpu.memory_space<vmem>>, vector<8x512xf32>
    tpu.vector_store %arg6[%c24_60, %c0_61], %76 {strides = array<i32>} : memref<72x512xf32, #tpu.memory_space<vmem>>, vector<8x512xf32>,
    %c32_62 = arith.constant 32 : index
    %c0_63 = arith.constant 0 : index
    %78 = vector.load %arg6[%c32_62, %c0_63] : memref<72x512xf32, #tpu.memory_space<vmem>>, vector<8x512xf32>
    tpu.vector_store %arg6[%c32_62, %c0_63], %56 {strides = array<i32>} : memref<72x512xf32, #tpu.memory_space<vmem>>, vector<8x512xf32>,
    %79 = vector.extract_strided_slice %57 {offsets = [0, 1], sizes = [8, 512], strides = [1, 1]} : vector<8x1024xf32> to vector<8x512xf32>
    %c5_64 = arith.constant 5 : index
    %c0_65 = arith.constant 0 : index
    %c0_66 = arith.constant 0 : index
    %80 = vector.load %arg2[%c5_64, %c0_65, %c0_66] : memref<9x8x512xf32, #tpu.memory_space<vmem>>, vector<1x8x512xf32>
    %81 = vector.shape_cast %80 : vector<1x8x512xf32> to vector<8x512xf32>
    %82 = arith.mulf %79, %81 : vector<8x512xf32>
    %c40_67 = arith.constant 40 : index
    %c0_68 = arith.constant 0 : index
    %83 = vector.load %arg6[%c40_67, %c0_68] : memref<72x512xf32, #tpu.memory_space<vmem>>, vector<8x512xf32>
    tpu.vector_store %arg6[%c40_67, %c0_68], %82 {strides = array<i32>} : memref<72x512xf32, #tpu.memory_space<vmem>>, vector<8x512xf32>,
    %84 = vector.extract_strided_slice %57 {offsets = [0, 15], sizes = [8, 512], strides = [1, 1]} : vector<8x1024xf32> to vector<8x512xf32>
    %c6_69 = arith.constant 6 : index
    %c0_70 = arith.constant 0 : index
    %c0_71 = arith.constant 0 : index
    %85 = vector.load %arg2[%c6_69, %c0_70, %c0_71] : memref<9x8x512xf32, #tpu.memory_space<vmem>>, vector<1x8x512xf32>
    %86 = vector.shape_cast %85 : vector<1x8x512xf32> to vector<8x512xf32>
    %87 = arith.mulf %84, %86 : vector<8x512xf32>
    %c48_72 = arith.constant 48 : index
    %c0_73 = arith.constant 0 : index
    %88 = vector.load %arg6[%c48_72, %c0_73] : memref<72x512xf32, #tpu.memory_space<vmem>>, vector<8x512xf32>
    tpu.vector_store %arg6[%c48_72, %c0_73], %87 {strides = array<i32>} : memref<72x512xf32, #tpu.memory_space<vmem>>, vector<8x512xf32>,
    %89 = vector.extract_strided_slice %57 {offsets = [0, 16], sizes = [8, 512], strides = [1, 1]} : vector<8x1024xf32> to vector<8x512xf32>
    %c7_74 = arith.constant 7 : index
    %c0_75 = arith.constant 0 : index
    %c0_76 = arith.constant 0 : index
    %90 = vector.load %arg2[%c7_74, %c0_75, %c0_76] : memref<9x8x512xf32, #tpu.memory_space<vmem>>, vector<1x8x512xf32>
    %91 = vector.shape_cast %90 : vector<1x8x512xf32> to vector<8x512xf32>
    %92 = arith.mulf %89, %91 : vector<8x512xf32>
    %c56_77 = arith.constant 56 : index
    %c0_78 = arith.constant 0 : index
    %93 = vector.load %arg6[%c56_77, %c0_78] : memref<72x512xf32, #tpu.memory_space<vmem>>, vector<8x512xf32>
    tpu.vector_store %arg6[%c56_77, %c0_78], %92 {strides = array<i32>} : memref<72x512xf32, #tpu.memory_space<vmem>>, vector<8x512xf32>,
    %94 = vector.extract_strided_slice %57 {offsets = [0, 17], sizes = [8, 512], strides = [1, 1]} : vector<8x1024xf32> to vector<8x512xf32>
    %c8_79 = arith.constant 8 : index
    %c0_80 = arith.constant 0 : index
    %c0_81 = arith.constant 0 : index
    %95 = vector.load %arg2[%c8_79, %c0_80, %c0_81] : memref<9x8x512xf32, #tpu.memory_space<vmem>>, vector<1x8x512xf32>
    %96 = vector.shape_cast %95 : vector<1x8x512xf32> to vector<8x512xf32>
    %97 = arith.mulf %94, %96 : vector<8x512xf32>
    %c64_82 = arith.constant 64 : index
    %c0_83 = arith.constant 0 : index
    %98 = vector.load %arg6[%c64_82, %c0_83] : memref<72x512xf32, #tpu.memory_space<vmem>>, vector<8x512xf32>
    tpu.vector_store %arg6[%c64_82, %c0_83], %97 {strides = array<i32>} : memref<72x512xf32, #tpu.memory_space<vmem>>, vector<8x512xf32>,
    %c1_84 = arith.constant 1 : index
    %c0_85 = arith.constant 0 : index
    %c0_86 = arith.constant 0 : index
    %99 = vector.load %arg3[%c1_84, %c0_85, %c0_86] : memref<5x8x72xf32, #tpu.memory_space<vmem>>, vector<1x8x72xf32>
    %100 = vector.shape_cast %99 : vector<1x8x72xf32> to vector<8x72xf32>
    %c0_87 = arith.constant 0 : index
    %c0_88 = arith.constant 0 : index
    %101 = vector.load %arg6[%c0_87, %c0_88] : memref<72x512xf32, #tpu.memory_space<vmem>>, vector<72x512xf32>
    %cst_89 = arith.constant dense<0.000000e+00> : vector<8x512xf32>
    %102 = tpu.matmul %100, %101, %cst_89 {dimension_numbers = #tpu.dot_dimension_numbers<[1], [0], [0], [1], [0, 0, 1, 1], [], []>} : vector<8x72xf32>, vector<72x512xf32>, vector<8x512xf32> -> vector<8x512xf32>
    %c1_90 = arith.constant 1 : index
    %c0_91 = arith.constant 0 : index
    %c0_92 = arith.constant 0 : index
    %103 = vector.load %arg4[%c1_90, %c0_91, %c0_92] : memref<5x8x1xf32, #tpu.memory_space<vmem>>, vector<1x8x1xf32>
    %104 = vector.shape_cast %103 : vector<1x8x1xf32> to vector<8x1xf32>
    %105 = vector.broadcast %104 : vector<8x1xf32> to vector<8x512xf32>
    %106 = arith.addf %102, %105 : vector<8x512xf32>
    %107 = arith.addf %4, %106 : vector<8x512xf32>
    %108 = tpu.concatenate %107, %107 in 1 : vector<8x512xf32>, vector<8x512xf32> -> vector<8x1024xf32>
    %109 = vector.extract_strided_slice %108 {offsets = [0, 495], sizes = [8, 512], strides = [1, 1]} : vector<8x1024xf32> to vector<8x512xf32>
    %c0_93 = arith.constant 0 : index
    %c0_94 = arith.constant 0 : index
    %c0_95 = arith.constant 0 : index
    %110 = vector.load %arg2[%c0_93, %c0_94, %c0_95] : memref<9x8x512xf32, #tpu.memory_space<vmem>>, vector<1x8x512xf32>
    %111 = vector.shape_cast %110 : vector<1x8x512xf32> to vector<8x512xf32>
    %112 = arith.mulf %109, %111 : vector<8x512xf32>
    %c0_96 = arith.constant 0 : index
    %c0_97 = arith.constant 0 : index
    %113 = vector.load %arg6[%c0_96, %c0_97] : memref<72x512xf32, #tpu.memory_space<vmem>>, vector<8x512xf32>
    tpu.vector_store %arg6[%c0_96, %c0_97], %112 {strides = array<i32>} : memref<72x512xf32, #tpu.memory_space<vmem>>, vector<8x512xf32>,
    %114 = vector.extract_strided_slice %108 {offsets = [0, 496], sizes = [8, 512], strides = [1, 1]} : vector<8x1024xf32> to vector<8x512xf32>
    %c1_98 = arith.constant 1 : index
    %c0_99 = arith.constant 0 : index
    %c0_100 = arith.constant 0 : index
    %115 = vector.load %arg2[%c1_98, %c0_99, %c0_100] : memref<9x8x512xf32, #tpu.memory_space<vmem>>, vector<1x8x512xf32>
    %116 = vector.shape_cast %115 : vector<1x8x512xf32> to vector<8x512xf32>
    %117 = arith.mulf %114, %116 : vector<8x512xf32>
    %c8_101 = arith.constant 8 : index
    %c0_102 = arith.constant 0 : index
    %118 = vector.load %arg6[%c8_101, %c0_102] : memref<72x512xf32, #tpu.memory_space<vmem>>, vector<8x512xf32>
    tpu.vector_store %arg6[%c8_101, %c0_102], %117 {strides = array<i32>} : memref<72x512xf32, #tpu.memory_space<vmem>>, vector<8x512xf32>,
    %119 = vector.extract_strided_slice %108 {offsets = [0, 497], sizes = [8, 512], strides = [1, 1]} : vector<8x1024xf32> to vector<8x512xf32>
    %c2_103 = arith.constant 2 : index
    %c0_104 = arith.constant 0 : index
    %c0_105 = arith.constant 0 : index
    %120 = vector.load %arg2[%c2_103, %c0_104, %c0_105] : memref<9x8x512xf32, #tpu.memory_space<vmem>>, vector<1x8x512xf32>
    %121 = vector.shape_cast %120 : vector<1x8x512xf32> to vector<8x512xf32>
    %122 = arith.mulf %119, %121 : vector<8x512xf32>
    %c16_106 = arith.constant 16 : index
    %c0_107 = arith.constant 0 : index
    %123 = vector.load %arg6[%c16_106, %c0_107] : memref<72x512xf32, #tpu.memory_space<vmem>>, vector<8x512xf32>
    tpu.vector_store %arg6[%c16_106, %c0_107], %122 {strides = array<i32>} : memref<72x512xf32, #tpu.memory_space<vmem>>, vector<8x512xf32>,
    %124 = vector.extract_strided_slice %108 {offsets = [0, 511], sizes = [8, 512], strides = [1, 1]} : vector<8x1024xf32> to vector<8x512xf32>
    %c3_108 = arith.constant 3 : index
    %c0_109 = arith.constant 0 : index
    %c0_110 = arith.constant 0 : index
    %125 = vector.load %arg2[%c3_108, %c0_109, %c0_110] : memref<9x8x512xf32, #tpu.memory_space<vmem>>, vector<1x8x512xf32>
    %126 = vector.shape_cast %125 : vector<1x8x512xf32> to vector<8x512xf32>
    %127 = arith.mulf %124, %126 : vector<8x512xf32>
    %c24_111 = arith.constant 24 : index
    %c0_112 = arith.constant 0 : index
    %128 = vector.load %arg6[%c24_111, %c0_112] : memref<72x512xf32, #tpu.memory_space<vmem>>, vector<8x512xf32>
    tpu.vector_store %arg6[%c24_111, %c0_112], %127 {strides = array<i32>} : memref<72x512xf32, #tpu.memory_space<vmem>>, vector<8x512xf32>,
    %c32_113 = arith.constant 32 : index
    %c0_114 = arith.constant 0 : index
    %129 = vector.load %arg6[%c32_113, %c0_114] : memref<72x512xf32, #tpu.memory_space<vmem>>, vector<8x512xf32>
    tpu.vector_store %arg6[%c32_113, %c0_114], %107 {strides = array<i32>} : memref<72x512xf32, #tpu.memory_space<vmem>>, vector<8x512xf32>,
    %130 = vector.extract_strided_slice %108 {offsets = [0, 1], sizes = [8, 512], strides = [1, 1]} : vector<8x1024xf32> to vector<8x512xf32>
    %c5_115 = arith.constant 5 : index
    %c0_116 = arith.constant 0 : index
    %c0_117 = arith.constant 0 : index
    %131 = vector.load %arg2[%c5_115, %c0_116, %c0_117] : memref<9x8x512xf32, #tpu.memory_space<vmem>>, vector<1x8x512xf32>
    %132 = vector.shape_cast %131 : vector<1x8x512xf32> to vector<8x512xf32>
    %133 = arith.mulf %130, %132 : vector<8x512xf32>
    %c40_118 = arith.constant 40 : index
    %c0_119 = arith.constant 0 : index
    %134 = vector.load %arg6[%c40_118, %c0_119] : memref<72x512xf32, #tpu.memory_space<vmem>>, vector<8x512xf32>
    tpu.vector_store %arg6[%c40_118, %c0_119], %133 {strides = array<i32>} : memref<72x512xf32, #tpu.memory_space<vmem>>, vector<8x512xf32>,
    %135 = vector.extract_strided_slice %108 {offsets = [0, 15], sizes = [8, 512], strides = [1, 1]} : vector<8x1024xf32> to vector<8x512xf32>
    %c6_120 = arith.constant 6 : index
    %c0_121 = arith.constant 0 : index
    %c0_122 = arith.constant 0 : index
    %136 = vector.load %arg2[%c6_120, %c0_121, %c0_122] : memref<9x8x512xf32, #tpu.memory_space<vmem>>, vector<1x8x512xf32>
    %137 = vector.shape_cast %136 : vector<1x8x512xf32> to vector<8x512xf32>
    %138 = arith.mulf %135, %137 : vector<8x512xf32>
    %c48_123 = arith.constant 48 : index
    %c0_124 = arith.constant 0 : index
    %139 = vector.load %arg6[%c48_123, %c0_124] : memref<72x512xf32, #tpu.memory_space<vmem>>, vector<8x512xf32>
    tpu.vector_store %arg6[%c48_123, %c0_124], %138 {strides = array<i32>} : memref<72x512xf32, #tpu.memory_space<vmem>>, vector<8x512xf32>,
    %140 = vector.extract_strided_slice %108 {offsets = [0, 16], sizes = [8, 512], strides = [1, 1]} : vector<8x1024xf32> to vector<8x512xf32>
    %c7_125 = arith.constant 7 : index
    %c0_126 = arith.constant 0 : index
    %c0_127 = arith.constant 0 : index
    %141 = vector.load %arg2[%c7_125, %c0_126, %c0_127] : memref<9x8x512xf32, #tpu.memory_space<vmem>>, vector<1x8x512xf32>
    %142 = vector.shape_cast %141 : vector<1x8x512xf32> to vector<8x512xf32>
    %143 = arith.mulf %140, %142 : vector<8x512xf32>
    %c56_128 = arith.constant 56 : index
    %c0_129 = arith.constant 0 : index
    %144 = vector.load %arg6[%c56_128, %c0_129] : memref<72x512xf32, #tpu.memory_space<vmem>>, vector<8x512xf32>
    tpu.vector_store %arg6[%c56_128, %c0_129], %143 {strides = array<i32>} : memref<72x512xf32, #tpu.memory_space<vmem>>, vector<8x512xf32>,
    %145 = vector.extract_strided_slice %108 {offsets = [0, 17], sizes = [8, 512], strides = [1, 1]} : vector<8x1024xf32> to vector<8x512xf32>
    %c8_130 = arith.constant 8 : index
    %c0_131 = arith.constant 0 : index
    %c0_132 = arith.constant 0 : index
    %146 = vector.load %arg2[%c8_130, %c0_131, %c0_132] : memref<9x8x512xf32, #tpu.memory_space<vmem>>, vector<1x8x512xf32>
    %147 = vector.shape_cast %146 : vector<1x8x512xf32> to vector<8x512xf32>
    %148 = arith.mulf %145, %147 : vector<8x512xf32>
    %c64_133 = arith.constant 64 : index
    %c0_134 = arith.constant 0 : index
    %149 = vector.load %arg6[%c64_133, %c0_134] : memref<72x512xf32, #tpu.memory_space<vmem>>, vector<8x512xf32>
    tpu.vector_store %arg6[%c64_133, %c0_134], %148 {strides = array<i32>} : memref<72x512xf32, #tpu.memory_space<vmem>>, vector<8x512xf32>,
    %c2_135 = arith.constant 2 : index
    %c0_136 = arith.constant 0 : index
    %c0_137 = arith.constant 0 : index
    %150 = vector.load %arg3[%c2_135, %c0_136, %c0_137] : memref<5x8x72xf32, #tpu.memory_space<vmem>>, vector<1x8x72xf32>
    %151 = vector.shape_cast %150 : vector<1x8x72xf32> to vector<8x72xf32>
    %c0_138 = arith.constant 0 : index
    %c0_139 = arith.constant 0 : index
    %152 = vector.load %arg6[%c0_138, %c0_139] : memref<72x512xf32, #tpu.memory_space<vmem>>, vector<72x512xf32>
    %cst_140 = arith.constant dense<0.000000e+00> : vector<8x512xf32>
    %153 = tpu.matmul %151, %152, %cst_140 {dimension_numbers = #tpu.dot_dimension_numbers<[1], [0], [0], [1], [0, 0, 1, 1], [], []>} : vector<8x72xf32>, vector<72x512xf32>, vector<8x512xf32> -> vector<8x512xf32>
    %c2_141 = arith.constant 2 : index
    %c0_142 = arith.constant 0 : index
    %c0_143 = arith.constant 0 : index
    %154 = vector.load %arg4[%c2_141, %c0_142, %c0_143] : memref<5x8x1xf32, #tpu.memory_space<vmem>>, vector<1x8x1xf32>
    %155 = vector.shape_cast %154 : vector<1x8x1xf32> to vector<8x1xf32>
    %156 = vector.broadcast %155 : vector<8x1xf32> to vector<8x512xf32>
    %157 = arith.addf %153, %156 : vector<8x512xf32>
    %cst_144 = arith.constant 0.000000e+00 : f32
    %158 = vector.broadcast %cst_144 : f32 to vector<8x512xf32>
    %159 = arith.maximumf %157, %158 : vector<8x512xf32>
    %160 = tpu.concatenate %159, %159 in 1 : vector<8x512xf32>, vector<8x512xf32> -> vector<8x1024xf32>
    %161 = vector.extract_strided_slice %160 {offsets = [0, 495], sizes = [8, 512], strides = [1, 1]} : vector<8x1024xf32> to vector<8x512xf32>
    %c0_145 = arith.constant 0 : index
    %c0_146 = arith.constant 0 : index
    %c0_147 = arith.constant 0 : index
    %162 = vector.load %arg2[%c0_145, %c0_146, %c0_147] : memref<9x8x512xf32, #tpu.memory_space<vmem>>, vector<1x8x512xf32>
    %163 = vector.shape_cast %162 : vector<1x8x512xf32> to vector<8x512xf32>
    %164 = arith.mulf %161, %163 : vector<8x512xf32>
    %c0_148 = arith.constant 0 : index
    %c0_149 = arith.constant 0 : index
    %165 = vector.load %arg6[%c0_148, %c0_149] : memref<72x512xf32, #tpu.memory_space<vmem>>, vector<8x512xf32>
    tpu.vector_store %arg6[%c0_148, %c0_149], %164 {strides = array<i32>} : memref<72x512xf32, #tpu.memory_space<vmem>>, vector<8x512xf32>,
    %166 = vector.extract_strided_slice %160 {offsets = [0, 496], sizes = [8, 512], strides = [1, 1]} : vector<8x1024xf32> to vector<8x512xf32>
    %c1_150 = arith.constant 1 : index
    %c0_151 = arith.constant 0 : index
    %c0_152 = arith.constant 0 : index
    %167 = vector.load %arg2[%c1_150, %c0_151, %c0_152] : memref<9x8x512xf32, #tpu.memory_space<vmem>>, vector<1x8x512xf32>
    %168 = vector.shape_cast %167 : vector<1x8x512xf32> to vector<8x512xf32>
    %169 = arith.mulf %166, %168 : vector<8x512xf32>
    %c8_153 = arith.constant 8 : index
    %c0_154 = arith.constant 0 : index
    %170 = vector.load %arg6[%c8_153, %c0_154] : memref<72x512xf32, #tpu.memory_space<vmem>>, vector<8x512xf32>
    tpu.vector_store %arg6[%c8_153, %c0_154], %169 {strides = array<i32>} : memref<72x512xf32, #tpu.memory_space<vmem>>, vector<8x512xf32>,
    %171 = vector.extract_strided_slice %160 {offsets = [0, 497], sizes = [8, 512], strides = [1, 1]} : vector<8x1024xf32> to vector<8x512xf32>
    %c2_155 = arith.constant 2 : index
    %c0_156 = arith.constant 0 : index
    %c0_157 = arith.constant 0 : index
    %172 = vector.load %arg2[%c2_155, %c0_156, %c0_157] : memref<9x8x512xf32, #tpu.memory_space<vmem>>, vector<1x8x512xf32>
    %173 = vector.shape_cast %172 : vector<1x8x512xf32> to vector<8x512xf32>
    %174 = arith.mulf %171, %173 : vector<8x512xf32>
    %c16_158 = arith.constant 16 : index
    %c0_159 = arith.constant 0 : index
    %175 = vector.load %arg6[%c16_158, %c0_159] : memref<72x512xf32, #tpu.memory_space<vmem>>, vector<8x512xf32>
    tpu.vector_store %arg6[%c16_158, %c0_159], %174 {strides = array<i32>} : memref<72x512xf32, #tpu.memory_space<vmem>>, vector<8x512xf32>,
    %176 = vector.extract_strided_slice %160 {offsets = [0, 511], sizes = [8, 512], strides = [1, 1]} : vector<8x1024xf32> to vector<8x512xf32>
    %c3_160 = arith.constant 3 : index
    %c0_161 = arith.constant 0 : index
    %c0_162 = arith.constant 0 : index
    %177 = vector.load %arg2[%c3_160, %c0_161, %c0_162] : memref<9x8x512xf32, #tpu.memory_space<vmem>>, vector<1x8x512xf32>
    %178 = vector.shape_cast %177 : vector<1x8x512xf32> to vector<8x512xf32>
    %179 = arith.mulf %176, %178 : vector<8x512xf32>
    %c24_163 = arith.constant 24 : index
    %c0_164 = arith.constant 0 : index
    %180 = vector.load %arg6[%c24_163, %c0_164] : memref<72x512xf32, #tpu.memory_space<vmem>>, vector<8x512xf32>
    tpu.vector_store %arg6[%c24_163, %c0_164], %179 {strides = array<i32>} : memref<72x512xf32, #tpu.memory_space<vmem>>, vector<8x512xf32>,
    %c32_165 = arith.constant 32 : index
    %c0_166 = arith.constant 0 : index
    %181 = vector.load %arg6[%c32_165, %c0_166] : memref<72x512xf32, #tpu.memory_space<vmem>>, vector<8x512xf32>
    tpu.vector_store %arg6[%c32_165, %c0_166], %159 {strides = array<i32>} : memref<72x512xf32, #tpu.memory_space<vmem>>, vector<8x512xf32>,
    %182 = vector.extract_strided_slice %160 {offsets = [0, 1], sizes = [8, 512], strides = [1, 1]} : vector<8x1024xf32> to vector<8x512xf32>
    %c5_167 = arith.constant 5 : index
    %c0_168 = arith.constant 0 : index
    %c0_169 = arith.constant 0 : index
    %183 = vector.load %arg2[%c5_167, %c0_168, %c0_169] : memref<9x8x512xf32, #tpu.memory_space<vmem>>, vector<1x8x512xf32>
    %184 = vector.shape_cast %183 : vector<1x8x512xf32> to vector<8x512xf32>
    %185 = arith.mulf %182, %184 : vector<8x512xf32>
    %c40_170 = arith.constant 40 : index
    %c0_171 = arith.constant 0 : index
    %186 = vector.load %arg6[%c40_170, %c0_171] : memref<72x512xf32, #tpu.memory_space<vmem>>, vector<8x512xf32>
    tpu.vector_store %arg6[%c40_170, %c0_171], %185 {strides = array<i32>} : memref<72x512xf32, #tpu.memory_space<vmem>>, vector<8x512xf32>,
    %187 = vector.extract_strided_slice %160 {offsets = [0, 15], sizes = [8, 512], strides = [1, 1]} : vector<8x1024xf32> to vector<8x512xf32>
    %c6_172 = arith.constant 6 : index
    %c0_173 = arith.constant 0 : index
    %c0_174 = arith.constant 0 : index
    %188 = vector.load %arg2[%c6_172, %c0_173, %c0_174] : memref<9x8x512xf32, #tpu.memory_space<vmem>>, vector<1x8x512xf32>
    %189 = vector.shape_cast %188 : vector<1x8x512xf32> to vector<8x512xf32>
    %190 = arith.mulf %187, %189 : vector<8x512xf32>
    %c48_175 = arith.constant 48 : index
    %c0_176 = arith.constant 0 : index
    %191 = vector.load %arg6[%c48_175, %c0_176] : memref<72x512xf32, #tpu.memory_space<vmem>>, vector<8x512xf32>
    tpu.vector_store %arg6[%c48_175, %c0_176], %190 {strides = array<i32>} : memref<72x512xf32, #tpu.memory_space<vmem>>, vector<8x512xf32>,
    %192 = vector.extract_strided_slice %160 {offsets = [0, 16], sizes = [8, 512], strides = [1, 1]} : vector<8x1024xf32> to vector<8x512xf32>
    %c7_177 = arith.constant 7 : index
    %c0_178 = arith.constant 0 : index
    %c0_179 = arith.constant 0 : index
    %193 = vector.load %arg2[%c7_177, %c0_178, %c0_179] : memref<9x8x512xf32, #tpu.memory_space<vmem>>, vector<1x8x512xf32>
    %194 = vector.shape_cast %193 : vector<1x8x512xf32> to vector<8x512xf32>
    %195 = arith.mulf %192, %194 : vector<8x512xf32>
    %c56_180 = arith.constant 56 : index
    %c0_181 = arith.constant 0 : index
    %196 = vector.load %arg6[%c56_180, %c0_181] : memref<72x512xf32, #tpu.memory_space<vmem>>, vector<8x512xf32>
    tpu.vector_store %arg6[%c56_180, %c0_181], %195 {strides = array<i32>} : memref<72x512xf32, #tpu.memory_space<vmem>>, vector<8x512xf32>,
    %197 = vector.extract_strided_slice %160 {offsets = [0, 17], sizes = [8, 512], strides = [1, 1]} : vector<8x1024xf32> to vector<8x512xf32>
    %c8_182 = arith.constant 8 : index
    %c0_183 = arith.constant 0 : index
    %c0_184 = arith.constant 0 : index
    %198 = vector.load %arg2[%c8_182, %c0_183, %c0_184] : memref<9x8x512xf32, #tpu.memory_space<vmem>>, vector<1x8x512xf32>
    %199 = vector.shape_cast %198 : vector<1x8x512xf32> to vector<8x512xf32>
    %200 = arith.mulf %197, %199 : vector<8x512xf32>
    %c64_185 = arith.constant 64 : index
    %c0_186 = arith.constant 0 : index
    %201 = vector.load %arg6[%c64_185, %c0_186] : memref<72x512xf32, #tpu.memory_space<vmem>>, vector<8x512xf32>
    tpu.vector_store %arg6[%c64_185, %c0_186], %200 {strides = array<i32>} : memref<72x512xf32, #tpu.memory_space<vmem>>, vector<8x512xf32>,
    %c3_187 = arith.constant 3 : index
    %c0_188 = arith.constant 0 : index
    %c0_189 = arith.constant 0 : index
    %202 = vector.load %arg3[%c3_187, %c0_188, %c0_189] : memref<5x8x72xf32, #tpu.memory_space<vmem>>, vector<1x8x72xf32>
    %203 = vector.shape_cast %202 : vector<1x8x72xf32> to vector<8x72xf32>
    %c0_190 = arith.constant 0 : index
    %c0_191 = arith.constant 0 : index
    %204 = vector.load %arg6[%c0_190, %c0_191] : memref<72x512xf32, #tpu.memory_space<vmem>>, vector<72x512xf32>
    %cst_192 = arith.constant dense<0.000000e+00> : vector<8x512xf32>
    %205 = tpu.matmul %203, %204, %cst_192 {dimension_numbers = #tpu.dot_dimension_numbers<[1], [0], [0], [1], [0, 0, 1, 1], [], []>} : vector<8x72xf32>, vector<72x512xf32>, vector<8x512xf32> -> vector<8x512xf32>
    %c3_193 = arith.constant 3 : index
    %c0_194 = arith.constant 0 : index
    %c0_195 = arith.constant 0 : index
    %206 = vector.load %arg4[%c3_193, %c0_194, %c0_195] : memref<5x8x1xf32, #tpu.memory_space<vmem>>, vector<1x8x1xf32>
    %207 = vector.shape_cast %206 : vector<1x8x1xf32> to vector<8x1xf32>
    %208 = vector.broadcast %207 : vector<8x1xf32> to vector<8x512xf32>
    %209 = arith.addf %205, %208 : vector<8x512xf32>
    %210 = arith.addf %107, %209 : vector<8x512xf32>
    %211 = tpu.concatenate %210, %210 in 1 : vector<8x512xf32>, vector<8x512xf32> -> vector<8x1024xf32>
    %212 = vector.extract_strided_slice %211 {offsets = [0, 495], sizes = [8, 512], strides = [1, 1]} : vector<8x1024xf32> to vector<8x512xf32>
    %c0_196 = arith.constant 0 : index
    %c0_197 = arith.constant 0 : index
    %c0_198 = arith.constant 0 : index
    %213 = vector.load %arg2[%c0_196, %c0_197, %c0_198] : memref<9x8x512xf32, #tpu.memory_space<vmem>>, vector<1x8x512xf32>
    %214 = vector.shape_cast %213 : vector<1x8x512xf32> to vector<8x512xf32>
    %215 = arith.mulf %212, %214 : vector<8x512xf32>
    %c0_199 = arith.constant 0 : index
    %c0_200 = arith.constant 0 : index
    %216 = vector.load %arg6[%c0_199, %c0_200] : memref<72x512xf32, #tpu.memory_space<vmem>>, vector<8x512xf32>
    tpu.vector_store %arg6[%c0_199, %c0_200], %215 {strides = array<i32>} : memref<72x512xf32, #tpu.memory_space<vmem>>, vector<8x512xf32>,
    %217 = vector.extract_strided_slice %211 {offsets = [0, 496], sizes = [8, 512], strides = [1, 1]} : vector<8x1024xf32> to vector<8x512xf32>
    %c1_201 = arith.constant 1 : index
    %c0_202 = arith.constant 0 : index
    %c0_203 = arith.constant 0 : index
    %218 = vector.load %arg2[%c1_201, %c0_202, %c0_203] : memref<9x8x512xf32, #tpu.memory_space<vmem>>, vector<1x8x512xf32>
    %219 = vector.shape_cast %218 : vector<1x8x512xf32> to vector<8x512xf32>
    %220 = arith.mulf %217, %219 : vector<8x512xf32>
    %c8_204 = arith.constant 8 : index
    %c0_205 = arith.constant 0 : index
    %221 = vector.load %arg6[%c8_204, %c0_205] : memref<72x512xf32, #tpu.memory_space<vmem>>, vector<8x512xf32>
    tpu.vector_store %arg6[%c8_204, %c0_205], %220 {strides = array<i32>} : memref<72x512xf32, #tpu.memory_space<vmem>>, vector<8x512xf32>,
    %222 = vector.extract_strided_slice %211 {offsets = [0, 497], sizes = [8, 512], strides = [1, 1]} : vector<8x1024xf32> to vector<8x512xf32>
    %c2_206 = arith.constant 2 : index
    %c0_207 = arith.constant 0 : index
    %c0_208 = arith.constant 0 : index
    %223 = vector.load %arg2[%c2_206, %c0_207, %c0_208] : memref<9x8x512xf32, #tpu.memory_space<vmem>>, vector<1x8x512xf32>
    %224 = vector.shape_cast %223 : vector<1x8x512xf32> to vector<8x512xf32>
    %225 = arith.mulf %222, %224 : vector<8x512xf32>
    %c16_209 = arith.constant 16 : index
    %c0_210 = arith.constant 0 : index
    %226 = vector.load %arg6[%c16_209, %c0_210] : memref<72x512xf32, #tpu.memory_space<vmem>>, vector<8x512xf32>
    tpu.vector_store %arg6[%c16_209, %c0_210], %225 {strides = array<i32>} : memref<72x512xf32, #tpu.memory_space<vmem>>, vector<8x512xf32>,
    %227 = vector.extract_strided_slice %211 {offsets = [0, 511], sizes = [8, 512], strides = [1, 1]} : vector<8x1024xf32> to vector<8x512xf32>
    %c3_211 = arith.constant 3 : index
    %c0_212 = arith.constant 0 : index
    %c0_213 = arith.constant 0 : index
    %228 = vector.load %arg2[%c3_211, %c0_212, %c0_213] : memref<9x8x512xf32, #tpu.memory_space<vmem>>, vector<1x8x512xf32>
    %229 = vector.shape_cast %228 : vector<1x8x512xf32> to vector<8x512xf32>
    %230 = arith.mulf %227, %229 : vector<8x512xf32>
    %c24_214 = arith.constant 24 : index
    %c0_215 = arith.constant 0 : index
    %231 = vector.load %arg6[%c24_214, %c0_215] : memref<72x512xf32, #tpu.memory_space<vmem>>, vector<8x512xf32>
    tpu.vector_store %arg6[%c24_214, %c0_215], %230 {strides = array<i32>} : memref<72x512xf32, #tpu.memory_space<vmem>>, vector<8x512xf32>,
    %c32_216 = arith.constant 32 : index
    %c0_217 = arith.constant 0 : index
    %232 = vector.load %arg6[%c32_216, %c0_217] : memref<72x512xf32, #tpu.memory_space<vmem>>, vector<8x512xf32>
    tpu.vector_store %arg6[%c32_216, %c0_217], %210 {strides = array<i32>} : memref<72x512xf32, #tpu.memory_space<vmem>>, vector<8x512xf32>,
    %233 = vector.extract_strided_slice %211 {offsets = [0, 1], sizes = [8, 512], strides = [1, 1]} : vector<8x1024xf32> to vector<8x512xf32>
    %c5_218 = arith.constant 5 : index
    %c0_219 = arith.constant 0 : index
    %c0_220 = arith.constant 0 : index
    %234 = vector.load %arg2[%c5_218, %c0_219, %c0_220] : memref<9x8x512xf32, #tpu.memory_space<vmem>>, vector<1x8x512xf32>
    %235 = vector.shape_cast %234 : vector<1x8x512xf32> to vector<8x512xf32>
    %236 = arith.mulf %233, %235 : vector<8x512xf32>
    %c40_221 = arith.constant 40 : index
    %c0_222 = arith.constant 0 : index
    %237 = vector.load %arg6[%c40_221, %c0_222] : memref<72x512xf32, #tpu.memory_space<vmem>>, vector<8x512xf32>
    tpu.vector_store %arg6[%c40_221, %c0_222], %236 {strides = array<i32>} : memref<72x512xf32, #tpu.memory_space<vmem>>, vector<8x512xf32>,
    %238 = vector.extract_strided_slice %211 {offsets = [0, 15], sizes = [8, 512], strides = [1, 1]} : vector<8x1024xf32> to vector<8x512xf32>
    %c6_223 = arith.constant 6 : index
    %c0_224 = arith.constant 0 : index
    %c0_225 = arith.constant 0 : index
    %239 = vector.load %arg2[%c6_223, %c0_224, %c0_225] : memref<9x8x512xf32, #tpu.memory_space<vmem>>, vector<1x8x512xf32>
    %240 = vector.shape_cast %239 : vector<1x8x512xf32> to vector<8x512xf32>
    %241 = arith.mulf %238, %240 : vector<8x512xf32>
    %c48_226 = arith.constant 48 : index
    %c0_227 = arith.constant 0 : index
    %242 = vector.load %arg6[%c48_226, %c0_227] : memref<72x512xf32, #tpu.memory_space<vmem>>, vector<8x512xf32>
    tpu.vector_store %arg6[%c48_226, %c0_227], %241 {strides = array<i32>} : memref<72x512xf32, #tpu.memory_space<vmem>>, vector<8x512xf32>,
    %243 = vector.extract_strided_slice %211 {offsets = [0, 16], sizes = [8, 512], strides = [1, 1]} : vector<8x1024xf32> to vector<8x512xf32>
    %c7_228 = arith.constant 7 : index
    %c0_229 = arith.constant 0 : index
    %c0_230 = arith.constant 0 : index
    %244 = vector.load %arg2[%c7_228, %c0_229, %c0_230] : memref<9x8x512xf32, #tpu.memory_space<vmem>>, vector<1x8x512xf32>
    %245 = vector.shape_cast %244 : vector<1x8x512xf32> to vector<8x512xf32>
    %246 = arith.mulf %243, %245 : vector<8x512xf32>
    %c56_231 = arith.constant 56 : index
    %c0_232 = arith.constant 0 : index
    %247 = vector.load %arg6[%c56_231, %c0_232] : memref<72x512xf32, #tpu.memory_space<vmem>>, vector<8x512xf32>
    tpu.vector_store %arg6[%c56_231, %c0_232], %246 {strides = array<i32>} : memref<72x512xf32, #tpu.memory_space<vmem>>, vector<8x512xf32>,
    %248 = vector.extract_strided_slice %211 {offsets = [0, 17], sizes = [8, 512], strides = [1, 1]} : vector<8x1024xf32> to vector<8x512xf32>
    %c8_233 = arith.constant 8 : index
    %c0_234 = arith.constant 0 : index
    %c0_235 = arith.constant 0 : index
    %249 = vector.load %arg2[%c8_233, %c0_234, %c0_235] : memref<9x8x512xf32, #tpu.memory_space<vmem>>, vector<1x8x512xf32>
    %250 = vector.shape_cast %249 : vector<1x8x512xf32> to vector<8x512xf32>
    %251 = arith.mulf %248, %250 : vector<8x512xf32>
    %c64_236 = arith.constant 64 : index
    %c0_237 = arith.constant 0 : index
    %252 = vector.load %arg6[%c64_236, %c0_237] : memref<72x512xf32, #tpu.memory_space<vmem>>, vector<8x512xf32>
    tpu.vector_store %arg6[%c64_236, %c0_237], %251 {strides = array<i32>} : memref<72x512xf32, #tpu.memory_space<vmem>>, vector<8x512xf32>,
    %c4 = arith.constant 4 : index
    %c0_238 = arith.constant 0 : index
    %c0_239 = arith.constant 0 : index
    %253 = vector.load %arg3[%c4, %c0_238, %c0_239] : memref<5x8x72xf32, #tpu.memory_space<vmem>>, vector<1x8x72xf32>
    %254 = vector.shape_cast %253 : vector<1x8x72xf32> to vector<8x72xf32>
    %c0_240 = arith.constant 0 : index
    %c0_241 = arith.constant 0 : index
    %255 = vector.load %arg6[%c0_240, %c0_241] : memref<72x512xf32, #tpu.memory_space<vmem>>, vector<72x512xf32>
    %cst_242 = arith.constant dense<0.000000e+00> : vector<8x512xf32>
    %256 = tpu.matmul %254, %255, %cst_242 {dimension_numbers = #tpu.dot_dimension_numbers<[1], [0], [0], [1], [0, 0, 1, 1], [], []>} : vector<8x72xf32>, vector<72x512xf32>, vector<8x512xf32> -> vector<8x512xf32>
    %c4_243 = arith.constant 4 : index
    %c0_244 = arith.constant 0 : index
    %c0_245 = arith.constant 0 : index
    %257 = vector.load %arg4[%c4_243, %c0_244, %c0_245] : memref<5x8x1xf32, #tpu.memory_space<vmem>>, vector<1x8x1xf32>
    %258 = vector.shape_cast %257 : vector<1x8x1xf32> to vector<8x1xf32>
    %259 = vector.broadcast %258 : vector<8x1xf32> to vector<8x512xf32>
    %260 = arith.addf %256, %259 : vector<8x512xf32>
    %261 = vector.extract_strided_slice %260 {offsets = [0, 0], sizes = [8, 256], strides = [1, 1]} : vector<8x512xf32> to vector<8x256xf32>
    %c0_246 = arith.constant 0 : index
    %c0_247 = arith.constant 0 : index
    %c0_248 = arith.constant 0 : index
    %262 = vector.load %arg5[%c0_246, %c0_247, %c0_248] : memref<2x8x256xf32, #tpu.memory_space<vmem>>, vector<1x8x256xf32>
    %263 = vector.shape_cast %262 : vector<1x8x256xf32> to vector<8x256xf32>
    %264 = vector.shape_cast %261 : vector<8x256xf32> to vector<1x8x256xf32>
    tpu.vector_store %arg5[%c0_246, %c0_247, %c0_248], %264 {strides = array<i32>} : memref<2x8x256xf32, #tpu.memory_space<vmem>>, vector<1x8x256xf32>,
    %265 = vector.extract_strided_slice %260 {offsets = [0, 256], sizes = [8, 256], strides = [1, 1]} : vector<8x512xf32> to vector<8x256xf32>
    %c1_249 = arith.constant 1 : index
    %c0_250 = arith.constant 0 : index
    %c0_251 = arith.constant 0 : index
    %266 = vector.load %arg5[%c1_249, %c0_250, %c0_251] : memref<2x8x256xf32, #tpu.memory_space<vmem>>, vector<1x8x256xf32>
    %267 = vector.shape_cast %266 : vector<1x8x256xf32> to vector<8x256xf32>
    %268 = vector.shape_cast %265 : vector<8x256xf32> to vector<1x8x256xf32>
    tpu.vector_store %arg5[%c1_249, %c0_250, %c0_251], %268 {strides = array<i32>} : memref<2x8x256xf32, #tpu.memory_space<vmem>>, vector<1x8x256xf32>,
    return
  }
  func.func @transform_0(%arg0: i32) -> (i32, i32, i32) {
    %c0_i32 = arith.constant 0 : i32
    %c0_i32_0 = arith.constant 0 : i32
    %c0_i32_1 = arith.constant 0 : i32
    return %arg0, %c0_i32, %c0_i32_0 : i32, i32, i32
  }
  func.func @transform_1(%arg0: i32) -> (i32, i32, i32) {
    %c0_i32 = arith.constant 0 : i32
    %c0_i32_0 = arith.constant 0 : i32
    %c0_i32_1 = arith.constant 0 : i32
    %c0_i32_2 = arith.constant 0 : i32
    return %c0_i32, %c0_i32_0, %c0_i32_1 : i32, i32, i32
  }
  func.func @transform_2(%arg0: i32) -> (i32, i32, i32) {
    %c0_i32 = arith.constant 0 : i32
    %c0_i32_0 = arith.constant 0 : i32
    %c0_i32_1 = arith.constant 0 : i32
    %c0_i32_2 = arith.constant 0 : i32
    return %c0_i32, %c0_i32_0, %c0_i32_1 : i32, i32, i32
  }
  func.func @transform_3(%arg0: i32) -> (i32, i32, i32) {
    %c0_i32 = arith.constant 0 : i32
    %c0_i32_0 = arith.constant 0 : i32
    %c0_i32_1 = arith.constant 0 : i32
    %c0_i32_2 = arith.constant 0 : i32
    return %c0_i32, %c0_i32_0, %c0_i32_1 : i32, i32, i32
  }
  func.func @transform_4(%arg0: i32) -> (i32, i32, i32) {
    %c0_i32 = arith.constant 0 : i32
    %c0_i32_0 = arith.constant 0 : i32
    %c0_i32_1 = arith.constant 0 : i32
    return %arg0, %c0_i32, %c0_i32_0 : i32, i32, i32
  }
}

</mosaic_0001>

<llo_original>
// kernel: tpu_custom_call.1
$region0: #{tpu_custom_call.1}
  #allocation0 [shape = 'u32[]', space=smem, size = 0x4, offset = 0x4, fixed_abs, tag = 'smem constant byte address 0x4 - core index']
  #allocation1 [shape = 'u32[144,128]{1,0:T(1,128)}', space=vmem, size = 0x12000, scoped, tag = 'internal scratch']
  #allocation2 [shape = 'f32[72,512]{1,0:T(8,128)}', space=vmem, size = 0x24000, scoped, tag = 'scratch operand']
  %s0 = inlined_call_operand.hbm [shape: f32[4,8,256], index: 0, kind: input, shape index: {}]
  %s1 = inlined_call_operand.hbm [shape: f32[9,8,512], index: 1, kind: input, shape index: {}]
  %s2 = inlined_call_operand.vmem [shape: f32[5,8,72], index: 2, kind: input, shape index: {}]
  %s3 = inlined_call_operand.vmem [shape: f32[5,8,1], index: 3, kind: input, shape index: {}]
  %s4 = inlined_call_operand.hbm [shape: f32[4,8,256], index: 4, kind: output, shape index: {}]
  %s5 = sld [smem:[#allocation0]]
  $region57: #{tpu_custom_call.1} parent=0
    _
  %s7 = ssub.s32 1, %s5
  %s8 = scalar_select 0, %s7, %s5
  $region1: #{tpu_custom_call.1} parent=0
    #allocation3 [shape = 'u8[32768]{0}', space=vmem, size = 0x8000, scoped, tag = 'input window, operand 0']
    #allocation4 [shape = 's32[2]{0}', space=sflag, size = 0x8, scoped, tag = 'scoped memory for tpu_custom_call.1']
    #allocation5 [shape = 's32[2]{0}', space=sflag, size = 0x8, scoped, tag = 'scoped memory for tpu_custom_call.1']
    #allocation6 [shape = 'u8[147456]{0}', space=vmem, size = 0x24000, scoped, tag = 'input window, operand 1, single buffered']
    #allocation7 [shape = 's32[1]{0}', space=sflag, size = 0x4, scoped, tag = 'scoped memory for tpu_custom_call.1']
    #allocation8 [shape = 'u8[32768]{0}', space=vmem, size = 0x8000, scoped, tag = 'output window, operand 0']
    %9 = vsyncpa [#allocation4], 0
    %s10 = scalar_lea.sflag [#allocation4], 1
    %11 = vsyncpa %s10, 0
    %12 = vsyncpa [#allocation7], 0
    %13 = vsyncpa [#allocation5], 0
    %s14 = scalar_lea.sflag [#allocation5], 1
    %15 = vsyncpa %s14, 0
    loop: start=0, step=1, limit=4
    $region2: #{tpu_custom_call.1} parent=1 // loop_pre_header
      _
    $region3: #{tpu_custom_call.1} parent=1 // loop_header
      %s17 = sphi 0, %s21
      %p18 = scmp.ge.s32.totalorder %s17, 4
      %s27 = sphi 0, %s29
      %s30 = sphi 0, %s27
      %s31 = sphi 0, %s30
      %s47 = sphi 0, %s31
      %s51 = sphi 0, %s51
      %s53 = sphi 0, %s51
      %s54 = sphi 0, %s53
      %s68 = sphi 0, %s54
      %s72 = sphi 0, %s72
      %s74 = sphi 0, %s72
      %s75 = sphi 0, %s74
      %s89 = sphi 0, %s75
      %s93 = sphi 0, %s93
      %s95 = sphi 0, %s93
      %s96 = sphi 0, %s95
      %s110 = sphi 0, %s96
      %s116 = sphi 0, %s118
      %s119 = sphi 0, %s116
      %s120 = sphi 0, %s119
      %s136 = sphi 0, %s120
    $region4: #{tpu_custom_call.1} parent=1 // loop_header_branch
      %20 = sbr.rel (%p18) target = $region8
    $region5: #{tpu_custom_call.1} parent=1 // loop_body
      %s22 = ssub.s32 %s17, 1
      %s23 = ssub.s32 %s17, 2
      %s24 = sadd.s32 %s17, 1
      %s25 = ssub.s32 %s17, %s24
      %p26 = scmp.eq.s32.totalorder %s25, 0
      %s28 = sadd.s32 %s27, 1
      %s29 = scalar_select %p26, %s27, %s28
      %p32 = pneg %p26
      %p33 = scmp.eq.s32.totalorder %s17, 1
      %p34 = por %p32, %p33
      %p35 = scmp.ne.s32.totalorder %s27, %s30
      %p36 = scmp.eq.s32.totalorder %s17, 0
      %p37 = por %p35, %p36
      %p38 = scmp.ne.s32.totalorder %s27, %s30
      %p39 = scmp.eq.s32.totalorder %s22, 1
      %p40 = por %p38, %p39
      %p41 = scmp.ne.s32.totalorder %s30, %s31
      %p42 = scmp.eq.s32.totalorder %s22, 0
      %p43 = por %p41, %p42
      %p44 = scmp.ne.s32.totalorder %s30, %s31
      %p45 = scmp.eq.s32.totalorder %s23, 1
      %p46 = por %p44, %p45
      %p48 = scmp.ne.s32.totalorder %s31, %s47
      %p49 = scmp.eq.s32.totalorder %s23, 0
      %p50 = por %p48, %p49
      %s52 = sadd.s32 %s51, 1
      %p55 = scmp.eq.s32.totalorder %s17, 1
      %p56 = scmp.ne.s32.totalorder %s51, %s53
      %p57 = scmp.eq.s32.totalorder %s17, 0
      %p58 = por %p56, %p57
      %p59 = scmp.ne.s32.totalorder %s51, %s53
      %p60 = scmp.eq.s32.totalorder %s22, 1
      %p61 = por %p59, %p60
      %p62 = scmp.ne.s32.totalorder %s53, %s54
      %p63 = scmp.eq.s32.totalorder %s22, 0
      %p64 = por %p62, %p63
      %p65 = scmp.ne.s32.totalorder %s53, %s54
      %p66 = scmp.eq.s32.totalorder %s23, 1
      %p67 = por %p65, %p66
      %p69 = scmp.ne.s32.totalorder %s54, %s68
      %p70 = scmp.eq.s32.totalorder %s23, 0
      %p71 = por %p69, %p70
      %s73 = sadd.s32 %s72, 1
      %p76 = scmp.eq.s32.totalorder %s17, 1
      %p77 = scmp.ne.s32.totalorder %s72, %s74
      %p78 = scmp.eq.s32.totalorder %s17, 0
      %p79 = por %p77, %p78
      %p80 = scmp.ne.s32.totalorder %s72, %s74
      %p81 = scmp.eq.s32.totalorder %s22, 1
      %p82 = por %p80, %p81
      %p83 = scmp.ne.s32.totalorder %s74, %s75
      %p84 = scmp.eq.s32.totalorder %s22, 0
      %p85 = por %p83, %p84
      %p86 = scmp.ne.s32.totalorder %s74, %s75
      %p87 = scmp.eq.s32.totalorder %s23, 1
      %p88 = por %p86, %p87
      %p90 = scmp.ne.s32.totalorder %s75, %s89
      %p91 = scmp.eq.s32.totalorder %s23, 0
      %p92 = por %p90, %p91
      %s94 = sadd.s32 %s93, 1
      %p97 = scmp.eq.s32.totalorder %s17, 1
      %p98 = scmp.ne.s32.totalorder %s93, %s95
      %p99 = scmp.eq.s32.totalorder %s17, 0
      %p100 = por %p98, %p99
      %p101 = scmp.ne.s32.totalorder %s93, %s95
      %p102 = scmp.eq.s32.totalorder %s22, 1
      %p103 = por %p101, %p102
      %p104 = scmp.ne.s32.totalorder %s95, %s96
      %p105 = scmp.eq.s32.totalorder %s22, 0
      %p106 = por %p104, %p105
      %p107 = scmp.ne.s32.totalorder %s95, %s96
      %p108 = scmp.eq.s32.totalorder %s23, 1
      %p109 = por %p107, %p108
      %p111 = scmp.ne.s32.totalorder %s96, %s110
      %p112 = scmp.eq.s32.totalorder %s23, 0
      %p113 = por %p111, %p112
      %s114 = ssub.s32 %s17, %s24
      %p115 = scmp.eq.s32.totalorder %s114, 0
      %s117 = sadd.s32 %s116, 1
      %s118 = scalar_select %p115, %s116, %s117
      %p121 = pneg %p115
      %p122 = scmp.eq.s32.totalorder %s17, 1
      %p123 = por %p121, %p122
      %p124 = scmp.ne.s32.totalorder %s116, %s119
      %p125 = scmp.eq.s32.totalorder %s17, 0
      %p126 = por %p124, %p125
      %p127 = scmp.ne.s32.totalorder %s116, %s119
      %p128 = scmp.eq.s32.totalorder %s22, 1
      %p129 = por %p127, %p128
      %p130 = scmp.ne.s32.totalorder %s119, %s120
      %p131 = scmp.eq.s32.totalorder %s22, 0
      %p132 = por %p130, %p131
      %p133 = scmp.ne.s32.totalorder %s119, %s120
      %p134 = scmp.eq.s32.totalorder %s23, 1
      %p135 = por %p133, %p134
      %p137 = scmp.ne.s32.totalorder %s120, %s136
      %p138 = scmp.eq.s32.totalorder %s23, 0
      %p139 = por %p137, %p138
      %p140 = scmp.le.s32.totalorder 1, %s17
      %p141 = scmp.lt.s32.totalorder %s17, 3
      %p142 = pnand %p140, %p141
      %p143 = pneg %p142
      // Predicated region
      $region9: #{tpu_custom_call.1} parent=5 // pred_check
        _
      $region10: #{tpu_custom_call.1} parent=5 // pred_check_branch
        %145 = sbr.rel (%p142) target = $region12
      $region11: #{tpu_custom_call.1} parent=5 // pred_region
        %s146 = ssub.s32 %s17, 1
        // Predicated region
        $region13: #{tpu_custom_call.1} parent=11 // pred_check
          %p147 = pneg %p64
        $region14: #{tpu_custom_call.1} parent=11 // pred_check_branch
          %149 = sbr.rel (%p147) target = $region16
        $region15: #{tpu_custom_call.1} parent=11 // pred_region
          %s151 = ssub.s32 4608, 4608
          %152 = vsyncadd [#allocation7], %s151
          %s153 = sshll.u32 [#allocation6], 4
          %s154 = int_to_ptr.vmem [resolvable:$true] %s153
          %159 = dma.hbm_to_vmem [thread:$0]  %s1, 4608, %s154, [#allocation7], 512, 512, 32
        $region16: #{tpu_custom_call.1} parent=11 // pred_fallthru
          _
        // Predicated region
        $region17: #{tpu_custom_call.1} parent=11 // pred_check
          %p160 = pneg %p85
        $region18: #{tpu_custom_call.1} parent=11 // pred_check_branch
          %162 = sbr.rel (%p160) target = $region20
        $region19: #{tpu_custom_call.1} parent=11 // pred_region
          _
        $region20: #{tpu_custom_call.1} parent=11 // pred_fallthru
          _
        // Predicated region
        $region21: #{tpu_custom_call.1} parent=11 // pred_check
          %p163 = pneg %p106
        $region22: #{tpu_custom_call.1} parent=11 // pred_check_branch
          %165 = sbr.rel (%p163) target = $region24
        $region23: #{tpu_custom_call.1} parent=11 // pred_region
          _
        $region24: #{tpu_custom_call.1} parent=11 // pred_fallthru
          _
      $region12: #{tpu_custom_call.1} parent=5 // pred_fallthru
        _
      %p166 = scmp.lt.s32.totalorder %s17, 2
      // Predicated region
      $region25: #{tpu_custom_call.1} parent=5 // pred_check
        %p167 = pneg %p166
      $region26: #{tpu_custom_call.1} parent=5 // pred_check_branch
        %169 = sbr.rel (%p167) target = $region28
      $region27: #{tpu_custom_call.1} parent=5 // pred_region
        // Predicated region
        $region29: #{tpu_custom_call.1} parent=27 // pred_check
          %p170 = pneg %p37
        $region30: #{tpu_custom_call.1} parent=27 // pred_check_branch
          %172 = sbr.rel (%p170) target = $region32
        $region31: #{tpu_custom_call.1} parent=27 // pred_region
          %s173 = sand.u32 %s27, 1
          %s174 = scalar_lea.sflag [#allocation4], %s173
          %s175 = sand.u32 %s27, 1
          %s176 = smul.addr %s175, 32
          %s177 = scalar_lea.vmem [#allocation3], %s176
          %s178 = smul.u32 2, %s17
          %s180 = ssub.s32 512, 512
          %181 = vsyncadd %s174, %s180
          %s182 = smul.addr %s178, 2
          %s183 = smul.addr %s182, 128
          %s184 = scalar_lea.hbm %s0, %s183
          %s185 = sshll.u32 %s177, 4
          %s186 = int_to_ptr.vmem [resolvable:$true] %s185
          %191 = dma.hbm_to_vmem [thread:$0]  %s184, 512, %s186, %s174, 256, 256, 16
        $region32: #{tpu_custom_call.1} parent=27 // pred_fallthru
          _
      $region28: #{tpu_custom_call.1} parent=5 // pred_fallthru
        _
      %p192 = scmp.le.s32.totalorder 1, %s17
      %p193 = scmp.lt.s32.totalorder %s17, 3
      %p194 = pnand %p192, %p193
      %p195 = pneg %p194
      // Predicated region
      $region33: #{tpu_custom_call.1} parent=5 // pred_check
        _
      $region34: #{tpu_custom_call.1} parent=5 // pred_check_branch
        %197 = sbr.rel (%p194) target = $region36
      $region35: #{tpu_custom_call.1} parent=5 // pred_region
        %s198 = ssub.s32 %s17, 1
        %s199 = sand.u32 %s30, 1
        %s200 = scalar_lea.sflag [#allocation4], %s199
        %s201 = sand.u32 %s30, 1
        %s202 = smul.addr %s201, 32
        %s203 = scalar_lea.vmem [#allocation3], %s202
        // Predicated region
        $region37: #{tpu_custom_call.1} parent=35 // pred_check
          %p204 = pneg %p43
        $region38: #{tpu_custom_call.1} parent=35 // pred_check_branch
          %206 = sbr.rel (%p204) target = $region40
        $region39: #{tpu_custom_call.1} parent=35 // pred_region
          %207 = dma.done %s200, 512
        $region40: #{tpu_custom_call.1} parent=35 // pred_fallthru
          _
        // Predicated region
        $region41: #{tpu_custom_call.1} parent=35 // pred_check
          %p208 = pneg %p64
        $region42: #{tpu_custom_call.1} parent=35 // pred_check_branch
          %210 = sbr.rel (%p208) target = $region44
        $region43: #{tpu_custom_call.1} parent=35 // pred_region
          %211 = dma.done [#allocation7], 4608
        $region44: #{tpu_custom_call.1} parent=35 // pred_fallthru
          _
        %s212 = sand.u32 %s30, 1
        %s213 = scalar_lea.sflag [#allocation4], %s212
        %s214 = sand.u32 %s30, 1
        %s215 = smul.addr %s214, 32
        %s216 = scalar_lea.vmem [#allocation3], %s215
        %p217 = pneg %p43
        %p218 = pneg %p40
        %p219 = pneg %p64
        %p220 = pneg %p61
        %p221 = pneg %p85
        %p222 = pneg %p82
        %p223 = pneg %p106
        %p224 = pneg %p103
        %p225 = pneg %p132
        %p226 = pneg %p129
        %s227 = sand.u32 %s119, 1
        %s228 = scalar_lea.sflag [#allocation5], %s227
        %s229 = sand.u32 %s119, 1
        %s230 = smul.addr %s229, 32
        %s231 = scalar_lea.vmem [#allocation8], %s230
        %s232 = smul.u32 2, %s22
        %s233 = smul.u32 2, %s22
        %v234 = vld [vmem:[%s203] sm:$0xff]
        %v235 = vld [vmem:[%s203 + $0x8] sm:$0xff]
        %s236 = scalar_lea.vmem %s203, 16 [#allocation3]
        %v237 = vld [vmem:[%s236] sm:$0xff]
        %v238 = vld [vmem:[%s236 + $0x8] sm:$0xff]
        %v239 = vld [vmem:[#allocation6] sm:$0xff]
        %v240 = vld [vmem:[#allocation6 + $0x8] sm:$0xff]
        %v241 = vld [vmem:[#allocation6 + $0x10] sm:$0xff]
        %v242 = vld [vmem:[#allocation6 + $0x18] sm:$0xff]
        %247 = vrot.lane.b32.xlu0 %v239, 111
        %v248 = vpop.permute.xlu0 %247
        %249 = vrot.lane.b32.xlu0 %v240, 111
        %v250 = vpop.permute.xlu0 %249
        %251 = vrot.lane.b32.xlu0 %v241, 111
        %v252 = vpop.permute.xlu0 %251
        %253 = vrot.lane.b32.xlu0 %v242, 111
        %v254 = vpop.permute.xlu0 %253
        %vm255 = vcmask 908288
        %v256 = vsel %vm255, %v248, %v250
        %v257 = vsel %vm255, %v250, %v252
        %v258 = vsel %vm255, %v252, %v254
        %v264 = vmul.f32 %v238, %v248
        %v265 = vmul.f32 %v234, %v256
        %v266 = vmul.f32 %v235, %v257
        %v267 = vmul.f32 %v237, %v258
        %v268 = vmul.f32 %v238, %v254
        %274 = vrot.lane.b32.xlu0 %v264, 17
        %v275 = vpop.permute.xlu0 %274
        %276 = vrot.lane.b32.xlu0 %v265, 17
        %v277 = vpop.permute.xlu0 %276
        %278 = vrot.lane.b32.xlu0 %v266, 17
        %v279 = vpop.permute.xlu0 %278
        %280 = vrot.lane.b32.xlu0 %v267, 17
        %v281 = vpop.permute.xlu0 %280
        %282 = vrot.lane.b32.xlu0 %v268, 17
        %v283 = vpop.permute.xlu0 %282
        %vm284 = vcmask 138240
        %v285 = vsel %vm284, %v275, %v277
        %v286 = vsel %vm284, %v277, %v279
        %v287 = vsel %vm284, %v279, %v281
        %v288 = vsel %vm284, %v281, %v283
        %293 = vst [vmem:[#allocation2] sm:$0xff] %v285
        %294 = vst [vmem:[#allocation2 + $0x8] sm:$0xff] %v286
        %295 = vst [vmem:[#allocation2 + $0x10] sm:$0xff] %v287
        %296 = vst [vmem:[#allocation2 + $0x18] sm:$0xff] %v288
        %s297 = scalar_lea.vmem [#allocation6], 32
        %v298 = vld [vmem:[%s297] sm:$0xff]
        %v299 = vld [vmem:[%s297 + $0x8] sm:$0xff]
        %v300 = vld [vmem:[%s297 + $0x10] sm:$0xff]
        %v301 = vld [vmem:[%s297 + $0x18] sm:$0xff]
        %306 = vrot.lane.b32.xlu0 %v298, 112
        %v307 = vpop.permute.xlu0 %306
        %308 = vrot.lane.b32.xlu0 %v299, 112
        %v309 = vpop.permute.xlu0 %308
        %310 = vrot.lane.b32.xlu0 %v300, 112
        %v311 = vpop.permute.xlu0 %310
        %312 = vrot.lane.b32.xlu0 %v301, 112
        %v313 = vpop.permute.xlu0 %312
        %vm314 = vcmask 916480
        %v315 = vsel %vm314, %v307, %v309
        %v316 = vsel %vm314, %v309, %v311
        %v317 = vsel %vm314, %v311, %v313
        %v323 = vmul.f32 %v238, %v307
        %v324 = vmul.f32 %v234, %v315
        %v325 = vmul.f32 %v235, %v316
        %v326 = vmul.f32 %v237, %v317
        %v327 = vmul.f32 %v238, %v313
        %333 = vrot.lane.b32.xlu0 %v323, 16
        %v334 = vpop.permute.xlu0 %333
        %335 = vrot.lane.b32.xlu0 %v324, 16
        %v336 = vpop.permute.xlu0 %335
        %337 = vrot.lane.b32.xlu0 %v325, 16
        %v338 = vpop.permute.xlu0 %337
        %339 = vrot.lane.b32.xlu0 %v326, 16
        %v340 = vpop.permute.xlu0 %339
        %341 = vrot.lane.b32.xlu0 %v327, 16
        %v342 = vpop.permute.xlu0 %341
        %vm343 = vcmask 130048
        %v344 = vsel %vm343, %v334, %v336
        %v345 = vsel %vm343, %v336, %v338
        %v346 = vsel %vm343, %v338, %v340
        %v347 = vsel %vm343, %v340, %v342
        %352 = vst [vmem:[#allocation2 + $0x20] sm:$0xff] %v344
        %353 = vst [vmem:[#allocation2 + $0x28] sm:$0xff] %v345
        %354 = vst [vmem:[#allocation2 + $0x30] sm:$0xff] %v346
        %355 = vst [vmem:[#allocation2 + $0x38] sm:$0xff] %v347
        %s356 = scalar_lea.vmem [#allocation6], 64
        %v357 = vld [vmem:[%s356] sm:$0xff]
        %v358 = vld [vmem:[%s356 + $0x8] sm:$0xff]
        %v359 = vld [vmem:[%s356 + $0x10] sm:$0xff]
        %v360 = vld [vmem:[%s356 + $0x18] sm:$0xff]
        %365 = vrot.lane.b32.xlu0 %v357, 113
        %v366 = vpop.permute.xlu0 %365
        %367 = vrot.lane.b32.xlu0 %v358, 113
        %v368 = vpop.permute.xlu0 %367
        %369 = vrot.lane.b32.xlu0 %v359, 113
        %v370 = vpop.permute.xlu0 %369
        %371 = vrot.lane.b32.xlu0 %v360, 113
        %v372 = vpop.permute.xlu0 %371
        %vm373 = vcmask 924672
        %v374 = vsel %vm373, %v366, %v368
        %v375 = vsel %vm373, %v368, %v370
        %v376 = vsel %vm373, %v370, %v372
        %v382 = vmul.f32 %v238, %v366
        %v383 = vmul.f32 %v234, %v374
        %v384 = vmul.f32 %v235, %v375
        %v385 = vmul.f32 %v237, %v376
        %v386 = vmul.f32 %v238, %v372
        %392 = vrot.lane.b32.xlu0 %v382, 15
        %v393 = vpop.permute.xlu0 %392
        %394 = vrot.lane.b32.xlu0 %v383, 15
        %v395 = vpop.permute.xlu0 %394
        %396 = vrot.lane.b32.xlu0 %v384, 15
        %v397 = vpop.permute.xlu0 %396
        %398 = vrot.lane.b32.xlu0 %v385, 15
        %v399 = vpop.permute.xlu0 %398
        %400 = vrot.lane.b32.xlu0 %v386, 15
        %v401 = vpop.permute.xlu0 %400
        %vm402 = vcmask 121856
        %v403 = vsel %vm402, %v393, %v395
        %v404 = vsel %vm402, %v395, %v397
        %v405 = vsel %vm402, %v397, %v399
        %v406 = vsel %vm402, %v399, %v401
        %411 = vst [vmem:[#allocation2 + $0x40] sm:$0xff] %v403
        %412 = vst [vmem:[#allocation2 + $0x48] sm:$0xff] %v404
        %413 = vst [vmem:[#allocation2 + $0x50] sm:$0xff] %v405
        %414 = vst [vmem:[#allocation2 + $0x58] sm:$0xff] %v406
        %s415 = scalar_lea.vmem [#allocation6], 96
        %v416 = vld [vmem:[%s415] sm:$0xff]
        %v417 = vld [vmem:[%s415 + $0x8] sm:$0xff]
        %v418 = vld [vmem:[%s415 + $0x10] sm:$0xff]
        %v419 = vld [vmem:[%s415 + $0x18] sm:$0xff]
        %424 = vrot.lane.b32.xlu0 %v416, 127
        %v425 = vpop.permute.xlu0 %424
        %426 = vrot.lane.b32.xlu0 %v417, 127
        %v427 = vpop.permute.xlu0 %426
        %428 = vrot.lane.b32.xlu0 %v418, 127
        %v429 = vpop.permute.xlu0 %428
        %430 = vrot.lane.b32.xlu0 %v419, 127
        %v431 = vpop.permute.xlu0 %430
        %vm432 = vcmask 1039360
        %v433 = vsel %vm432, %v425, %v427
        %v434 = vsel %vm432, %v427, %v429
        %v435 = vsel %vm432, %v429, %v431
        %v441 = vmul.f32 %v238, %v425
        %v442 = vmul.f32 %v234, %v433
        %v443 = vmul.f32 %v235, %v434
        %v444 = vmul.f32 %v237, %v435
        %v445 = vmul.f32 %v238, %v431
        %451 = vrot.lane.b32.xlu0 %v441, 1
        %v452 = vpop.permute.xlu0 %451
        %453 = vrot.lane.b32.xlu0 %v442, 1
        %v454 = vpop.permute.xlu0 %453
        %455 = vrot.lane.b32.xlu0 %v443, 1
        %v456 = vpop.permute.xlu0 %455
        %457 = vrot.lane.b32.xlu0 %v444, 1
        %v458 = vpop.permute.xlu0 %457
        %459 = vrot.lane.b32.xlu0 %v445, 1
        %v460 = vpop.permute.xlu0 %459
        %vm461 = vcmask 7168
        %v462 = vsel %vm461, %v452, %v454
        %v463 = vsel %vm461, %v454, %v456
        %v464 = vsel %vm461, %v456, %v458
        %v465 = vsel %vm461, %v458, %v460
        %470 = vst [vmem:[#allocation2 + $0x60] sm:$0xff] %v462
        %471 = vst [vmem:[#allocation2 + $0x68] sm:$0xff] %v463
        %472 = vst [vmem:[#allocation2 + $0x70] sm:$0xff] %v464
        %473 = vst [vmem:[#allocation2 + $0x78] sm:$0xff] %v465
        %474 = vst [vmem:[#allocation2 + $0x80] sm:$0xff] %v234
        %475 = vst [vmem:[#allocation2 + $0x88] sm:$0xff] %v235
        %476 = vst [vmem:[#allocation2 + $0x90] sm:$0xff] %v237
        %477 = vst [vmem:[#allocation2 + $0x98] sm:$0xff] %v238
        %s478 = scalar_lea.vmem [#allocation6], 160
        %v479 = vld [vmem:[%s478] sm:$0xff]
        %v480 = vld [vmem:[%s478 + $0x8] sm:$0xff]
        %v481 = vld [vmem:[%s478 + $0x10] sm:$0xff]
        %v482 = vld [vmem:[%s478 + $0x18] sm:$0xff]
        %487 = vrot.lane.b32.xlu0 %v479, 1
        %v488 = vpop.permute.xlu0 %487
        %489 = vrot.lane.b32.xlu0 %v480, 1
        %v490 = vpop.permute.xlu0 %489
        %491 = vrot.lane.b32.xlu0 %v481, 1
        %v492 = vpop.permute.xlu0 %491
        %493 = vrot.lane.b32.xlu0 %v482, 1
        %v494 = vpop.permute.xlu0 %493
        %v495 = vsel %vm461, %v488, %v490
        %v496 = vsel %vm461, %v490, %v492
        %v497 = vsel %vm461, %v492, %v494
        %v503 = vmul.f32 %v234, %v488
        %v504 = vmul.f32 %v235, %v495
        %v505 = vmul.f32 %v237, %v496
        %v506 = vmul.f32 %v238, %v497
        %v507 = vmul.f32 %v234, %v494
        %513 = vrot.lane.b32.xlu0 %v503, 127
        %v514 = vpop.permute.xlu0 %513
        %515 = vrot.lane.b32.xlu0 %v504, 127
        %v516 = vpop.permute.xlu0 %515
        %517 = vrot.lane.b32.xlu0 %v505, 127
        %v518 = vpop.permute.xlu0 %517
        %519 = vrot.lane.b32.xlu0 %v506, 127
        %v520 = vpop.permute.xlu0 %519
        %521 = vrot.lane.b32.xlu0 %v507, 127
        %v522 = vpop.permute.xlu0 %521
        %v523 = vsel %vm432, %v514, %v516
        %v524 = vsel %vm432, %v516, %v518
        %v525 = vsel %vm432, %v518, %v520
        %v526 = vsel %vm432, %v520, %v522
        %531 = vst [vmem:[#allocation2 + $0xa0] sm:$0xff] %v523
        %532 = vst [vmem:[#allocation2 + $0xa8] sm:$0xff] %v524
        %533 = vst [vmem:[#allocation2 + $0xb0] sm:$0xff] %v525
        %534 = vst [vmem:[#allocation2 + $0xb8] sm:$0xff] %v526
        %s535 = scalar_lea.vmem [#allocation6], 192
        %v536 = vld [vmem:[%s535] sm:$0xff]
        %v537 = vld [vmem:[%s535 + $0x8] sm:$0xff]
        %v538 = vld [vmem:[%s535 + $0x10] sm:$0xff]
        %v539 = vld [vmem:[%s535 + $0x18] sm:$0xff]
        %544 = vrot.lane.b32.xlu0 %v536, 15
        %v545 = vpop.permute.xlu0 %544
        %546 = vrot.lane.b32.xlu0 %v537, 15
        %v547 = vpop.permute.xlu0 %546
        %548 = vrot.lane.b32.xlu0 %v538, 15
        %v549 = vpop.permute.xlu0 %548
        %550 = vrot.lane.b32.xlu0 %v539, 15
        %v551 = vpop.permute.xlu0 %550
        %v552 = vsel %vm402, %v545, %v547
        %v553 = vsel %vm402, %v547, %v549
        %v554 = vsel %vm402, %v549, %v551
        %v560 = vmul.f32 %v234, %v545
        %v561 = vmul.f32 %v235, %v552
        %v562 = vmul.f32 %v237, %v553
        %v563 = vmul.f32 %v238, %v554
        %v564 = vmul.f32 %v234, %v551
        %570 = vrot.lane.b32.xlu0 %v560, 113
        %v571 = vpop.permute.xlu0 %570
        %572 = vrot.lane.b32.xlu0 %v561, 113
        %v573 = vpop.permute.xlu0 %572
        %574 = vrot.lane.b32.xlu0 %v562, 113
        %v575 = vpop.permute.xlu0 %574
        %576 = vrot.lane.b32.xlu0 %v563, 113
        %v577 = vpop.permute.xlu0 %576
        %578 = vrot.lane.b32.xlu0 %v564, 113
        %v579 = vpop.permute.xlu0 %578
        %v580 = vsel %vm373, %v571, %v573
        %v581 = vsel %vm373, %v573, %v575
        %v582 = vsel %vm373, %v575, %v577
        %v583 = vsel %vm373, %v577, %v579
        %588 = vst [vmem:[#allocation2 + $0xc0] sm:$0xff] %v580
        %589 = vst [vmem:[#allocation2 + $0xc8] sm:$0xff] %v581
        %590 = vst [vmem:[#allocation2 + $0xd0] sm:$0xff] %v582
        %591 = vst [vmem:[#allocation2 + $0xd8] sm:$0xff] %v583
        %s592 = scalar_lea.vmem [#allocation6], 224
        %v593 = vld [vmem:[%s592] sm:$0xff]
        %v594 = vld [vmem:[%s592 + $0x8] sm:$0xff]
        %v595 = vld [vmem:[%s592 + $0x10] sm:$0xff]
        %v596 = vld [vmem:[%s592 + $0x18] sm:$0xff]
        %601 = vrot.lane.b32.xlu0 %v593, 16
        %v602 = vpop.permute.xlu0 %601
        %603 = vrot.lane.b32.xlu0 %v594, 16
        %v604 = vpop.permute.xlu0 %603
        %605 = vrot.lane.b32.xlu0 %v595, 16
        %v606 = vpop.permute.xlu0 %605
        %607 = vrot.lane.b32.xlu0 %v596, 16
        %v608 = vpop.permute.xlu0 %607
        %v609 = vsel %vm343, %v602, %v604
        %v610 = vsel %vm343, %v604, %v606
        %v611 = vsel %vm343, %v606, %v608
        %v617 = vmul.f32 %v234, %v602
        %v618 = vmul.f32 %v235, %v609
        %v619 = vmul.f32 %v237, %v610
        %v620 = vmul.f32 %v238, %v611
        %v621 = vmul.f32 %v234, %v608
        %627 = vrot.lane.b32.xlu0 %v617, 112
        %v628 = vpop.permute.xlu0 %627
        %629 = vrot.lane.b32.xlu0 %v618, 112
        %v630 = vpop.permute.xlu0 %629
        %631 = vrot.lane.b32.xlu0 %v619, 112
        %v632 = vpop.permute.xlu0 %631
        %633 = vrot.lane.b32.xlu0 %v620, 112
        %v634 = vpop.permute.xlu0 %633
        %635 = vrot.lane.b32.xlu0 %v621, 112
        %v636 = vpop.permute.xlu0 %635
        %v637 = vsel %vm314, %v628, %v630
        %v638 = vsel %vm314, %v630, %v632
        %v639 = vsel %vm314, %v632, %v634
        %v640 = vsel %vm314, %v634, %v636
        %645 = vst [vmem:[#allocation2 + $0xe0] sm:$0xff] %v637
        %646 = vst [vmem:[#allocation2 + $0xe8] sm:$0xff] %v638
        %647 = vst [vmem:[#allocation2 + $0xf0] sm:$0xff] %v639
        %648 = vst [vmem:[#allocation2 + $0xf8] sm:$0xff] %v640
        %s649 = scalar_lea.vmem [#allocation6], 256
        %v650 = vld [vmem:[%s649] sm:$0xff]
        %v651 = vld [vmem:[%s649 + $0x8] sm:$0xff]
        %v652 = vld [vmem:[%s649 + $0x10] sm:$0xff]
        %v653 = vld [vmem:[%s649 + $0x18] sm:$0xff]
        %658 = vrot.lane.b32.xlu0 %v650, 17
        %v659 = vpop.permute.xlu0 %658
        %660 = vrot.lane.b32.xlu0 %v651, 17
        %v661 = vpop.permute.xlu0 %660
        %662 = vrot.lane.b32.xlu0 %v652, 17
        %v663 = vpop.permute.xlu0 %662
        %664 = vrot.lane.b32.xlu0 %v653, 17
        %v665 = vpop.permute.xlu0 %664
        %v666 = vsel %vm284, %v659, %v661
        %v667 = vsel %vm284, %v661, %v663
        %v668 = vsel %vm284, %v663, %v665
        %v674 = vmul.f32 %v234, %v659
        %v675 = vmul.f32 %v235, %v666
        %v676 = vmul.f32 %v237, %v667
        %v677 = vmul.f32 %v238, %v668
        %v678 = vmul.f32 %v234, %v665
        %684 = vrot.lane.b32.xlu0 %v674, 111
        %v685 = vpop.permute.xlu0 %684
        %686 = vrot.lane.b32.xlu0 %v675, 111
        %v687 = vpop.permute.xlu0 %686
        %688 = vrot.lane.b32.xlu0 %v676, 111
        %v689 = vpop.permute.xlu0 %688
        %690 = vrot.lane.b32.xlu0 %v677, 111
        %v691 = vpop.permute.xlu0 %690
        %692 = vrot.lane.b32.xlu0 %v678, 111
        %v693 = vpop.permute.xlu0 %692
        %v694 = vsel %vm255, %v685, %v687
        %v695 = vsel %vm255, %v687, %v689
        %v696 = vsel %vm255, %v689, %v691
        %v697 = vsel %vm255, %v691, %v693
        %702 = vst [vmem:[#allocation2 + $0x100] sm:$0xff] %v694
        %703 = vst [vmem:[#allocation2 + $0x108] sm:$0xff] %v695
        %704 = vst [vmem:[#allocation2 + $0x110] sm:$0xff] %v696
        %705 = vst [vmem:[#allocation2 + $0x118] sm:$0xff] %v697
        %v706 = vld [vmem:[%s2] sm:$0xff]
        %v707 = vld [vmem:[#allocation2] sm:$0xff]
        %v708 = vld [vmem:[#allocation2 + $0x8] sm:$0xff]
        %v709 = vld [vmem:[#allocation2 + $0x10] sm:$0xff]
        %v710 = vld [vmem:[#allocation2 + $0x18] sm:$0xff]
        %v711 = vld [vmem:[#allocation2 + $0x20] sm:$0xff]
        %v712 = vld [vmem:[#allocation2 + $0x28] sm:$0xff]
        %v713 = vld [vmem:[#allocation2 + $0x30] sm:$0xff]
        %v714 = vld [vmem:[#allocation2 + $0x38] sm:$0xff]
        %v715 = vld [vmem:[#allocation2 + $0x40] sm:$0xff]
        %v716 = vld [vmem:[#allocation2 + $0x48] sm:$0xff]
        %v717 = vld [vmem:[#allocation2 + $0x50] sm:$0xff]
        %v718 = vld [vmem:[#allocation2 + $0x58] sm:$0xff]
        %v719 = vld [vmem:[#allocation2 + $0x60] sm:$0xff]
        %v720 = vld [vmem:[#allocation2 + $0x68] sm:$0xff]
        %v721 = vld [vmem:[#allocation2 + $0x70] sm:$0xff]
        %v722 = vld [vmem:[#allocation2 + $0x78] sm:$0xff]
        %v723 = vld [vmem:[#allocation2 + $0x80] sm:$0xff]
        %v724 = vld [vmem:[#allocation2 + $0x88] sm:$0xff]
        %v725 = vld [vmem:[#allocation2 + $0x90] sm:$0xff]
        %v726 = vld [vmem:[#allocation2 + $0x98] sm:$0xff]
        %v727 = vld [vmem:[#allocation2 + $0xa0] sm:$0xff]
        %v728 = vld [vmem:[#allocation2 + $0xa8] sm:$0xff]
        %v729 = vld [vmem:[#allocation2 + $0xb0] sm:$0xff]
        %v730 = vld [vmem:[#allocation2 + $0xb8] sm:$0xff]
        %v731 = vld [vmem:[#allocation2 + $0xc0] sm:$0xff]
        %v732 = vld [vmem:[#allocation2 + $0xc8] sm:$0xff]
        %v733 = vld [vmem:[#allocation2 + $0xd0] sm:$0xff]
        %v734 = vld [vmem:[#allocation2 + $0xd8] sm:$0xff]
        %v735 = vld [vmem:[#allocation2 + $0xe0] sm:$0xff]
        %v736 = vld [vmem:[#allocation2 + $0xe8] sm:$0xff]
        %v737 = vld [vmem:[#allocation2 + $0xf0] sm:$0xff]
        %v738 = vld [vmem:[#allocation2 + $0xf8] sm:$0xff]
        %v739 = vld [vmem:[#allocation2 + $0x100] sm:$0xff]
        %v740 = vld [vmem:[#allocation2 + $0x108] sm:$0xff]
        %v741 = vld [vmem:[#allocation2 + $0x110] sm:$0xff]
        %v742 = vld [vmem:[#allocation2 + $0x118] sm:$0xff]
        %v743 = vld [vmem:[%s3] sm:$0xff]
        %745 = vset.pattern.permute.xlu0 0
        %746 = vperm.xlu0 %745, %v743
        %v747 = vpop.permute.xlu0 %746
        %vm749 = vcmask 588800
        %v751 = vsel %vm749, %v706, 0
        %753 = vmatprep.subr.mxu0 0.0
        %754 = vmatpush1.msra.mxu0 0.0
        %755 = vmatprep.subr.mxu0 0.0
        %756 = vmatpush1.msra.mxu0 0.0
        %757 = vmatprep.subr.mxu0 0.0
        %758 = vmatpush1.msra.mxu0 0.0
        %759 = vmatprep.subr.mxu0 0.0
        %760 = vmatpush1.msra.mxu0 0.0
        %761 = vmatprep.subr.mxu0 0.0
        %762 = vmatpush1.msra.mxu0 0.0
        %763 = vmatprep.subr.mxu0 0.0
        %764 = vmatpush1.msra.mxu0 0.0
        %765 = vmatprep.subr.mxu0 0.0
        %766 = vmatpush1.msra.mxu0 0.0
        %767 = vmatprep.subr.mxu0 %v740
        %768 = vmatpush1.msra.mxu0 %v739
        %769 = vmatprep.subr.mxu0 %v736
        %770 = vmatpush1.msra.mxu0 %v735
        %771 = vmatprep.subr.mxu0 %v732
        %772 = vmatpush1.msra.mxu0 %v731
        %773 = vmatprep.subr.mxu0 %v728
        %774 = vmatpush1.msra.mxu0 %v727
        %775 = vmatprep.subr.mxu0 %v724
        %776 = vmatpush1.msra.mxu0 %v723
        %777 = vmatprep.subr.mxu0 %v720
        %778 = vmatpush1.msra.mxu0 %v719
        %779 = vmatprep.subr.mxu0 %v716
        %780 = vmatpush1.msra.mxu0 %v715
        %781 = vmatprep.subr.mxu0 %v712
        %782 = vmatpush1.msra.mxu0 %v711
        %783 = vmatprep.subr.mxu0 %v708
        %784 = vmatpush1.msra.mxu0 %v707
        %785 = vmatprep.subr.mxu0 0.0
        %786 = vmatpush2.msra.mxu0 0.0
        %787 = vmatprep.subr.mxu0 0.0
        %788 = vmatpush2.msra.mxu0 0.0
        %789 = vmatprep.subr.mxu0 0.0
        %790 = vmatpush2.msra.mxu0 0.0
        %791 = vmatprep.subr.mxu0 0.0
        %792 = vmatpush2.msra.mxu0 0.0
        %793 = vmatprep.subr.mxu0 0.0
        %794 = vmatpush2.msra.mxu0 0.0
        %795 = vmatprep.subr.mxu0 0.0
        %796 = vmatpush2.msra.mxu0 0.0
        %797 = vmatprep.subr.mxu0 0.0
        %798 = vmatpush2.msra.mxu0 0.0
        %799 = vmatprep.subr.mxu0 0.0
        %800 = vmatpush2.msra.mxu0 0.0
        %801 = vmatprep.subr.mxu0 0.0
        %802 = vmatpush2.msra.mxu0 0.0
        %803 = vmatprep.subr.mxu0 0.0
        %804 = vmatpush2.msra.mxu0 0.0
        %805 = vmatprep.subr.mxu0 0.0
        %806 = vmatpush2.msra.mxu0 0.0
        %807 = vmatprep.subr.mxu0 0.0
        %808 = vmatpush2.msra.mxu0 0.0
        %809 = vmatprep.subr.mxu0 0.0
        %810 = vmatpush2.msra.mxu0 0.0
        %811 = vmatprep.subr.mxu0 0.0
        %812 = vmatpush2.msra.mxu0 0.0
        %813 = vmatprep.subr.mxu0 0.0
        %814 = vmatpush2.msra.mxu0 0.0
        %815 = vmatprep.subr.mxu0 0.0
        %816 = vmatpush2.msra.mxu0 0.0
        %817 = vmatprep.mubr.f32.mxu0 0.0
        %818 = vmatmul.mubr.f32.gmra.mxu0 %v751
        %v819 = vpop.f32.mrf.mxu0
        %v820 = vadd.f32 %v747, %v819
        %v821 = vpop.f32.mrf.mxu0
        %v822 = vadd.f32 %v747, %v821
        %823 = vdwg.mxu0
        %824 = vmatprep.subr.mxu0 0.0
        %825 = vmatpush1.msra.mxu0 0.0
        %826 = vmatprep.subr.mxu0 0.0
        %827 = vmatpush1.msra.mxu0 0.0
        %828 = vmatprep.subr.mxu0 0.0
        %829 = vmatpush1.msra.mxu0 0.0
        %830 = vmatprep.subr.mxu0 0.0
        %831 = vmatpush1.msra.mxu0 0.0
        %832 = vmatprep.subr.mxu0 0.0
        %833 = vmatpush1.msra.mxu0 0.0
        %834 = vmatprep.subr.mxu0 0.0
        %835 = vmatpush1.msra.mxu0 0.0
        %836 = vmatprep.subr.mxu0 0.0
        %837 = vmatpush1.msra.mxu0 0.0
        %838 = vmatprep.subr.mxu0 %v742
        %839 = vmatpush1.msra.mxu0 %v741
        %840 = vmatprep.subr.mxu0 %v738
        %841 = vmatpush1.msra.mxu0 %v737
        %842 = vmatprep.subr.mxu0 %v734
        %843 = vmatpush1.msra.mxu0 %v733
        %844 = vmatprep.subr.mxu0 %v730
        %845 = vmatpush1.msra.mxu0 %v729
        %846 = vmatprep.subr.mxu0 %v726
        %847 = vmatpush1.msra.mxu0 %v725
        %848 = vmatprep.subr.mxu0 %v722
        %849 = vmatpush1.msra.mxu0 %v721
        %850 = vmatprep.subr.mxu0 %v718
        %851 = vmatpush1.msra.mxu0 %v717
        %852 = vmatprep.subr.mxu0 %v714
        %853 = vmatpush1.msra.mxu0 %v713
        %854 = vmatprep.subr.mxu0 %v710
        %855 = vmatpush1.msra.mxu0 %v709
        %856 = vmatprep.subr.mxu0 0.0
        %857 = vmatpush2.msra.mxu0 0.0
        %858 = vmatprep.subr.mxu0 0.0
        %859 = vmatpush2.msra.mxu0 0.0
        %860 = vmatprep.subr.mxu0 0.0
        %861 = vmatpush2.msra.mxu0 0.0
        %862 = vmatprep.subr.mxu0 0.0
        %863 = vmatpush2.msra.mxu0 0.0
        %864 = vmatprep.subr.mxu0 0.0
        %865 = vmatpush2.msra.mxu0 0.0
        %866 = vmatprep.subr.mxu0 0.0
        %867 = vmatpush2.msra.mxu0 0.0
        %868 = vmatprep.subr.mxu0 0.0
        %869 = vmatpush2.msra.mxu0 0.0
        %870 = vmatprep.subr.mxu0 0.0
        %871 = vmatpush2.msra.mxu0 0.0
        %872 = vmatprep.subr.mxu0 0.0
        %873 = vmatpush2.msra.mxu0 0.0
        %874 = vmatprep.subr.mxu0 0.0
        %875 = vmatpush2.msra.mxu0 0.0
        %876 = vmatprep.subr.mxu0 0.0
        %877 = vmatpush2.msra.mxu0 0.0
        %878 = vmatprep.subr.mxu0 0.0
        %879 = vmatpush2.msra.mxu0 0.0
        %880 = vmatprep.subr.mxu0 0.0
        %881 = vmatpush2.msra.mxu0 0.0
        %882 = vmatprep.subr.mxu0 0.0
        %883 = vmatpush2.msra.mxu0 0.0
        %884 = vmatprep.subr.mxu0 0.0
        %885 = vmatpush2.msra.mxu0 0.0
        %886 = vmatprep.subr.mxu0 0.0
        %887 = vmatpush2.msra.mxu0 0.0
        %888 = vmatprep.mubr.f32.mxu0 0.0
        %889 = vmatmul.mubr.f32.gmra.mxu0 %v751
        %v890 = vpop.f32.mrf.mxu0
        %v891 = vadd.f32 %v747, %v890
        %v892 = vpop.f32.mrf.mxu0
        %v893 = vadd.f32 %v747, %v892
        %894 = vdwg.mxu0
        %v895 = vmax.f32 %v820, 0.0
        %v896 = vmax.f32 %v822, 0.0
        %v897 = vmax.f32 %v891, 0.0
        %v898 = vmax.f32 %v893, 0.0
        %v899 = vld [vmem:[#allocation6] sm:$0xff]
        %v900 = vld [vmem:[#allocation6 + $0x8] sm:$0xff]
        %v901 = vld [vmem:[#allocation6 + $0x10] sm:$0xff]
        %v902 = vld [vmem:[#allocation6 + $0x18] sm:$0xff]
        %907 = vrot.lane.b32.xlu0 %v899, 111
        %v908 = vpop.permute.xlu0 %907
        %909 = vrot.lane.b32.xlu0 %v900, 111
        %v910 = vpop.permute.xlu0 %909
        %911 = vrot.lane.b32.xlu0 %v901, 111
        %v912 = vpop.permute.xlu0 %911
        %913 = vrot.lane.b32.xlu0 %v902, 111
        %v914 = vpop.permute.xlu0 %913
        %v915 = vsel %vm255, %v908, %v910
        %v916 = vsel %vm255, %v910, %v912
        %v917 = vsel %vm255, %v912, %v914
        %v923 = vmul.f32 %v898, %v908
        %v924 = vmul.f32 %v895, %v915
        %v925 = vmul.f32 %v896, %v916
        %v926 = vmul.f32 %v897, %v917
        %v927 = vmul.f32 %v898, %v914
        %933 = vrot.lane.b32.xlu0 %v923, 17
        %v934 = vpop.permute.xlu0 %933
        %935 = vrot.lane.b32.xlu0 %v924, 17
        %v936 = vpop.permute.xlu0 %935
        %937 = vrot.lane.b32.xlu0 %v925, 17
        %v938 = vpop.permute.xlu0 %937
        %939 = vrot.lane.b32.xlu0 %v926, 17
        %v940 = vpop.permute.xlu0 %939
        %941 = vrot.lane.b32.xlu0 %v927, 17
        %v942 = vpop.permute.xlu0 %941
        %v943 = vsel %vm284, %v934, %v936
        %v944 = vsel %vm284, %v936, %v938
        %v945 = vsel %vm284, %v938, %v940
        %v946 = vsel %vm284, %v940, %v942
        %951 = vst [vmem:[#allocation2] sm:$0xff] %v943
        %952 = vst [vmem:[#allocation2 + $0x8] sm:$0xff] %v944
        %953 = vst [vmem:[#allocation2 + $0x10] sm:$0xff] %v945
        %954 = vst [vmem:[#allocation2 + $0x18] sm:$0xff] %v946
        %v955 = vld [vmem:[%s297] sm:$0xff]
        %v956 = vld [vmem:[%s297 + $0x8] sm:$0xff]
        %v957 = vld [vmem:[%s297 + $0x10] sm:$0xff]
        %v958 = vld [vmem:[%s297 + $0x18] sm:$0xff]
        %963 = vrot.lane.b32.xlu0 %v955, 112
        %v964 = vpop.permute.xlu0 %963
        %965 = vrot.lane.b32.xlu0 %v956, 112
        %v966 = vpop.permute.xlu0 %965
        %967 = vrot.lane.b32.xlu0 %v957, 112
        %v968 = vpop.permute.xlu0 %967
        %969 = vrot.lane.b32.xlu0 %v958, 112
        %v970 = vpop.permute.xlu0 %969
        %v971 = vsel %vm314, %v964, %v966
        %v972 = vsel %vm314, %v966, %v968
        %v973 = vsel %vm314, %v968, %v970
        %v979 = vmul.f32 %v898, %v964
        %v980 = vmul.f32 %v895, %v971
        %v981 = vmul.f32 %v896, %v972
        %v982 = vmul.f32 %v897, %v973
        %v983 = vmul.f32 %v898, %v970
        %989 = vrot.lane.b32.xlu0 %v979, 16
        %v990 = vpop.permute.xlu0 %989
        %991 = vrot.lane.b32.xlu0 %v980, 16
        %v992 = vpop.permute.xlu0 %991
        %993 = vrot.lane.b32.xlu0 %v981, 16
        %v994 = vpop.permute.xlu0 %993
        %995 = vrot.lane.b32.xlu0 %v982, 16
        %v996 = vpop.permute.xlu0 %995
        %997 = vrot.lane.b32.xlu0 %v983, 16
        %v998 = vpop.permute.xlu0 %997
        %v999 = vsel %vm343, %v990, %v992
        %v1000 = vsel %vm343, %v992, %v994
        %v1001 = vsel %vm343, %v994, %v996
        %v1002 = vsel %vm343, %v996, %v998
        %1007 = vst [vmem:[#allocation2 + $0x20] sm:$0xff] %v999
        %1008 = vst [vmem:[#allocation2 + $0x28] sm:$0xff] %v1000
        %1009 = vst [vmem:[#allocation2 + $0x30] sm:$0xff] %v1001
        %1010 = vst [vmem:[#allocation2 + $0x38] sm:$0xff] %v1002
        %v1011 = vld [vmem:[%s356] sm:$0xff]
        %v1012 = vld [vmem:[%s356 + $0x8] sm:$0xff]
        %v1013 = vld [vmem:[%s356 + $0x10] sm:$0xff]
        %v1014 = vld [vmem:[%s356 + $0x18] sm:$0xff]
        %1019 = vrot.lane.b32.xlu0 %v1011, 113
        %v1020 = vpop.permute.xlu0 %1019
        %1021 = vrot.lane.b32.xlu0 %v1012, 113
        %v1022 = vpop.permute.xlu0 %1021
        %1023 = vrot.lane.b32.xlu0 %v1013, 113
        %v1024 = vpop.permute.xlu0 %1023
        %1025 = vrot.lane.b32.xlu0 %v1014, 113
        %v1026 = vpop.permute.xlu0 %1025
        %v1027 = vsel %vm373, %v1020, %v1022
        %v1028 = vsel %vm373, %v1022, %v1024
        %v1029 = vsel %vm373, %v1024, %v1026
        %v1035 = vmul.f32 %v898, %v1020
        %v1036 = vmul.f32 %v895, %v1027
        %v1037 = vmul.f32 %v896, %v1028
        %v1038 = vmul.f32 %v897, %v1029
        %v1039 = vmul.f32 %v898, %v1026
        %1045 = vrot.lane.b32.xlu0 %v1035, 15
        %v1046 = vpop.permute.xlu0 %1045
        %1047 = vrot.lane.b32.xlu0 %v1036, 15
        %v1048 = vpop.permute.xlu0 %1047
        %1049 = vrot.lane.b32.xlu0 %v1037, 15
        %v1050 = vpop.permute.xlu0 %1049
        %1051 = vrot.lane.b32.xlu0 %v1038, 15
        %v1052 = vpop.permute.xlu0 %1051
        %1053 = vrot.lane.b32.xlu0 %v1039, 15
        %v1054 = vpop.permute.xlu0 %1053
        %v1055 = vsel %vm402, %v1046, %v1048
        %v1056 = vsel %vm402, %v1048, %v1050
        %v1057 = vsel %vm402, %v1050, %v1052
        %v1058 = vsel %vm402, %v1052, %v1054
        %1063 = vst [vmem:[#allocation2 + $0x40] sm:$0xff] %v1055
        %1064 = vst [vmem:[#allocation2 + $0x48] sm:$0xff] %v1056
        %1065 = vst [vmem:[#allocation2 + $0x50] sm:$0xff] %v1057
        %1066 = vst [vmem:[#allocation2 + $0x58] sm:$0xff] %v1058
        %v1067 = vld [vmem:[%s415] sm:$0xff]
        %v1068 = vld [vmem:[%s415 + $0x8] sm:$0xff]
        %v1069 = vld [vmem:[%s415 + $0x10] sm:$0xff]
        %v1070 = vld [vmem:[%s415 + $0x18] sm:$0xff]
        %1075 = vrot.lane.b32.xlu0 %v1067, 127
        %v1076 = vpop.permute.xlu0 %1075
        %1077 = vrot.lane.b32.xlu0 %v1068, 127
        %v1078 = vpop.permute.xlu0 %1077
        %1079 = vrot.lane.b32.xlu0 %v1069, 127
        %v1080 = vpop.permute.xlu0 %1079
        %1081 = vrot.lane.b32.xlu0 %v1070, 127
        %v1082 = vpop.permute.xlu0 %1081
        %v1083 = vsel %vm432, %v1076, %v1078
        %v1084 = vsel %vm432, %v1078, %v1080
        %v1085 = vsel %vm432, %v1080, %v1082
        %v1091 = vmul.f32 %v898, %v1076
        %v1092 = vmul.f32 %v895, %v1083
        %v1093 = vmul.f32 %v896, %v1084
        %v1094 = vmul.f32 %v897, %v1085
        %v1095 = vmul.f32 %v898, %v1082
        %1101 = vrot.lane.b32.xlu0 %v1091, 1
        %v1102 = vpop.permute.xlu0 %1101
        %1103 = vrot.lane.b32.xlu0 %v1092, 1
        %v1104 = vpop.permute.xlu0 %1103
        %1105 = vrot.lane.b32.xlu0 %v1093, 1
        %v1106 = vpop.permute.xlu0 %1105
        %1107 = vrot.lane.b32.xlu0 %v1094, 1
        %v1108 = vpop.permute.xlu0 %1107
        %1109 = vrot.lane.b32.xlu0 %v1095, 1
        %v1110 = vpop.permute.xlu0 %1109
        %v1111 = vsel %vm461, %v1102, %v1104
        %v1112 = vsel %vm461, %v1104, %v1106
        %v1113 = vsel %vm461, %v1106, %v1108
        %v1114 = vsel %vm461, %v1108, %v1110
        %1119 = vst [vmem:[#allocation2 + $0x60] sm:$0xff] %v1111
        %1120 = vst [vmem:[#allocation2 + $0x68] sm:$0xff] %v1112
        %1121 = vst [vmem:[#allocation2 + $0x70] sm:$0xff] %v1113
        %1122 = vst [vmem:[#allocation2 + $0x78] sm:$0xff] %v1114
        %1123 = vst [vmem:[#allocation2 + $0x80] sm:$0xff] %v895
        %1124 = vst [vmem:[#allocation2 + $0x88] sm:$0xff] %v896
        %1125 = vst [vmem:[#allocation2 + $0x90] sm:$0xff] %v897
        %1126 = vst [vmem:[#allocation2 + $0x98] sm:$0xff] %v898
        %v1127 = vld [vmem:[%s478] sm:$0xff]
        %v1128 = vld [vmem:[%s478 + $0x8] sm:$0xff]
        %v1129 = vld [vmem:[%s478 + $0x10] sm:$0xff]
        %v1130 = vld [vmem:[%s478 + $0x18] sm:$0xff]
        %1135 = vrot.lane.b32.xlu0 %v1127, 1
        %v1136 = vpop.permute.xlu0 %1135
        %1137 = vrot.lane.b32.xlu0 %v1128, 1
        %v1138 = vpop.permute.xlu0 %1137
        %1139 = vrot.lane.b32.xlu0 %v1129, 1
        %v1140 = vpop.permute.xlu0 %1139
        %1141 = vrot.lane.b32.xlu0 %v1130, 1
        %v1142 = vpop.permute.xlu0 %1141
        %v1143 = vsel %vm461, %v1136, %v1138
        %v1144 = vsel %vm461, %v1138, %v1140
        %v1145 = vsel %vm461, %v1140, %v1142
        %v1151 = vmul.f32 %v895, %v1136
        %v1152 = vmul.f32 %v896, %v1143
        %v1153 = vmul.f32 %v897, %v1144
        %v1154 = vmul.f32 %v898, %v1145
        %v1155 = vmul.f32 %v895, %v1142
        %1161 = vrot.lane.b32.xlu0 %v1151, 127
        %v1162 = vpop.permute.xlu0 %1161
        %1163 = vrot.lane.b32.xlu0 %v1152, 127
        %v1164 = vpop.permute.xlu0 %1163
        %1165 = vrot.lane.b32.xlu0 %v1153, 127
        %v1166 = vpop.permute.xlu0 %1165
        %1167 = vrot.lane.b32.xlu0 %v1154, 127
        %v1168 = vpop.permute.xlu0 %1167
        %1169 = vrot.lane.b32.xlu0 %v1155, 127
        %v1170 = vpop.permute.xlu0 %1169
        %v1171 = vsel %vm432, %v1162, %v1164
        %v1172 = vsel %vm432, %v1164, %v1166
        %v1173 = vsel %vm432, %v1166, %v1168
        %v1174 = vsel %vm432, %v1168, %v1170
        %1179 = vst [vmem:[#allocation2 + $0xa0] sm:$0xff] %v1171
        %1180 = vst [vmem:[#allocation2 + $0xa8] sm:$0xff] %v1172
        %1181 = vst [vmem:[#allocation2 + $0xb0] sm:$0xff] %v1173
        %1182 = vst [vmem:[#allocation2 + $0xb8] sm:$0xff] %v1174
        %v1183 = vld [vmem:[%s535] sm:$0xff]
        %v1184 = vld [vmem:[%s535 + $0x8] sm:$0xff]
        %v1185 = vld [vmem:[%s535 + $0x10] sm:$0xff]
        %v1186 = vld [vmem:[%s535 + $0x18] sm:$0xff]
        %1191 = vrot.lane.b32.xlu0 %v1183, 15
        %v1192 = vpop.permute.xlu0 %1191
        %1193 = vrot.lane.b32.xlu0 %v1184, 15
        %v1194 = vpop.permute.xlu0 %1193
        %1195 = vrot.lane.b32.xlu0 %v1185, 15
        %v1196 = vpop.permute.xlu0 %1195
        %1197 = vrot.lane.b32.xlu0 %v1186, 15
        %v1198 = vpop.permute.xlu0 %1197
        %v1199 = vsel %vm402, %v1192, %v1194
        %v1200 = vsel %vm402, %v1194, %v1196
        %v1201 = vsel %vm402, %v1196, %v1198
        %v1207 = vmul.f32 %v895, %v1192
        %v1208 = vmul.f32 %v896, %v1199
        %v1209 = vmul.f32 %v897, %v1200
        %v1210 = vmul.f32 %v898, %v1201
        %v1211 = vmul.f32 %v895, %v1198
        %1217 = vrot.lane.b32.xlu0 %v1207, 113
        %v1218 = vpop.permute.xlu0 %1217
        %1219 = vrot.lane.b32.xlu0 %v1208, 113
        %v1220 = vpop.permute.xlu0 %1219
        %1221 = vrot.lane.b32.xlu0 %v1209, 113
        %v1222 = vpop.permute.xlu0 %1221
        %1223 = vrot.lane.b32.xlu0 %v1210, 113
        %v1224 = vpop.permute.xlu0 %1223
        %1225 = vrot.lane.b32.xlu0 %v1211, 113
        %v1226 = vpop.permute.xlu0 %1225
        %v1227 = vsel %vm373, %v1218, %v1220
        %v1228 = vsel %vm373, %v1220, %v1222
        %v1229 = vsel %vm373, %v1222, %v1224
        %v1230 = vsel %vm373, %v1224, %v1226
        %1235 = vst [vmem:[#allocation2 + $0xc0] sm:$0xff] %v1227
        %1236 = vst [vmem:[#allocation2 + $0xc8] sm:$0xff] %v1228
        %1237 = vst [vmem:[#allocation2 + $0xd0] sm:$0xff] %v1229
        %1238 = vst [vmem:[#allocation2 + $0xd8] sm:$0xff] %v1230
        %v1239 = vld [vmem:[%s592] sm:$0xff]
        %v1240 = vld [vmem:[%s592 + $0x8] sm:$0xff]
        %v1241 = vld [vmem:[%s592 + $0x10] sm:$0xff]
        %v1242 = vld [vmem:[%s592 + $0x18] sm:$0xff]
        %1247 = vrot.lane.b32.xlu0 %v1239, 16
        %v1248 = vpop.permute.xlu0 %1247
        %1249 = vrot.lane.b32.xlu0 %v1240, 16
        %v1250 = vpop.permute.xlu0 %1249
        %1251 = vrot.lane.b32.xlu0 %v1241, 16
        %v1252 = vpop.permute.xlu0 %1251
        %1253 = vrot.lane.b32.xlu0 %v1242, 16
        %v1254 = vpop.permute.xlu0 %1253
        %v1255 = vsel %vm343, %v1248, %v1250
        %v1256 = vsel %vm343, %v1250, %v1252
        %v1257 = vsel %vm343, %v1252, %v1254
        %v1263 = vmul.f32 %v895, %v1248
        %v1264 = vmul.f32 %v896, %v1255
        %v1265 = vmul.f32 %v897, %v1256
        %v1266 = vmul.f32 %v898, %v1257
        %v1267 = vmul.f32 %v895, %v1254
        %1273 = vrot.lane.b32.xlu0 %v1263, 112
        %v1274 = vpop.permute.xlu0 %1273
        %1275 = vrot.lane.b32.xlu0 %v1264, 112
        %v1276 = vpop.permute.xlu0 %1275
        %1277 = vrot.lane.b32.xlu0 %v1265, 112
        %v1278 = vpop.permute.xlu0 %1277
        %1279 = vrot.lane.b32.xlu0 %v1266, 112
        %v1280 = vpop.permute.xlu0 %1279
        %1281 = vrot.lane.b32.xlu0 %v1267, 112
        %v1282 = vpop.permute.xlu0 %1281
        %v1283 = vsel %vm314, %v1274, %v1276
        %v1284 = vsel %vm314, %v1276, %v1278
        %v1285 = vsel %vm314, %v1278, %v1280
        %v1286 = vsel %vm314, %v1280, %v1282
        %1291 = vst [vmem:[#allocation2 + $0xe0] sm:$0xff] %v1283
        %1292 = vst [vmem:[#allocation2 + $0xe8] sm:$0xff] %v1284
        %1293 = vst [vmem:[#allocation2 + $0xf0] sm:$0xff] %v1285
        %1294 = vst [vmem:[#allocation2 + $0xf8] sm:$0xff] %v1286
        %v1295 = vld [vmem:[%s649] sm:$0xff]
        %v1296 = vld [vmem:[%s649 + $0x8] sm:$0xff]
        %v1297 = vld [vmem:[%s649 + $0x10] sm:$0xff]
        %v1298 = vld [vmem:[%s649 + $0x18] sm:$0xff]
        %1303 = vrot.lane.b32.xlu0 %v1295, 17
        %v1304 = vpop.permute.xlu0 %1303
        %1305 = vrot.lane.b32.xlu0 %v1296, 17
        %v1306 = vpop.permute.xlu0 %1305
        %1307 = vrot.lane.b32.xlu0 %v1297, 17
        %v1308 = vpop.permute.xlu0 %1307
        %1309 = vrot.lane.b32.xlu0 %v1298, 17
        %v1310 = vpop.permute.xlu0 %1309
        %v1311 = vsel %vm284, %v1304, %v1306
        %v1312 = vsel %vm284, %v1306, %v1308
        %v1313 = vsel %vm284, %v1308, %v1310
        %v1319 = vmul.f32 %v895, %v1304
        %v1320 = vmul.f32 %v896, %v1311
        %v1321 = vmul.f32 %v897, %v1312
        %v1322 = vmul.f32 %v898, %v1313
        %v1323 = vmul.f32 %v895, %v1310
        %1329 = vrot.lane.b32.xlu0 %v1319, 111
        %v1330 = vpop.permute.xlu0 %1329
        %1331 = vrot.lane.b32.xlu0 %v1320, 111
        %v1332 = vpop.permute.xlu0 %1331
        %1333 = vrot.lane.b32.xlu0 %v1321, 111
        %v1334 = vpop.permute.xlu0 %1333
        %1335 = vrot.lane.b32.xlu0 %v1322, 111
        %v1336 = vpop.permute.xlu0 %1335
        %1337 = vrot.lane.b32.xlu0 %v1323, 111
        %v1338 = vpop.permute.xlu0 %1337
        %v1339 = vsel %vm255, %v1330, %v1332
        %v1340 = vsel %vm255, %v1332, %v1334
        %v1341 = vsel %vm255, %v1334, %v1336
        %v1342 = vsel %vm255, %v1336, %v1338
        %1347 = vst [vmem:[#allocation2 + $0x100] sm:$0xff] %v1339
        %1348 = vst [vmem:[#allocation2 + $0x108] sm:$0xff] %v1340
        %1349 = vst [vmem:[#allocation2 + $0x110] sm:$0xff] %v1341
        %1350 = vst [vmem:[#allocation2 + $0x118] sm:$0xff] %v1342
        %s1351 = scalar_lea.vmem %s2, 8
        %v1352 = vld [vmem:[%s1351] sm:$0xff]
        %v1353 = vld [vmem:[#allocation2] sm:$0xff]
        %v1354 = vld [vmem:[#allocation2 + $0x8] sm:$0xff]
        %v1355 = vld [vmem:[#allocation2 + $0x10] sm:$0xff]
        %v1356 = vld [vmem:[#allocation2 + $0x18] sm:$0xff]
        %v1357 = vld [vmem:[#allocation2 + $0x20] sm:$0xff]
        %v1358 = vld [vmem:[#allocation2 + $0x28] sm:$0xff]
        %v1359 = vld [vmem:[#allocation2 + $0x30] sm:$0xff]
        %v1360 = vld [vmem:[#allocation2 + $0x38] sm:$0xff]
        %v1361 = vld [vmem:[#allocation2 + $0x40] sm:$0xff]
        %v1362 = vld [vmem:[#allocation2 + $0x48] sm:$0xff]
        %v1363 = vld [vmem:[#allocation2 + $0x50] sm:$0xff]
        %v1364 = vld [vmem:[#allocation2 + $0x58] sm:$0xff]
        %v1365 = vld [vmem:[#allocation2 + $0x60] sm:$0xff]
        %v1366 = vld [vmem:[#allocation2 + $0x68] sm:$0xff]
        %v1367 = vld [vmem:[#allocation2 + $0x70] sm:$0xff]
        %v1368 = vld [vmem:[#allocation2 + $0x78] sm:$0xff]
        %v1369 = vld [vmem:[#allocation2 + $0x80] sm:$0xff]
        %v1370 = vld [vmem:[#allocation2 + $0x88] sm:$0xff]
        %v1371 = vld [vmem:[#allocation2 + $0x90] sm:$0xff]
        %v1372 = vld [vmem:[#allocation2 + $0x98] sm:$0xff]
        %v1373 = vld [vmem:[#allocation2 + $0xa0] sm:$0xff]
        %v1374 = vld [vmem:[#allocation2 + $0xa8] sm:$0xff]
        %v1375 = vld [vmem:[#allocation2 + $0xb0] sm:$0xff]
        %v1376 = vld [vmem:[#allocation2 + $0xb8] sm:$0xff]
        %v1377 = vld [vmem:[#allocation2 + $0xc0] sm:$0xff]
        %v1378 = vld [vmem:[#allocation2 + $0xc8] sm:$0xff]
        %v1379 = vld [vmem:[#allocation2 + $0xd0] sm:$0xff]
        %v1380 = vld [vmem:[#allocation2 + $0xd8] sm:$0xff]
        %v1381 = vld [vmem:[#allocation2 + $0xe0] sm:$0xff]
        %v1382 = vld [vmem:[#allocation2 + $0xe8] sm:$0xff]
        %v1383 = vld [vmem:[#allocation2 + $0xf0] sm:$0xff]
        %v1384 = vld [vmem:[#allocation2 + $0xf8] sm:$0xff]
        %v1385 = vld [vmem:[#allocation2 + $0x100] sm:$0xff]
        %v1386 = vld [vmem:[#allocation2 + $0x108] sm:$0xff]
        %v1387 = vld [vmem:[#allocation2 + $0x110] sm:$0xff]
        %v1388 = vld [vmem:[#allocation2 + $0x118] sm:$0xff]
        %s1389 = scalar_lea.vmem %s3, 8
        %v1390 = vld [vmem:[%s1389] sm:$0xff]
        %1392 = vset.pattern.permute.xlu0 0
        %1393 = vperm.xlu0 %1392, %v1390
        %v1394 = vpop.permute.xlu0 %1393
        %v1397 = vsel %vm749, %v1352, 0
        %1399 = vmatprep.subr.mxu0 0.0
        %1400 = vmatpush1.msra.mxu0 0.0
        %1401 = vmatprep.subr.mxu0 0.0
        %1402 = vmatpush1.msra.mxu0 0.0
        %1403 = vmatprep.subr.mxu0 0.0
        %1404 = vmatpush1.msra.mxu0 0.0
        %1405 = vmatprep.subr.mxu0 0.0
        %1406 = vmatpush1.msra.mxu0 0.0
        %1407 = vmatprep.subr.mxu0 0.0
        %1408 = vmatpush1.msra.mxu0 0.0
        %1409 = vmatprep.subr.mxu0 0.0
        %1410 = vmatpush1.msra.mxu0 0.0
        %1411 = vmatprep.subr.mxu0 0.0
        %1412 = vmatpush1.msra.mxu0 0.0
        %1413 = vmatprep.subr.mxu0 %v1386
        %1414 = vmatpush1.msra.mxu0 %v1385
        %1415 = vmatprep.subr.mxu0 %v1382
        %1416 = vmatpush1.msra.mxu0 %v1381
        %1417 = vmatprep.subr.mxu0 %v1378
        %1418 = vmatpush1.msra.mxu0 %v1377
        %1419 = vmatprep.subr.mxu0 %v1374
        %1420 = vmatpush1.msra.mxu0 %v1373
        %1421 = vmatprep.subr.mxu0 %v1370
        %1422 = vmatpush1.msra.mxu0 %v1369
        %1423 = vmatprep.subr.mxu0 %v1366
        %1424 = vmatpush1.msra.mxu0 %v1365
        %1425 = vmatprep.subr.mxu0 %v1362
        %1426 = vmatpush1.msra.mxu0 %v1361
        %1427 = vmatprep.subr.mxu0 %v1358
        %1428 = vmatpush1.msra.mxu0 %v1357
        %1429 = vmatprep.subr.mxu0 %v1354
        %1430 = vmatpush1.msra.mxu0 %v1353
        %1431 = vmatprep.subr.mxu0 0.0
        %1432 = vmatpush2.msra.mxu0 0.0
        %1433 = vmatprep.subr.mxu0 0.0
        %1434 = vmatpush2.msra.mxu0 0.0
        %1435 = vmatprep.subr.mxu0 0.0
        %1436 = vmatpush2.msra.mxu0 0.0
        %1437 = vmatprep.subr.mxu0 0.0
        %1438 = vmatpush2.msra.mxu0 0.0
        %1439 = vmatprep.subr.mxu0 0.0
        %1440 = vmatpush2.msra.mxu0 0.0
        %1441 = vmatprep.subr.mxu0 0.0
        %1442 = vmatpush2.msra.mxu0 0.0
        %1443 = vmatprep.subr.mxu0 0.0
        %1444 = vmatpush2.msra.mxu0 0.0
        %1445 = vmatprep.subr.mxu0 0.0
        %1446 = vmatpush2.msra.mxu0 0.0
        %1447 = vmatprep.subr.mxu0 0.0
        %1448 = vmatpush2.msra.mxu0 0.0
        %1449 = vmatprep.subr.mxu0 0.0
        %1450 = vmatpush2.msra.mxu0 0.0
        %1451 = vmatprep.subr.mxu0 0.0
        %1452 = vmatpush2.msra.mxu0 0.0
        %1453 = vmatprep.subr.mxu0 0.0
        %1454 = vmatpush2.msra.mxu0 0.0
        %1455 = vmatprep.subr.mxu0 0.0
        %1456 = vmatpush2.msra.mxu0 0.0
        %1457 = vmatprep.subr.mxu0 0.0
        %1458 = vmatpush2.msra.mxu0 0.0
        %1459 = vmatprep.subr.mxu0 0.0
        %1460 = vmatpush2.msra.mxu0 0.0
        %1461 = vmatprep.subr.mxu0 0.0
        %1462 = vmatpush2.msra.mxu0 0.0
        %1463 = vmatprep.mubr.f32.mxu0 0.0
        %1464 = vmatmul.mubr.f32.gmra.mxu0 %v1397
        %v1465 = vpop.f32.mrf.mxu0
        %v1466 = vadd.f32 %v1394, %v1465
        %v1467 = vpop.f32.mrf.mxu0
        %v1468 = vadd.f32 %v1394, %v1467
        %1469 = vdwg.mxu0
        %1470 = vmatprep.subr.mxu0 0.0
        %1471 = vmatpush1.msra.mxu0 0.0
        %1472 = vmatprep.subr.mxu0 0.0
        %1473 = vmatpush1.msra.mxu0 0.0
        %1474 = vmatprep.subr.mxu0 0.0
        %1475 = vmatpush1.msra.mxu0 0.0
        %1476 = vmatprep.subr.mxu0 0.0
        %1477 = vmatpush1.msra.mxu0 0.0
        %1478 = vmatprep.subr.mxu0 0.0
        %1479 = vmatpush1.msra.mxu0 0.0
        %1480 = vmatprep.subr.mxu0 0.0
        %1481 = vmatpush1.msra.mxu0 0.0
        %1482 = vmatprep.subr.mxu0 0.0
        %1483 = vmatpush1.msra.mxu0 0.0
        %1484 = vmatprep.subr.mxu0 %v1388
        %1485 = vmatpush1.msra.mxu0 %v1387
        %1486 = vmatprep.subr.mxu0 %v1384
        %1487 = vmatpush1.msra.mxu0 %v1383
        %1488 = vmatprep.subr.mxu0 %v1380
        %1489 = vmatpush1.msra.mxu0 %v1379
        %1490 = vmatprep.subr.mxu0 %v1376
        %1491 = vmatpush1.msra.mxu0 %v1375
        %1492 = vmatprep.subr.mxu0 %v1372
        %1493 = vmatpush1.msra.mxu0 %v1371
        %1494 = vmatprep.subr.mxu0 %v1368
        %1495 = vmatpush1.msra.mxu0 %v1367
        %1496 = vmatprep.subr.mxu0 %v1364
        %1497 = vmatpush1.msra.mxu0 %v1363
        %1498 = vmatprep.subr.mxu0 %v1360
        %1499 = vmatpush1.msra.mxu0 %v1359
        %1500 = vmatprep.subr.mxu0 %v1356
        %1501 = vmatpush1.msra.mxu0 %v1355
        %1502 = vmatprep.subr.mxu0 0.0
        %1503 = vmatpush2.msra.mxu0 0.0
        %1504 = vmatprep.subr.mxu0 0.0
        %1505 = vmatpush2.msra.mxu0 0.0
        %1506 = vmatprep.subr.mxu0 0.0
        %1507 = vmatpush2.msra.mxu0 0.0
        %1508 = vmatprep.subr.mxu0 0.0
        %1509 = vmatpush2.msra.mxu0 0.0
        %1510 = vmatprep.subr.mxu0 0.0
        %1511 = vmatpush2.msra.mxu0 0.0
        %1512 = vmatprep.subr.mxu0 0.0
        %1513 = vmatpush2.msra.mxu0 0.0
        %1514 = vmatprep.subr.mxu0 0.0
        %1515 = vmatpush2.msra.mxu0 0.0
        %1516 = vmatprep.subr.mxu0 0.0
        %1517 = vmatpush2.msra.mxu0 0.0
        %1518 = vmatprep.subr.mxu0 0.0
        %1519 = vmatpush2.msra.mxu0 0.0
        %1520 = vmatprep.subr.mxu0 0.0
        %1521 = vmatpush2.msra.mxu0 0.0
        %1522 = vmatprep.subr.mxu0 0.0
        %1523 = vmatpush2.msra.mxu0 0.0
        %1524 = vmatprep.subr.mxu0 0.0
        %1525 = vmatpush2.msra.mxu0 0.0
        %1526 = vmatprep.subr.mxu0 0.0
        %1527 = vmatpush2.msra.mxu0 0.0
        %1528 = vmatprep.subr.mxu0 0.0
        %1529 = vmatpush2.msra.mxu0 0.0
        %1530 = vmatprep.subr.mxu0 0.0
        %1531 = vmatpush2.msra.mxu0 0.0
        %1532 = vmatprep.subr.mxu0 0.0
        %1533 = vmatpush2.msra.mxu0 0.0
        %1534 = vmatprep.mubr.f32.mxu0 0.0
        %1535 = vmatmul.mubr.f32.gmra.mxu0 %v1397
        %v1536 = vpop.f32.mrf.mxu0
        %v1537 = vadd.f32 %v1394, %v1536
        %v1538 = vpop.f32.mrf.mxu0
        %v1539 = vadd.f32 %v1394, %v1538
        %1540 = vdwg.mxu0
        %v1541 = vadd.f32 %v234, %v1466
        %v1542 = vadd.f32 %v235, %v1468
        %v1543 = vadd.f32 %v237, %v1537
        %v1544 = vadd.f32 %v238, %v1539
        %v1545 = vld [vmem:[#allocation6] sm:$0xff]
        %v1546 = vld [vmem:[#allocation6 + $0x8] sm:$0xff]
        %v1547 = vld [vmem:[#allocation6 + $0x10] sm:$0xff]
        %v1548 = vld [vmem:[#allocation6 + $0x18] sm:$0xff]
        %1553 = vrot.lane.b32.xlu0 %v1545, 111
        %v1554 = vpop.permute.xlu0 %1553
        %1555 = vrot.lane.b32.xlu0 %v1546, 111
        %v1556 = vpop.permute.xlu0 %1555
        %1557 = vrot.lane.b32.xlu0 %v1547, 111
        %v1558 = vpop.permute.xlu0 %1557
        %1559 = vrot.lane.b32.xlu0 %v1548, 111
        %v1560 = vpop.permute.xlu0 %1559
        %v1561 = vsel %vm255, %v1554, %v1556
        %v1562 = vsel %vm255, %v1556, %v1558
        %v1563 = vsel %vm255, %v1558, %v1560
        %v1569 = vmul.f32 %v1544, %v1554
        %v1570 = vmul.f32 %v1541, %v1561
        %v1571 = vmul.f32 %v1542, %v1562
        %v1572 = vmul.f32 %v1543, %v1563
        %v1573 = vmul.f32 %v1544, %v1560
        %1579 = vrot.lane.b32.xlu0 %v1569, 17
        %v1580 = vpop.permute.xlu0 %1579
        %1581 = vrot.lane.b32.xlu0 %v1570, 17
        %v1582 = vpop.permute.xlu0 %1581
        %1583 = vrot.lane.b32.xlu0 %v1571, 17
        %v1584 = vpop.permute.xlu0 %1583
        %1585 = vrot.lane.b32.xlu0 %v1572, 17
        %v1586 = vpop.permute.xlu0 %1585
        %1587 = vrot.lane.b32.xlu0 %v1573, 17
        %v1588 = vpop.permute.xlu0 %1587
        %v1589 = vsel %vm284, %v1580, %v1582
        %v1590 = vsel %vm284, %v1582, %v1584
        %v1591 = vsel %vm284, %v1584, %v1586
        %v1592 = vsel %vm284, %v1586, %v1588
        %1597 = vst [vmem:[#allocation2] sm:$0xff] %v1589
        %1598 = vst [vmem:[#allocation2 + $0x8] sm:$0xff] %v1590
        %1599 = vst [vmem:[#allocation2 + $0x10] sm:$0xff] %v1591
        %1600 = vst [vmem:[#allocation2 + $0x18] sm:$0xff] %v1592
        %v1601 = vld [vmem:[%s297] sm:$0xff]
        %v1602 = vld [vmem:[%s297 + $0x8] sm:$0xff]
        %v1603 = vld [vmem:[%s297 + $0x10] sm:$0xff]
        %v1604 = vld [vmem:[%s297 + $0x18] sm:$0xff]
        %1609 = vrot.lane.b32.xlu0 %v1601, 112
        %v1610 = vpop.permute.xlu0 %1609
        %1611 = vrot.lane.b32.xlu0 %v1602, 112
        %v1612 = vpop.permute.xlu0 %1611
        %1613 = vrot.lane.b32.xlu0 %v1603, 112
        %v1614 = vpop.permute.xlu0 %1613
        %1615 = vrot.lane.b32.xlu0 %v1604, 112
        %v1616 = vpop.permute.xlu0 %1615
        %v1617 = vsel %vm314, %v1610, %v1612
        %v1618 = vsel %vm314, %v1612, %v1614
        %v1619 = vsel %vm314, %v1614, %v1616
        %v1625 = vmul.f32 %v1544, %v1610
        %v1626 = vmul.f32 %v1541, %v1617
        %v1627 = vmul.f32 %v1542, %v1618
        %v1628 = vmul.f32 %v1543, %v1619
        %v1629 = vmul.f32 %v1544, %v1616
        %1635 = vrot.lane.b32.xlu0 %v1625, 16
        %v1636 = vpop.permute.xlu0 %1635
        %1637 = vrot.lane.b32.xlu0 %v1626, 16
        %v1638 = vpop.permute.xlu0 %1637
        %1639 = vrot.lane.b32.xlu0 %v1627, 16
        %v1640 = vpop.permute.xlu0 %1639
        %1641 = vrot.lane.b32.xlu0 %v1628, 16
        %v1642 = vpop.permute.xlu0 %1641
        %1643 = vrot.lane.b32.xlu0 %v1629, 16
        %v1644 = vpop.permute.xlu0 %1643
        %v1645 = vsel %vm343, %v1636, %v1638
        %v1646 = vsel %vm343, %v1638, %v1640
        %v1647 = vsel %vm343, %v1640, %v1642
        %v1648 = vsel %vm343, %v1642, %v1644
        %1653 = vst [vmem:[#allocation2 + $0x20] sm:$0xff] %v1645
        %1654 = vst [vmem:[#allocation2 + $0x28] sm:$0xff] %v1646
        %1655 = vst [vmem:[#allocation2 + $0x30] sm:$0xff] %v1647
        %1656 = vst [vmem:[#allocation2 + $0x38] sm:$0xff] %v1648
        %v1657 = vld [vmem:[%s356] sm:$0xff]
        %v1658 = vld [vmem:[%s356 + $0x8] sm:$0xff]
        %v1659 = vld [vmem:[%s356 + $0x10] sm:$0xff]
        %v1660 = vld [vmem:[%s356 + $0x18] sm:$0xff]
        %1665 = vrot.lane.b32.xlu0 %v1657, 113
        %v1666 = vpop.permute.xlu0 %1665
        %1667 = vrot.lane.b32.xlu0 %v1658, 113
        %v1668 = vpop.permute.xlu0 %1667
        %1669 = vrot.lane.b32.xlu0 %v1659, 113
        %v1670 = vpop.permute.xlu0 %1669
        %1671 = vrot.lane.b32.xlu0 %v1660, 113
        %v1672 = vpop.permute.xlu0 %1671
        %v1673 = vsel %vm373, %v1666, %v1668
        %v1674 = vsel %vm373, %v1668, %v1670
        %v1675 = vsel %vm373, %v1670, %v1672
        %v1681 = vmul.f32 %v1544, %v1666
        %v1682 = vmul.f32 %v1541, %v1673
        %v1683 = vmul.f32 %v1542, %v1674
        %v1684 = vmul.f32 %v1543, %v1675
        %v1685 = vmul.f32 %v1544, %v1672
        %1691 = vrot.lane.b32.xlu0 %v1681, 15
        %v1692 = vpop.permute.xlu0 %1691
        %1693 = vrot.lane.b32.xlu0 %v1682, 15
        %v1694 = vpop.permute.xlu0 %1693
        %1695 = vrot.lane.b32.xlu0 %v1683, 15
        %v1696 = vpop.permute.xlu0 %1695
        %1697 = vrot.lane.b32.xlu0 %v1684, 15
        %v1698 = vpop.permute.xlu0 %1697
        %1699 = vrot.lane.b32.xlu0 %v1685, 15
        %v1700 = vpop.permute.xlu0 %1699
        %v1701 = vsel %vm402, %v1692, %v1694
        %v1702 = vsel %vm402, %v1694, %v1696
        %v1703 = vsel %vm402, %v1696, %v1698
        %v1704 = vsel %vm402, %v1698, %v1700
        %1709 = vst [vmem:[#allocation2 + $0x40] sm:$0xff] %v1701
        %1710 = vst [vmem:[#allocation2 + $0x48] sm:$0xff] %v1702
        %1711 = vst [vmem:[#allocation2 + $0x50] sm:$0xff] %v1703
        %1712 = vst [vmem:[#allocation2 + $0x58] sm:$0xff] %v1704
        %v1713 = vld [vmem:[%s415] sm:$0xff]
        %v1714 = vld [vmem:[%s415 + $0x8] sm:$0xff]
        %v1715 = vld [vmem:[%s415 + $0x10] sm:$0xff]
        %v1716 = vld [vmem:[%s415 + $0x18] sm:$0xff]
        %1721 = vrot.lane.b32.xlu0 %v1713, 127
        %v1722 = vpop.permute.xlu0 %1721
        %1723 = vrot.lane.b32.xlu0 %v1714, 127
        %v1724 = vpop.permute.xlu0 %1723
        %1725 = vrot.lane.b32.xlu0 %v1715, 127
        %v1726 = vpop.permute.xlu0 %1725
        %1727 = vrot.lane.b32.xlu0 %v1716, 127
        %v1728 = vpop.permute.xlu0 %1727
        %v1729 = vsel %vm432, %v1722, %v1724
        %v1730 = vsel %vm432, %v1724, %v1726
        %v1731 = vsel %vm432, %v1726, %v1728
        %v1737 = vmul.f32 %v1544, %v1722
        %v1738 = vmul.f32 %v1541, %v1729
        %v1739 = vmul.f32 %v1542, %v1730
        %v1740 = vmul.f32 %v1543, %v1731
        %v1741 = vmul.f32 %v1544, %v1728
        %1747 = vrot.lane.b32.xlu0 %v1737, 1
        %v1748 = vpop.permute.xlu0 %1747
        %1749 = vrot.lane.b32.xlu0 %v1738, 1
        %v1750 = vpop.permute.xlu0 %1749
        %1751 = vrot.lane.b32.xlu0 %v1739, 1
        %v1752 = vpop.permute.xlu0 %1751
        %1753 = vrot.lane.b32.xlu0 %v1740, 1
        %v1754 = vpop.permute.xlu0 %1753
        %1755 = vrot.lane.b32.xlu0 %v1741, 1
        %v1756 = vpop.permute.xlu0 %1755
        %v1757 = vsel %vm461, %v1748, %v1750
        %v1758 = vsel %vm461, %v1750, %v1752
        %v1759 = vsel %vm461, %v1752, %v1754
        %v1760 = vsel %vm461, %v1754, %v1756
        %1765 = vst [vmem:[#allocation2 + $0x60] sm:$0xff] %v1757
        %1766 = vst [vmem:[#allocation2 + $0x68] sm:$0xff] %v1758
        %1767 = vst [vmem:[#allocation2 + $0x70] sm:$0xff] %v1759
        %1768 = vst [vmem:[#allocation2 + $0x78] sm:$0xff] %v1760
        %1769 = vst [vmem:[#allocation2 + $0x80] sm:$0xff] %v1541
        %1770 = vst [vmem:[#allocation2 + $0x88] sm:$0xff] %v1542
        %1771 = vst [vmem:[#allocation2 + $0x90] sm:$0xff] %v1543
        %1772 = vst [vmem:[#allocation2 + $0x98] sm:$0xff] %v1544
        %v1773 = vld [vmem:[%s478] sm:$0xff]
        %v1774 = vld [vmem:[%s478 + $0x8] sm:$0xff]
        %v1775 = vld [vmem:[%s478 + $0x10] sm:$0xff]
        %v1776 = vld [vmem:[%s478 + $0x18] sm:$0xff]
        %1781 = vrot.lane.b32.xlu0 %v1773, 1
        %v1782 = vpop.permute.xlu0 %1781
        %1783 = vrot.lane.b32.xlu0 %v1774, 1
        %v1784 = vpop.permute.xlu0 %1783
        %1785 = vrot.lane.b32.xlu0 %v1775, 1
        %v1786 = vpop.permute.xlu0 %1785
        %1787 = vrot.lane.b32.xlu0 %v1776, 1
        %v1788 = vpop.permute.xlu0 %1787
        %v1789 = vsel %vm461, %v1782, %v1784
        %v1790 = vsel %vm461, %v1784, %v1786
        %v1791 = vsel %vm461, %v1786, %v1788
        %v1797 = vmul.f32 %v1541, %v1782
        %v1798 = vmul.f32 %v1542, %v1789
        %v1799 = vmul.f32 %v1543, %v1790
        %v1800 = vmul.f32 %v1544, %v1791
        %v1801 = vmul.f32 %v1541, %v1788
        %1807 = vrot.lane.b32.xlu0 %v1797, 127
        %v1808 = vpop.permute.xlu0 %1807
        %1809 = vrot.lane.b32.xlu0 %v1798, 127
        %v1810 = vpop.permute.xlu0 %1809
        %1811 = vrot.lane.b32.xlu0 %v1799, 127
        %v1812 = vpop.permute.xlu0 %1811
        %1813 = vrot.lane.b32.xlu0 %v1800, 127
        %v1814 = vpop.permute.xlu0 %1813
        %1815 = vrot.lane.b32.xlu0 %v1801, 127
        %v1816 = vpop.permute.xlu0 %1815
        %v1817 = vsel %vm432, %v1808, %v1810
        %v1818 = vsel %vm432, %v1810, %v1812
        %v1819 = vsel %vm432, %v1812, %v1814
        %v1820 = vsel %vm432, %v1814, %v1816
        %1825 = vst [vmem:[#allocation2 + $0xa0] sm:$0xff] %v1817
        %1826 = vst [vmem:[#allocation2 + $0xa8] sm:$0xff] %v1818
        %1827 = vst [vmem:[#allocation2 + $0xb0] sm:$0xff] %v1819
        %1828 = vst [vmem:[#allocation2 + $0xb8] sm:$0xff] %v1820
        %v1829 = vld [vmem:[%s535] sm:$0xff]
        %v1830 = vld [vmem:[%s535 + $0x8] sm:$0xff]
        %v1831 = vld [vmem:[%s535 + $0x10] sm:$0xff]
        %v1832 = vld [vmem:[%s535 + $0x18] sm:$0xff]
        %1837 = vrot.lane.b32.xlu0 %v1829, 15
        %v1838 = vpop.permute.xlu0 %1837
        %1839 = vrot.lane.b32.xlu0 %v1830, 15
        %v1840 = vpop.permute.xlu0 %1839
        %1841 = vrot.lane.b32.xlu0 %v1831, 15
        %v1842 = vpop.permute.xlu0 %1841
        %1843 = vrot.lane.b32.xlu0 %v1832, 15
        %v1844 = vpop.permute.xlu0 %1843
        %v1845 = vsel %vm402, %v1838, %v1840
        %v1846 = vsel %vm402, %v1840, %v1842
        %v1847 = vsel %vm402, %v1842, %v1844
        %v1853 = vmul.f32 %v1541, %v1838
        %v1854 = vmul.f32 %v1542, %v1845
        %v1855 = vmul.f32 %v1543, %v1846
        %v1856 = vmul.f32 %v1544, %v1847
        %v1857 = vmul.f32 %v1541, %v1844
        %1863 = vrot.lane.b32.xlu0 %v1853, 113
        %v1864 = vpop.permute.xlu0 %1863
        %1865 = vrot.lane.b32.xlu0 %v1854, 113
        %v1866 = vpop.permute.xlu0 %1865
        %1867 = vrot.lane.b32.xlu0 %v1855, 113
        %v1868 = vpop.permute.xlu0 %1867
        %1869 = vrot.lane.b32.xlu0 %v1856, 113
        %v1870 = vpop.permute.xlu0 %1869
        %1871 = vrot.lane.b32.xlu0 %v1857, 113
        %v1872 = vpop.permute.xlu0 %1871
        %v1873 = vsel %vm373, %v1864, %v1866
        %v1874 = vsel %vm373, %v1866, %v1868
        %v1875 = vsel %vm373, %v1868, %v1870
        %v1876 = vsel %vm373, %v1870, %v1872
        %1881 = vst [vmem:[#allocation2 + $0xc0] sm:$0xff] %v1873
        %1882 = vst [vmem:[#allocation2 + $0xc8] sm:$0xff] %v1874
        %1883 = vst [vmem:[#allocation2 + $0xd0] sm:$0xff] %v1875
        %1884 = vst [vmem:[#allocation2 + $0xd8] sm:$0xff] %v1876
        %v1885 = vld [vmem:[%s592] sm:$0xff]
        %v1886 = vld [vmem:[%s592 + $0x8] sm:$0xff]
        %v1887 = vld [vmem:[%s592 + $0x10] sm:$0xff]
        %v1888 = vld [vmem:[%s592 + $0x18] sm:$0xff]
        %1893 = vrot.lane.b32.xlu0 %v1885, 16
        %v1894 = vpop.permute.xlu0 %1893
        %1895 = vrot.lane.b32.xlu0 %v1886, 16
        %v1896 = vpop.permute.xlu0 %1895
        %1897 = vrot.lane.b32.xlu0 %v1887, 16
        %v1898 = vpop.permute.xlu0 %1897
        %1899 = vrot.lane.b32.xlu0 %v1888, 16
        %v1900 = vpop.permute.xlu0 %1899
        %v1901 = vsel %vm343, %v1894, %v1896
        %v1902 = vsel %vm343, %v1896, %v1898
        %v1903 = vsel %vm343, %v1898, %v1900
        %v1909 = vmul.f32 %v1541, %v1894
        %v1910 = vmul.f32 %v1542, %v1901
        %v1911 = vmul.f32 %v1543, %v1902
        %v1912 = vmul.f32 %v1544, %v1903
        %v1913 = vmul.f32 %v1541, %v1900
        %1919 = vrot.lane.b32.xlu0 %v1909, 112
        %v1920 = vpop.permute.xlu0 %1919
        %1921 = vrot.lane.b32.xlu0 %v1910, 112
        %v1922 = vpop.permute.xlu0 %1921
        %1923 = vrot.lane.b32.xlu0 %v1911, 112
        %v1924 = vpop.permute.xlu0 %1923
        %1925 = vrot.lane.b32.xlu0 %v1912, 112
        %v1926 = vpop.permute.xlu0 %1925
        %1927 = vrot.lane.b32.xlu0 %v1913, 112
        %v1928 = vpop.permute.xlu0 %1927
        %v1929 = vsel %vm314, %v1920, %v1922
        %v1930 = vsel %vm314, %v1922, %v1924
        %v1931 = vsel %vm314, %v1924, %v1926
        %v1932 = vsel %vm314, %v1926, %v1928
        %1937 = vst [vmem:[#allocation2 + $0xe0] sm:$0xff] %v1929
        %1938 = vst [vmem:[#allocation2 + $0xe8] sm:$0xff] %v1930
        %1939 = vst [vmem:[#allocation2 + $0xf0] sm:$0xff] %v1931
        %1940 = vst [vmem:[#allocation2 + $0xf8] sm:$0xff] %v1932
        %v1941 = vld [vmem:[%s649] sm:$0xff]
        %v1942 = vld [vmem:[%s649 + $0x8] sm:$0xff]
        %v1943 = vld [vmem:[%s649 + $0x10] sm:$0xff]
        %v1944 = vld [vmem:[%s649 + $0x18] sm:$0xff]
        %1949 = vrot.lane.b32.xlu0 %v1941, 17
        %v1950 = vpop.permute.xlu0 %1949
        %1951 = vrot.lane.b32.xlu0 %v1942, 17
        %v1952 = vpop.permute.xlu0 %1951
        %1953 = vrot.lane.b32.xlu0 %v1943, 17
        %v1954 = vpop.permute.xlu0 %1953
        %1955 = vrot.lane.b32.xlu0 %v1944, 17
        %v1956 = vpop.permute.xlu0 %1955
        %v1957 = vsel %vm284, %v1950, %v1952
        %v1958 = vsel %vm284, %v1952, %v1954
        %v1959 = vsel %vm284, %v1954, %v1956
        %v1965 = vmul.f32 %v1541, %v1950
        %v1966 = vmul.f32 %v1542, %v1957
        %v1967 = vmul.f32 %v1543, %v1958
        %v1968 = vmul.f32 %v1544, %v1959
        %v1969 = vmul.f32 %v1541, %v1956
        %1975 = vrot.lane.b32.xlu0 %v1965, 111
        %v1976 = vpop.permute.xlu0 %1975
        %1977 = vrot.lane.b32.xlu0 %v1966, 111
        %v1978 = vpop.permute.xlu0 %1977
        %1979 = vrot.lane.b32.xlu0 %v1967, 111
        %v1980 = vpop.permute.xlu0 %1979
        %1981 = vrot.lane.b32.xlu0 %v1968, 111
        %v1982 = vpop.permute.xlu0 %1981
        %1983 = vrot.lane.b32.xlu0 %v1969, 111
        %v1984 = vpop.permute.xlu0 %1983
        %v1985 = vsel %vm255, %v1976, %v1978
        %v1986 = vsel %vm255, %v1978, %v1980
        %v1987 = vsel %vm255, %v1980, %v1982
        %v1988 = vsel %vm255, %v1982, %v1984
        %1993 = vst [vmem:[#allocation2 + $0x100] sm:$0xff] %v1985
        %1994 = vst [vmem:[#allocation2 + $0x108] sm:$0xff] %v1986
        %1995 = vst [vmem:[#allocation2 + $0x110] sm:$0xff] %v1987
        %1996 = vst [vmem:[#allocation2 + $0x118] sm:$0xff] %v1988
        %s1997 = scalar_lea.vmem %s2, 16
        %v1998 = vld [vmem:[%s1997] sm:$0xff]
        %v1999 = vld [vmem:[#allocation2] sm:$0xff]
        %v2000 = vld [vmem:[#allocation2 + $0x8] sm:$0xff]
        %v2001 = vld [vmem:[#allocation2 + $0x10] sm:$0xff]
        %v2002 = vld [vmem:[#allocation2 + $0x18] sm:$0xff]
        %v2003 = vld [vmem:[#allocation2 + $0x20] sm:$0xff]
        %v2004 = vld [vmem:[#allocation2 + $0x28] sm:$0xff]
        %v2005 = vld [vmem:[#allocation2 + $0x30] sm:$0xff]
        %v2006 = vld [vmem:[#allocation2 + $0x38] sm:$0xff]
        %v2007 = vld [vmem:[#allocation2 + $0x40] sm:$0xff]
        %v2008 = vld [vmem:[#allocation2 + $0x48] sm:$0xff]
        %v2009 = vld [vmem:[#allocation2 + $0x50] sm:$0xff]
        %v2010 = vld [vmem:[#allocation2 + $0x58] sm:$0xff]
        %v2011 = vld [vmem:[#allocation2 + $0x60] sm:$0xff]
        %v2012 = vld [vmem:[#allocation2 + $0x68] sm:$0xff]
        %v2013 = vld [vmem:[#allocation2 + $0x70] sm:$0xff]
        %v2014 = vld [vmem:[#allocation2 + $0x78] sm:$0xff]
        %v2015 = vld [vmem:[#allocation2 + $0x80] sm:$0xff]
        %v2016 = vld [vmem:[#allocation2 + $0x88] sm:$0xff]
        %v2017 = vld [vmem:[#allocation2 + $0x90] sm:$0xff]
        %v2018 = vld [vmem:[#allocation2 + $0x98] sm:$0xff]
        %v2019 = vld [vmem:[#allocation2 + $0xa0] sm:$0xff]
        %v2020 = vld [vmem:[#allocation2 + $0xa8] sm:$0xff]
        %v2021 = vld [vmem:[#allocation2 + $0xb0] sm:$0xff]
        %v2022 = vld [vmem:[#allocation2 + $0xb8] sm:$0xff]
        %v2023 = vld [vmem:[#allocation2 + $0xc0] sm:$0xff]
        %v2024 = vld [vmem:[#allocation2 + $0xc8] sm:$0xff]
        %v2025 = vld [vmem:[#allocation2 + $0xd0] sm:$0xff]
        %v2026 = vld [vmem:[#allocation2 + $0xd8] sm:$0xff]
        %v2027 = vld [vmem:[#allocation2 + $0xe0] sm:$0xff]
        %v2028 = vld [vmem:[#allocation2 + $0xe8] sm:$0xff]
        %v2029 = vld [vmem:[#allocation2 + $0xf0] sm:$0xff]
        %v2030 = vld [vmem:[#allocation2 + $0xf8] sm:$0xff]
        %v2031 = vld [vmem:[#allocation2 + $0x100] sm:$0xff]
        %v2032 = vld [vmem:[#allocation2 + $0x108] sm:$0xff]
        %v2033 = vld [vmem:[#allocation2 + $0x110] sm:$0xff]
        %v2034 = vld [vmem:[#allocation2 + $0x118] sm:$0xff]
        %s2035 = scalar_lea.vmem %s3, 16
        %v2036 = vld [vmem:[%s2035] sm:$0xff]
        %2038 = vset.pattern.permute.xlu0 0
        %2039 = vperm.xlu0 %2038, %v2036
        %v2040 = vpop.permute.xlu0 %2039
        %v2043 = vsel %vm749, %v1998, 0
        %2045 = vmatprep.subr.mxu0 0.0
        %2046 = vmatpush1.msra.mxu0 0.0
        %2047 = vmatprep.subr.mxu0 0.0
        %2048 = vmatpush1.msra.mxu0 0.0
        %2049 = vmatprep.subr.mxu0 0.0
        %2050 = vmatpush1.msra.mxu0 0.0
        %2051 = vmatprep.subr.mxu0 0.0
        %2052 = vmatpush1.msra.mxu0 0.0
        %2053 = vmatprep.subr.mxu0 0.0
        %2054 = vmatpush1.msra.mxu0 0.0
        %2055 = vmatprep.subr.mxu0 0.0
        %2056 = vmatpush1.msra.mxu0 0.0
        %2057 = vmatprep.subr.mxu0 0.0
        %2058 = vmatpush1.msra.mxu0 0.0
        %2059 = vmatprep.subr.mxu0 %v2032
        %2060 = vmatpush1.msra.mxu0 %v2031
        %2061 = vmatprep.subr.mxu0 %v2028
        %2062 = vmatpush1.msra.mxu0 %v2027
        %2063 = vmatprep.subr.mxu0 %v2024
        %2064 = vmatpush1.msra.mxu0 %v2023
        %2065 = vmatprep.subr.mxu0 %v2020
        %2066 = vmatpush1.msra.mxu0 %v2019
        %2067 = vmatprep.subr.mxu0 %v2016
        %2068 = vmatpush1.msra.mxu0 %v2015
        %2069 = vmatprep.subr.mxu0 %v2012
        %2070 = vmatpush1.msra.mxu0 %v2011
        %2071 = vmatprep.subr.mxu0 %v2008
        %2072 = vmatpush1.msra.mxu0 %v2007
        %2073 = vmatprep.subr.mxu0 %v2004
        %2074 = vmatpush1.msra.mxu0 %v2003
        %2075 = vmatprep.subr.mxu0 %v2000
        %2076 = vmatpush1.msra.mxu0 %v1999
        %2077 = vmatprep.subr.mxu0 0.0
        %2078 = vmatpush2.msra.mxu0 0.0
        %2079 = vmatprep.subr.mxu0 0.0
        %2080 = vmatpush2.msra.mxu0 0.0
        %2081 = vmatprep.subr.mxu0 0.0
        %2082 = vmatpush2.msra.mxu0 0.0
        %2083 = vmatprep.subr.mxu0 0.0
        %2084 = vmatpush2.msra.mxu0 0.0
        %2085 = vmatprep.subr.mxu0 0.0
        %2086 = vmatpush2.msra.mxu0 0.0
        %2087 = vmatprep.subr.mxu0 0.0
        %2088 = vmatpush2.msra.mxu0 0.0
        %2089 = vmatprep.subr.mxu0 0.0
        %2090 = vmatpush2.msra.mxu0 0.0
        %2091 = vmatprep.subr.mxu0 0.0
        %2092 = vmatpush2.msra.mxu0 0.0
        %2093 = vmatprep.subr.mxu0 0.0
        %2094 = vmatpush2.msra.mxu0 0.0
        %2095 = vmatprep.subr.mxu0 0.0
        %2096 = vmatpush2.msra.mxu0 0.0
        %2097 = vmatprep.subr.mxu0 0.0
        %2098 = vmatpush2.msra.mxu0 0.0
        %2099 = vmatprep.subr.mxu0 0.0
        %2100 = vmatpush2.msra.mxu0 0.0
        %2101 = vmatprep.subr.mxu0 0.0
        %2102 = vmatpush2.msra.mxu0 0.0
        %2103 = vmatprep.subr.mxu0 0.0
        %2104 = vmatpush2.msra.mxu0 0.0
        %2105 = vmatprep.subr.mxu0 0.0
        %2106 = vmatpush2.msra.mxu0 0.0
        %2107 = vmatprep.subr.mxu0 0.0
        %2108 = vmatpush2.msra.mxu0 0.0
        %2109 = vmatprep.mubr.f32.mxu0 0.0
        %2110 = vmatmul.mubr.f32.gmra.mxu0 %v2043
        %v2111 = vpop.f32.mrf.mxu0
        %v2112 = vadd.f32 %v2040, %v2111
        %v2113 = vpop.f32.mrf.mxu0
        %v2114 = vadd.f32 %v2040, %v2113
        %2115 = vdwg.mxu0
        %2116 = vmatprep.subr.mxu0 0.0
        %2117 = vmatpush1.msra.mxu0 0.0
        %2118 = vmatprep.subr.mxu0 0.0
        %2119 = vmatpush1.msra.mxu0 0.0
        %2120 = vmatprep.subr.mxu0 0.0
        %2121 = vmatpush1.msra.mxu0 0.0
        %2122 = vmatprep.subr.mxu0 0.0
        %2123 = vmatpush1.msra.mxu0 0.0
        %2124 = vmatprep.subr.mxu0 0.0
        %2125 = vmatpush1.msra.mxu0 0.0
        %2126 = vmatprep.subr.mxu0 0.0
        %2127 = vmatpush1.msra.mxu0 0.0
        %2128 = vmatprep.subr.mxu0 0.0
        %2129 = vmatpush1.msra.mxu0 0.0
        %2130 = vmatprep.subr.mxu0 %v2034
        %2131 = vmatpush1.msra.mxu0 %v2033
        %2132 = vmatprep.subr.mxu0 %v2030
        %2133 = vmatpush1.msra.mxu0 %v2029
        %2134 = vmatprep.subr.mxu0 %v2026
        %2135 = vmatpush1.msra.mxu0 %v2025
        %2136 = vmatprep.subr.mxu0 %v2022
        %2137 = vmatpush1.msra.mxu0 %v2021
        %2138 = vmatprep.subr.mxu0 %v2018
        %2139 = vmatpush1.msra.mxu0 %v2017
        %2140 = vmatprep.subr.mxu0 %v2014
        %2141 = vmatpush1.msra.mxu0 %v2013
        %2142 = vmatprep.subr.mxu0 %v2010
        %2143 = vmatpush1.msra.mxu0 %v2009
        %2144 = vmatprep.subr.mxu0 %v2006
        %2145 = vmatpush1.msra.mxu0 %v2005
        %2146 = vmatprep.subr.mxu0 %v2002
        %2147 = vmatpush1.msra.mxu0 %v2001
        %2148 = vmatprep.subr.mxu0 0.0
        %2149 = vmatpush2.msra.mxu0 0.0
        %2150 = vmatprep.subr.mxu0 0.0
        %2151 = vmatpush2.msra.mxu0 0.0
        %2152 = vmatprep.subr.mxu0 0.0
        %2153 = vmatpush2.msra.mxu0 0.0
        %2154 = vmatprep.subr.mxu0 0.0
        %2155 = vmatpush2.msra.mxu0 0.0
        %2156 = vmatprep.subr.mxu0 0.0
        %2157 = vmatpush2.msra.mxu0 0.0
        %2158 = vmatprep.subr.mxu0 0.0
        %2159 = vmatpush2.msra.mxu0 0.0
        %2160 = vmatprep.subr.mxu0 0.0
        %2161 = vmatpush2.msra.mxu0 0.0
        %2162 = vmatprep.subr.mxu0 0.0
        %2163 = vmatpush2.msra.mxu0 0.0
        %2164 = vmatprep.subr.mxu0 0.0
        %2165 = vmatpush2.msra.mxu0 0.0
        %2166 = vmatprep.subr.mxu0 0.0
        %2167 = vmatpush2.msra.mxu0 0.0
        %2168 = vmatprep.subr.mxu0 0.0
        %2169 = vmatpush2.msra.mxu0 0.0
        %2170 = vmatprep.subr.mxu0 0.0
        %2171 = vmatpush2.msra.mxu0 0.0
        %2172 = vmatprep.subr.mxu0 0.0
        %2173 = vmatpush2.msra.mxu0 0.0
        %2174 = vmatprep.subr.mxu0 0.0
        %2175 = vmatpush2.msra.mxu0 0.0
        %2176 = vmatprep.subr.mxu0 0.0
        %2177 = vmatpush2.msra.mxu0 0.0
        %2178 = vmatprep.subr.mxu0 0.0
        %2179 = vmatpush2.msra.mxu0 0.0
        %2180 = vmatprep.mubr.f32.mxu0 0.0
        %2181 = vmatmul.mubr.f32.gmra.mxu0 %v2043
        %v2182 = vpop.f32.mrf.mxu0
        %v2183 = vadd.f32 %v2040, %v2182
        %v2184 = vpop.f32.mrf.mxu0
        %v2185 = vadd.f32 %v2040, %v2184
        %2186 = vdwg.mxu0
        %v2187 = vmax.f32 %v2112, 0.0
        %v2188 = vmax.f32 %v2114, 0.0
        %v2189 = vmax.f32 %v2183, 0.0
        %v2190 = vmax.f32 %v2185, 0.0
        %v2191 = vld [vmem:[#allocation6] sm:$0xff]
        %v2192 = vld [vmem:[#allocation6 + $0x8] sm:$0xff]
        %v2193 = vld [vmem:[#allocation6 + $0x10] sm:$0xff]
        %v2194 = vld [vmem:[#allocation6 + $0x18] sm:$0xff]
        %2199 = vrot.lane.b32.xlu0 %v2191, 111
        %v2200 = vpop.permute.xlu0 %2199
        %2201 = vrot.lane.b32.xlu0 %v2192, 111
        %v2202 = vpop.permute.xlu0 %2201
        %2203 = vrot.lane.b32.xlu0 %v2193, 111
        %v2204 = vpop.permute.xlu0 %2203
        %2205 = vrot.lane.b32.xlu0 %v2194, 111
        %v2206 = vpop.permute.xlu0 %2205
        %v2207 = vsel %vm255, %v2200, %v2202
        %v2208 = vsel %vm255, %v2202, %v2204
        %v2209 = vsel %vm255, %v2204, %v2206
        %v2215 = vmul.f32 %v2190, %v2200
        %v2216 = vmul.f32 %v2187, %v2207
        %v2217 = vmul.f32 %v2188, %v2208
        %v2218 = vmul.f32 %v2189, %v2209
        %v2219 = vmul.f32 %v2190, %v2206
        %2225 = vrot.lane.b32.xlu0 %v2215, 17
        %v2226 = vpop.permute.xlu0 %2225
        %2227 = vrot.lane.b32.xlu0 %v2216, 17
        %v2228 = vpop.permute.xlu0 %2227
        %2229 = vrot.lane.b32.xlu0 %v2217, 17
        %v2230 = vpop.permute.xlu0 %2229
        %2231 = vrot.lane.b32.xlu0 %v2218, 17
        %v2232 = vpop.permute.xlu0 %2231
        %2233 = vrot.lane.b32.xlu0 %v2219, 17
        %v2234 = vpop.permute.xlu0 %2233
        %v2235 = vsel %vm284, %v2226, %v2228
        %v2236 = vsel %vm284, %v2228, %v2230
        %v2237 = vsel %vm284, %v2230, %v2232
        %v2238 = vsel %vm284, %v2232, %v2234
        %2243 = vst [vmem:[#allocation2] sm:$0xff] %v2235
        %2244 = vst [vmem:[#allocation2 + $0x8] sm:$0xff] %v2236
        %2245 = vst [vmem:[#allocation2 + $0x10] sm:$0xff] %v2237
        %2246 = vst [vmem:[#allocation2 + $0x18] sm:$0xff] %v2238
        %v2247 = vld [vmem:[%s297] sm:$0xff]
        %v2248 = vld [vmem:[%s297 + $0x8] sm:$0xff]
        %v2249 = vld [vmem:[%s297 + $0x10] sm:$0xff]
        %v2250 = vld [vmem:[%s297 + $0x18] sm:$0xff]
        %2255 = vrot.lane.b32.xlu0 %v2247, 112
        %v2256 = vpop.permute.xlu0 %2255
        %2257 = vrot.lane.b32.xlu0 %v2248, 112
        %v2258 = vpop.permute.xlu0 %2257
        %2259 = vrot.lane.b32.xlu0 %v2249, 112
        %v2260 = vpop.permute.xlu0 %2259
        %2261 = vrot.lane.b32.xlu0 %v2250, 112
        %v2262 = vpop.permute.xlu0 %2261
        %v2263 = vsel %vm314, %v2256, %v2258
        %v2264 = vsel %vm314, %v2258, %v2260
        %v2265 = vsel %vm314, %v2260, %v2262
        %v2271 = vmul.f32 %v2190, %v2256
        %v2272 = vmul.f32 %v2187, %v2263
        %v2273 = vmul.f32 %v2188, %v2264
        %v2274 = vmul.f32 %v2189, %v2265
        %v2275 = vmul.f32 %v2190, %v2262
        %2281 = vrot.lane.b32.xlu0 %v2271, 16
        %v2282 = vpop.permute.xlu0 %2281
        %2283 = vrot.lane.b32.xlu0 %v2272, 16
        %v2284 = vpop.permute.xlu0 %2283
        %2285 = vrot.lane.b32.xlu0 %v2273, 16
        %v2286 = vpop.permute.xlu0 %2285
        %2287 = vrot.lane.b32.xlu0 %v2274, 16
        %v2288 = vpop.permute.xlu0 %2287
        %2289 = vrot.lane.b32.xlu0 %v2275, 16
        %v2290 = vpop.permute.xlu0 %2289
        %v2291 = vsel %vm343, %v2282, %v2284
        %v2292 = vsel %vm343, %v2284, %v2286
        %v2293 = vsel %vm343, %v2286, %v2288
        %v2294 = vsel %vm343, %v2288, %v2290
        %2299 = vst [vmem:[#allocation2 + $0x20] sm:$0xff] %v2291
        %2300 = vst [vmem:[#allocation2 + $0x28] sm:$0xff] %v2292
        %2301 = vst [vmem:[#allocation2 + $0x30] sm:$0xff] %v2293
        %2302 = vst [vmem:[#allocation2 + $0x38] sm:$0xff] %v2294
        %v2303 = vld [vmem:[%s356] sm:$0xff]
        %v2304 = vld [vmem:[%s356 + $0x8] sm:$0xff]
        %v2305 = vld [vmem:[%s356 + $0x10] sm:$0xff]
        %v2306 = vld [vmem:[%s356 + $0x18] sm:$0xff]
        %2311 = vrot.lane.b32.xlu0 %v2303, 113
        %v2312 = vpop.permute.xlu0 %2311
        %2313 = vrot.lane.b32.xlu0 %v2304, 113
        %v2314 = vpop.permute.xlu0 %2313
        %2315 = vrot.lane.b32.xlu0 %v2305, 113
        %v2316 = vpop.permute.xlu0 %2315
        %2317 = vrot.lane.b32.xlu0 %v2306, 113
        %v2318 = vpop.permute.xlu0 %2317
        %v2319 = vsel %vm373, %v2312, %v2314
        %v2320 = vsel %vm373, %v2314, %v2316
        %v2321 = vsel %vm373, %v2316, %v2318
        %v2327 = vmul.f32 %v2190, %v2312
        %v2328 = vmul.f32 %v2187, %v2319
        %v2329 = vmul.f32 %v2188, %v2320
        %v2330 = vmul.f32 %v2189, %v2321
        %v2331 = vmul.f32 %v2190, %v2318
        %2337 = vrot.lane.b32.xlu0 %v2327, 15
        %v2338 = vpop.permute.xlu0 %2337
        %2339 = vrot.lane.b32.xlu0 %v2328, 15
        %v2340 = vpop.permute.xlu0 %2339
        %2341 = vrot.lane.b32.xlu0 %v2329, 15
        %v2342 = vpop.permute.xlu0 %2341
        %2343 = vrot.lane.b32.xlu0 %v2330, 15
        %v2344 = vpop.permute.xlu0 %2343
        %2345 = vrot.lane.b32.xlu0 %v2331, 15
        %v2346 = vpop.permute.xlu0 %2345
        %v2347 = vsel %vm402, %v2338, %v2340
        %v2348 = vsel %vm402, %v2340, %v2342
        %v2349 = vsel %vm402, %v2342, %v2344
        %v2350 = vsel %vm402, %v2344, %v2346
        %2355 = vst [vmem:[#allocation2 + $0x40] sm:$0xff] %v2347
        %2356 = vst [vmem:[#allocation2 + $0x48] sm:$0xff] %v2348
        %2357 = vst [vmem:[#allocation2 + $0x50] sm:$0xff] %v2349
        %2358 = vst [vmem:[#allocation2 + $0x58] sm:$0xff] %v2350
        %v2359 = vld [vmem:[%s415] sm:$0xff]
        %v2360 = vld [vmem:[%s415 + $0x8] sm:$0xff]
        %v2361 = vld [vmem:[%s415 + $0x10] sm:$0xff]
        %v2362 = vld [vmem:[%s415 + $0x18] sm:$0xff]
        %2367 = vrot.lane.b32.xlu0 %v2359, 127
        %v2368 = vpop.permute.xlu0 %2367
        %2369 = vrot.lane.b32.xlu0 %v2360, 127
        %v2370 = vpop.permute.xlu0 %2369
        %2371 = vrot.lane.b32.xlu0 %v2361, 127
        %v2372 = vpop.permute.xlu0 %2371
        %2373 = vrot.lane.b32.xlu0 %v2362, 127
        %v2374 = vpop.permute.xlu0 %2373
        %v2375 = vsel %vm432, %v2368, %v2370
        %v2376 = vsel %vm432, %v2370, %v2372
        %v2377 = vsel %vm432, %v2372, %v2374
        %v2383 = vmul.f32 %v2190, %v2368
        %v2384 = vmul.f32 %v2187, %v2375
        %v2385 = vmul.f32 %v2188, %v2376
        %v2386 = vmul.f32 %v2189, %v2377
        %v2387 = vmul.f32 %v2190, %v2374
        %2393 = vrot.lane.b32.xlu0 %v2383, 1
        %v2394 = vpop.permute.xlu0 %2393
        %2395 = vrot.lane.b32.xlu0 %v2384, 1
        %v2396 = vpop.permute.xlu0 %2395
        %2397 = vrot.lane.b32.xlu0 %v2385, 1
        %v2398 = vpop.permute.xlu0 %2397
        %2399 = vrot.lane.b32.xlu0 %v2386, 1
        %v2400 = vpop.permute.xlu0 %2399
        %2401 = vrot.lane.b32.xlu0 %v2387, 1
        %v2402 = vpop.permute.xlu0 %2401
        %v2403 = vsel %vm461, %v2394, %v2396
        %v2404 = vsel %vm461, %v2396, %v2398
        %v2405 = vsel %vm461, %v2398, %v2400
        %v2406 = vsel %vm461, %v2400, %v2402
        %2411 = vst [vmem:[#allocation2 + $0x60] sm:$0xff] %v2403
        %2412 = vst [vmem:[#allocation2 + $0x68] sm:$0xff] %v2404
        %2413 = vst [vmem:[#allocation2 + $0x70] sm:$0xff] %v2405
        %2414 = vst [vmem:[#allocation2 + $0x78] sm:$0xff] %v2406
        %2415 = vst [vmem:[#allocation2 + $0x80] sm:$0xff] %v2187
        %2416 = vst [vmem:[#allocation2 + $0x88] sm:$0xff] %v2188
        %2417 = vst [vmem:[#allocation2 + $0x90] sm:$0xff] %v2189
        %2418 = vst [vmem:[#allocation2 + $0x98] sm:$0xff] %v2190
        %v2419 = vld [vmem:[%s478] sm:$0xff]
        %v2420 = vld [vmem:[%s478 + $0x8] sm:$0xff]
        %v2421 = vld [vmem:[%s478 + $0x10] sm:$0xff]
        %v2422 = vld [vmem:[%s478 + $0x18] sm:$0xff]
        %2427 = vrot.lane.b32.xlu0 %v2419, 1
        %v2428 = vpop.permute.xlu0 %2427
        %2429 = vrot.lane.b32.xlu0 %v2420, 1
        %v2430 = vpop.permute.xlu0 %2429
        %2431 = vrot.lane.b32.xlu0 %v2421, 1
        %v2432 = vpop.permute.xlu0 %2431
        %2433 = vrot.lane.b32.xlu0 %v2422, 1
        %v2434 = vpop.permute.xlu0 %2433
        %v2435 = vsel %vm461, %v2428, %v2430
        %v2436 = vsel %vm461, %v2430, %v2432
        %v2437 = vsel %vm461, %v2432, %v2434
        %v2443 = vmul.f32 %v2187, %v2428
        %v2444 = vmul.f32 %v2188, %v2435
        %v2445 = vmul.f32 %v2189, %v2436
        %v2446 = vmul.f32 %v2190, %v2437
        %v2447 = vmul.f32 %v2187, %v2434
        %2453 = vrot.lane.b32.xlu0 %v2443, 127
        %v2454 = vpop.permute.xlu0 %2453
        %2455 = vrot.lane.b32.xlu0 %v2444, 127
        %v2456 = vpop.permute.xlu0 %2455
        %2457 = vrot.lane.b32.xlu0 %v2445, 127
        %v2458 = vpop.permute.xlu0 %2457
        %2459 = vrot.lane.b32.xlu0 %v2446, 127
        %v2460 = vpop.permute.xlu0 %2459
        %2461 = vrot.lane.b32.xlu0 %v2447, 127
        %v2462 = vpop.permute.xlu0 %2461
        %v2463 = vsel %vm432, %v2454, %v2456
        %v2464 = vsel %vm432, %v2456, %v2458
        %v2465 = vsel %vm432, %v2458, %v2460
        %v2466 = vsel %vm432, %v2460, %v2462
        %2471 = vst [vmem:[#allocation2 + $0xa0] sm:$0xff] %v2463
        %2472 = vst [vmem:[#allocation2 + $0xa8] sm:$0xff] %v2464
        %2473 = vst [vmem:[#allocation2 + $0xb0] sm:$0xff] %v2465
        %2474 = vst [vmem:[#allocation2 + $0xb8] sm:$0xff] %v2466
        %v2475 = vld [vmem:[%s535] sm:$0xff]
        %v2476 = vld [vmem:[%s535 + $0x8] sm:$0xff]
        %v2477 = vld [vmem:[%s535 + $0x10] sm:$0xff]
        %v2478 = vld [vmem:[%s535 + $0x18] sm:$0xff]
        %2483 = vrot.lane.b32.xlu0 %v2475, 15
        %v2484 = vpop.permute.xlu0 %2483
        %2485 = vrot.lane.b32.xlu0 %v2476, 15
        %v2486 = vpop.permute.xlu0 %2485
        %2487 = vrot.lane.b32.xlu0 %v2477, 15
        %v2488 = vpop.permute.xlu0 %2487
        %2489 = vrot.lane.b32.xlu0 %v2478, 15
        %v2490 = vpop.permute.xlu0 %2489
        %v2491 = vsel %vm402, %v2484, %v2486
        %v2492 = vsel %vm402, %v2486, %v2488
        %v2493 = vsel %vm402, %v2488, %v2490
        %v2499 = vmul.f32 %v2187, %v2484
        %v2500 = vmul.f32 %v2188, %v2491
        %v2501 = vmul.f32 %v2189, %v2492
        %v2502 = vmul.f32 %v2190, %v2493
        %v2503 = vmul.f32 %v2187, %v2490
        %2509 = vrot.lane.b32.xlu0 %v2499, 113
        %v2510 = vpop.permute.xlu0 %2509
        %2511 = vrot.lane.b32.xlu0 %v2500, 113
        %v2512 = vpop.permute.xlu0 %2511
        %2513 = vrot.lane.b32.xlu0 %v2501, 113
        %v2514 = vpop.permute.xlu0 %2513
        %2515 = vrot.lane.b32.xlu0 %v2502, 113
        %v2516 = vpop.permute.xlu0 %2515
        %2517 = vrot.lane.b32.xlu0 %v2503, 113
        %v2518 = vpop.permute.xlu0 %2517
        %v2519 = vsel %vm373, %v2510, %v2512
        %v2520 = vsel %vm373, %v2512, %v2514
        %v2521 = vsel %vm373, %v2514, %v2516
        %v2522 = vsel %vm373, %v2516, %v2518
        %2527 = vst [vmem:[#allocation2 + $0xc0] sm:$0xff] %v2519
        %2528 = vst [vmem:[#allocation2 + $0xc8] sm:$0xff] %v2520
        %2529 = vst [vmem:[#allocation2 + $0xd0] sm:$0xff] %v2521
        %2530 = vst [vmem:[#allocation2 + $0xd8] sm:$0xff] %v2522
        %v2531 = vld [vmem:[%s592] sm:$0xff]
        %v2532 = vld [vmem:[%s592 + $0x8] sm:$0xff]
        %v2533 = vld [vmem:[%s592 + $0x10] sm:$0xff]
        %v2534 = vld [vmem:[%s592 + $0x18] sm:$0xff]
        %2539 = vrot.lane.b32.xlu0 %v2531, 16
        %v2540 = vpop.permute.xlu0 %2539
        %2541 = vrot.lane.b32.xlu0 %v2532, 16
        %v2542 = vpop.permute.xlu0 %2541
        %2543 = vrot.lane.b32.xlu0 %v2533, 16
        %v2544 = vpop.permute.xlu0 %2543
        %2545 = vrot.lane.b32.xlu0 %v2534, 16
        %v2546 = vpop.permute.xlu0 %2545
        %v2547 = vsel %vm343, %v2540, %v2542
        %v2548 = vsel %vm343, %v2542, %v2544
        %v2549 = vsel %vm343, %v2544, %v2546
        %v2555 = vmul.f32 %v2187, %v2540
        %v2556 = vmul.f32 %v2188, %v2547
        %v2557 = vmul.f32 %v2189, %v2548
        %v2558 = vmul.f32 %v2190, %v2549
        %v2559 = vmul.f32 %v2187, %v2546
        %2565 = vrot.lane.b32.xlu0 %v2555, 112
        %v2566 = vpop.permute.xlu0 %2565
        %2567 = vrot.lane.b32.xlu0 %v2556, 112
        %v2568 = vpop.permute.xlu0 %2567
        %2569 = vrot.lane.b32.xlu0 %v2557, 112
        %v2570 = vpop.permute.xlu0 %2569
        %2571 = vrot.lane.b32.xlu0 %v2558, 112
        %v2572 = vpop.permute.xlu0 %2571
        %2573 = vrot.lane.b32.xlu0 %v2559, 112
        %v2574 = vpop.permute.xlu0 %2573
        %v2575 = vsel %vm314, %v2566, %v2568
        %v2576 = vsel %vm314, %v2568, %v2570
        %v2577 = vsel %vm314, %v2570, %v2572
        %v2578 = vsel %vm314, %v2572, %v2574
        %2583 = vst [vmem:[#allocation2 + $0xe0] sm:$0xff] %v2575
        %2584 = vst [vmem:[#allocation2 + $0xe8] sm:$0xff] %v2576
        %2585 = vst [vmem:[#allocation2 + $0xf0] sm:$0xff] %v2577
        %2586 = vst [vmem:[#allocation2 + $0xf8] sm:$0xff] %v2578
        %v2587 = vld [vmem:[%s649] sm:$0xff]
        %v2588 = vld [vmem:[%s649 + $0x8] sm:$0xff]
        %v2589 = vld [vmem:[%s649 + $0x10] sm:$0xff]
        %v2590 = vld [vmem:[%s649 + $0x18] sm:$0xff]
        %2595 = vrot.lane.b32.xlu0 %v2587, 17
        %v2596 = vpop.permute.xlu0 %2595
        %2597 = vrot.lane.b32.xlu0 %v2588, 17
        %v2598 = vpop.permute.xlu0 %2597
        %2599 = vrot.lane.b32.xlu0 %v2589, 17
        %v2600 = vpop.permute.xlu0 %2599
        %2601 = vrot.lane.b32.xlu0 %v2590, 17
        %v2602 = vpop.permute.xlu0 %2601
        %v2603 = vsel %vm284, %v2596, %v2598
        %v2604 = vsel %vm284, %v2598, %v2600
        %v2605 = vsel %vm284, %v2600, %v2602
        %v2611 = vmul.f32 %v2187, %v2596
        %v2612 = vmul.f32 %v2188, %v2603
        %v2613 = vmul.f32 %v2189, %v2604
        %v2614 = vmul.f32 %v2190, %v2605
        %v2615 = vmul.f32 %v2187, %v2602
        %2621 = vrot.lane.b32.xlu0 %v2611, 111
        %v2622 = vpop.permute.xlu0 %2621
        %2623 = vrot.lane.b32.xlu0 %v2612, 111
        %v2624 = vpop.permute.xlu0 %2623
        %2625 = vrot.lane.b32.xlu0 %v2613, 111
        %v2626 = vpop.permute.xlu0 %2625
        %2627 = vrot.lane.b32.xlu0 %v2614, 111
        %v2628 = vpop.permute.xlu0 %2627
        %2629 = vrot.lane.b32.xlu0 %v2615, 111
        %v2630 = vpop.permute.xlu0 %2629
        %v2631 = vsel %vm255, %v2622, %v2624
        %v2632 = vsel %vm255, %v2624, %v2626
        %v2633 = vsel %vm255, %v2626, %v2628
        %v2634 = vsel %vm255, %v2628, %v2630
        %2639 = vst [vmem:[#allocation2 + $0x100] sm:$0xff] %v2631
        %2640 = vst [vmem:[#allocation2 + $0x108] sm:$0xff] %v2632
        %2641 = vst [vmem:[#allocation2 + $0x110] sm:$0xff] %v2633
        %2642 = vst [vmem:[#allocation2 + $0x118] sm:$0xff] %v2634
        %s2643 = scalar_lea.vmem %s2, 24
        %v2644 = vld [vmem:[%s2643] sm:$0xff]
        %v2645 = vld [vmem:[#allocation2] sm:$0xff]
        %v2646 = vld [vmem:[#allocation2 + $0x8] sm:$0xff]
        %v2647 = vld [vmem:[#allocation2 + $0x10] sm:$0xff]
        %v2648 = vld [vmem:[#allocation2 + $0x18] sm:$0xff]
        %v2649 = vld [vmem:[#allocation2 + $0x20] sm:$0xff]
        %v2650 = vld [vmem:[#allocation2 + $0x28] sm:$0xff]
        %v2651 = vld [vmem:[#allocation2 + $0x30] sm:$0xff]
        %v2652 = vld [vmem:[#allocation2 + $0x38] sm:$0xff]
        %v2653 = vld [vmem:[#allocation2 + $0x40] sm:$0xff]
        %v2654 = vld [vmem:[#allocation2 + $0x48] sm:$0xff]
        %v2655 = vld [vmem:[#allocation2 + $0x50] sm:$0xff]
        %v2656 = vld [vmem:[#allocation2 + $0x58] sm:$0xff]
        %v2657 = vld [vmem:[#allocation2 + $0x60] sm:$0xff]
        %v2658 = vld [vmem:[#allocation2 + $0x68] sm:$0xff]
        %v2659 = vld [vmem:[#allocation2 + $0x70] sm:$0xff]
        %v2660 = vld [vmem:[#allocation2 + $0x78] sm:$0xff]
        %v2661 = vld [vmem:[#allocation2 + $0x80] sm:$0xff]
        %v2662 = vld [vmem:[#allocation2 + $0x88] sm:$0xff]
        %v2663 = vld [vmem:[#allocation2 + $0x90] sm:$0xff]
        %v2664 = vld [vmem:[#allocation2 + $0x98] sm:$0xff]
        %v2665 = vld [vmem:[#allocation2 + $0xa0] sm:$0xff]
        %v2666 = vld [vmem:[#allocation2 + $0xa8] sm:$0xff]
        %v2667 = vld [vmem:[#allocation2 + $0xb0] sm:$0xff]
        %v2668 = vld [vmem:[#allocation2 + $0xb8] sm:$0xff]
        %v2669 = vld [vmem:[#allocation2 + $0xc0] sm:$0xff]
        %v2670 = vld [vmem:[#allocation2 + $0xc8] sm:$0xff]
        %v2671 = vld [vmem:[#allocation2 + $0xd0] sm:$0xff]
        %v2672 = vld [vmem:[#allocation2 + $0xd8] sm:$0xff]
        %v2673 = vld [vmem:[#allocation2 + $0xe0] sm:$0xff]
        %v2674 = vld [vmem:[#allocation2 + $0xe8] sm:$0xff]
        %v2675 = vld [vmem:[#allocation2 + $0xf0] sm:$0xff]
        %v2676 = vld [vmem:[#allocation2 + $0xf8] sm:$0xff]
        %v2677 = vld [vmem:[#allocation2 + $0x100] sm:$0xff]
        %v2678 = vld [vmem:[#allocation2 + $0x108] sm:$0xff]
        %v2679 = vld [vmem:[#allocation2 + $0x110] sm:$0xff]
        %v2680 = vld [vmem:[#allocation2 + $0x118] sm:$0xff]
        %s2681 = scalar_lea.vmem %s3, 24
        %v2682 = vld [vmem:[%s2681] sm:$0xff]
        %2684 = vset.pattern.permute.xlu0 0
        %2685 = vperm.xlu0 %2684, %v2682
        %v2686 = vpop.permute.xlu0 %2685
        %v2689 = vsel %vm749, %v2644, 0
        %2691 = vmatprep.subr.mxu0 0.0
        %2692 = vmatpush1.msra.mxu0 0.0
        %2693 = vmatprep.subr.mxu0 0.0
        %2694 = vmatpush1.msra.mxu0 0.0
        %2695 = vmatprep.subr.mxu0 0.0
        %2696 = vmatpush1.msra.mxu0 0.0
        %2697 = vmatprep.subr.mxu0 0.0
        %2698 = vmatpush1.msra.mxu0 0.0
        %2699 = vmatprep.subr.mxu0 0.0
        %2700 = vmatpush1.msra.mxu0 0.0
        %2701 = vmatprep.subr.mxu0 0.0
        %2702 = vmatpush1.msra.mxu0 0.0
        %2703 = vmatprep.subr.mxu0 0.0
        %2704 = vmatpush1.msra.mxu0 0.0
        %2705 = vmatprep.subr.mxu0 %v2678
        %2706 = vmatpush1.msra.mxu0 %v2677
        %2707 = vmatprep.subr.mxu0 %v2674
        %2708 = vmatpush1.msra.mxu0 %v2673
        %2709 = vmatprep.subr.mxu0 %v2670
        %2710 = vmatpush1.msra.mxu0 %v2669
        %2711 = vmatprep.subr.mxu0 %v2666
        %2712 = vmatpush1.msra.mxu0 %v2665
        %2713 = vmatprep.subr.mxu0 %v2662
        %2714 = vmatpush1.msra.mxu0 %v2661
        %2715 = vmatprep.subr.mxu0 %v2658
        %2716 = vmatpush1.msra.mxu0 %v2657
        %2717 = vmatprep.subr.mxu0 %v2654
        %2718 = vmatpush1.msra.mxu0 %v2653
        %2719 = vmatprep.subr.mxu0 %v2650
        %2720 = vmatpush1.msra.mxu0 %v2649
        %2721 = vmatprep.subr.mxu0 %v2646
        %2722 = vmatpush1.msra.mxu0 %v2645
        %2723 = vmatprep.subr.mxu0 0.0
        %2724 = vmatpush2.msra.mxu0 0.0
        %2725 = vmatprep.subr.mxu0 0.0
        %2726 = vmatpush2.msra.mxu0 0.0
        %2727 = vmatprep.subr.mxu0 0.0
        %2728 = vmatpush2.msra.mxu0 0.0
        %2729 = vmatprep.subr.mxu0 0.0
        %2730 = vmatpush2.msra.mxu0 0.0
        %2731 = vmatprep.subr.mxu0 0.0
        %2732 = vmatpush2.msra.mxu0 0.0
        %2733 = vmatprep.subr.mxu0 0.0
        %2734 = vmatpush2.msra.mxu0 0.0
        %2735 = vmatprep.subr.mxu0 0.0
        %2736 = vmatpush2.msra.mxu0 0.0
        %2737 = vmatprep.subr.mxu0 0.0
        %2738 = vmatpush2.msra.mxu0 0.0
        %2739 = vmatprep.subr.mxu0 0.0
        %2740 = vmatpush2.msra.mxu0 0.0
        %2741 = vmatprep.subr.mxu0 0.0
        %2742 = vmatpush2.msra.mxu0 0.0
        %2743 = vmatprep.subr.mxu0 0.0
        %2744 = vmatpush2.msra.mxu0 0.0
        %2745 = vmatprep.subr.mxu0 0.0
        %2746 = vmatpush2.msra.mxu0 0.0
        %2747 = vmatprep.subr.mxu0 0.0
        %2748 = vmatpush2.msra.mxu0 0.0
        %2749 = vmatprep.subr.mxu0 0.0
        %2750 = vmatpush2.msra.mxu0 0.0
        %2751 = vmatprep.subr.mxu0 0.0
        %2752 = vmatpush2.msra.mxu0 0.0
        %2753 = vmatprep.subr.mxu0 0.0
        %2754 = vmatpush2.msra.mxu0 0.0
        %2755 = vmatprep.mubr.f32.mxu0 0.0
        %2756 = vmatmul.mubr.f32.gmra.mxu0 %v2689
        %v2757 = vpop.f32.mrf.mxu0
        %v2758 = vadd.f32 %v2686, %v2757
        %v2759 = vpop.f32.mrf.mxu0
        %v2760 = vadd.f32 %v2686, %v2759
        %2761 = vdwg.mxu0
        %2762 = vmatprep.subr.mxu0 0.0
        %2763 = vmatpush1.msra.mxu0 0.0
        %2764 = vmatprep.subr.mxu0 0.0
        %2765 = vmatpush1.msra.mxu0 0.0
        %2766 = vmatprep.subr.mxu0 0.0
        %2767 = vmatpush1.msra.mxu0 0.0
        %2768 = vmatprep.subr.mxu0 0.0
        %2769 = vmatpush1.msra.mxu0 0.0
        %2770 = vmatprep.subr.mxu0 0.0
        %2771 = vmatpush1.msra.mxu0 0.0
        %2772 = vmatprep.subr.mxu0 0.0
        %2773 = vmatpush1.msra.mxu0 0.0
        %2774 = vmatprep.subr.mxu0 0.0
        %2775 = vmatpush1.msra.mxu0 0.0
        %2776 = vmatprep.subr.mxu0 %v2680
        %2777 = vmatpush1.msra.mxu0 %v2679
        %2778 = vmatprep.subr.mxu0 %v2676
        %2779 = vmatpush1.msra.mxu0 %v2675
        %2780 = vmatprep.subr.mxu0 %v2672
        %2781 = vmatpush1.msra.mxu0 %v2671
        %2782 = vmatprep.subr.mxu0 %v2668
        %2783 = vmatpush1.msra.mxu0 %v2667
        %2784 = vmatprep.subr.mxu0 %v2664
        %2785 = vmatpush1.msra.mxu0 %v2663
        %2786 = vmatprep.subr.mxu0 %v2660
        %2787 = vmatpush1.msra.mxu0 %v2659
        %2788 = vmatprep.subr.mxu0 %v2656
        %2789 = vmatpush1.msra.mxu0 %v2655
        %2790 = vmatprep.subr.mxu0 %v2652
        %2791 = vmatpush1.msra.mxu0 %v2651
        %2792 = vmatprep.subr.mxu0 %v2648
        %2793 = vmatpush1.msra.mxu0 %v2647
        %2794 = vmatprep.subr.mxu0 0.0
        %2795 = vmatpush2.msra.mxu0 0.0
        %2796 = vmatprep.subr.mxu0 0.0
        %2797 = vmatpush2.msra.mxu0 0.0
        %2798 = vmatprep.subr.mxu0 0.0
        %2799 = vmatpush2.msra.mxu0 0.0
        %2800 = vmatprep.subr.mxu0 0.0
        %2801 = vmatpush2.msra.mxu0 0.0
        %2802 = vmatprep.subr.mxu0 0.0
        %2803 = vmatpush2.msra.mxu0 0.0
        %2804 = vmatprep.subr.mxu0 0.0
        %2805 = vmatpush2.msra.mxu0 0.0
        %2806 = vmatprep.subr.mxu0 0.0
        %2807 = vmatpush2.msra.mxu0 0.0
        %2808 = vmatprep.subr.mxu0 0.0
        %2809 = vmatpush2.msra.mxu0 0.0
        %2810 = vmatprep.subr.mxu0 0.0
        %2811 = vmatpush2.msra.mxu0 0.0
        %2812 = vmatprep.subr.mxu0 0.0
        %2813 = vmatpush2.msra.mxu0 0.0
        %2814 = vmatprep.subr.mxu0 0.0
        %2815 = vmatpush2.msra.mxu0 0.0
        %2816 = vmatprep.subr.mxu0 0.0
        %2817 = vmatpush2.msra.mxu0 0.0
        %2818 = vmatprep.subr.mxu0 0.0
        %2819 = vmatpush2.msra.mxu0 0.0
        %2820 = vmatprep.subr.mxu0 0.0
        %2821 = vmatpush2.msra.mxu0 0.0
        %2822 = vmatprep.subr.mxu0 0.0
        %2823 = vmatpush2.msra.mxu0 0.0
        %2824 = vmatprep.subr.mxu0 0.0
        %2825 = vmatpush2.msra.mxu0 0.0
        %2826 = vmatprep.mubr.f32.mxu0 0.0
        %2827 = vmatmul.mubr.f32.gmra.mxu0 %v2689
        %v2828 = vpop.f32.mrf.mxu0
        %v2829 = vadd.f32 %v2686, %v2828
        %v2830 = vpop.f32.mrf.mxu0
        %v2831 = vadd.f32 %v2686, %v2830
        %2832 = vdwg.mxu0
        %v2833 = vadd.f32 %v1541, %v2758
        %v2834 = vadd.f32 %v1542, %v2760
        %v2835 = vadd.f32 %v1543, %v2829
        %v2836 = vadd.f32 %v1544, %v2831
        %v2837 = vld [vmem:[#allocation6] sm:$0xff]
        %v2838 = vld [vmem:[#allocation6 + $0x8] sm:$0xff]
        %v2839 = vld [vmem:[#allocation6 + $0x10] sm:$0xff]
        %v2840 = vld [vmem:[#allocation6 + $0x18] sm:$0xff]
        %2845 = vrot.lane.b32.xlu0 %v2837, 111
        %v2846 = vpop.permute.xlu0 %2845
        %2847 = vrot.lane.b32.xlu0 %v2838, 111
        %v2848 = vpop.permute.xlu0 %2847
        %2849 = vrot.lane.b32.xlu0 %v2839, 111
        %v2850 = vpop.permute.xlu0 %2849
        %2851 = vrot.lane.b32.xlu0 %v2840, 111
        %v2852 = vpop.permute.xlu0 %2851
        %v2853 = vsel %vm255, %v2846, %v2848
        %v2854 = vsel %vm255, %v2848, %v2850
        %v2855 = vsel %vm255, %v2850, %v2852
        %v2861 = vmul.f32 %v2836, %v2846
        %v2862 = vmul.f32 %v2833, %v2853
        %v2863 = vmul.f32 %v2834, %v2854
        %v2864 = vmul.f32 %v2835, %v2855
        %v2865 = vmul.f32 %v2836, %v2852
        %2871 = vrot.lane.b32.xlu0 %v2861, 17
        %v2872 = vpop.permute.xlu0 %2871
        %2873 = vrot.lane.b32.xlu0 %v2862, 17
        %v2874 = vpop.permute.xlu0 %2873
        %2875 = vrot.lane.b32.xlu0 %v2863, 17
        %v2876 = vpop.permute.xlu0 %2875
        %2877 = vrot.lane.b32.xlu0 %v2864, 17
        %v2878 = vpop.permute.xlu0 %2877
        %2879 = vrot.lane.b32.xlu0 %v2865, 17
        %v2880 = vpop.permute.xlu0 %2879
        %v2881 = vsel %vm284, %v2872, %v2874
        %v2882 = vsel %vm284, %v2874, %v2876
        %v2883 = vsel %vm284, %v2876, %v2878
        %v2884 = vsel %vm284, %v2878, %v2880
        %2889 = vst [vmem:[#allocation2] sm:$0xff] %v2881
        %2890 = vst [vmem:[#allocation2 + $0x8] sm:$0xff] %v2882
        %2891 = vst [vmem:[#allocation2 + $0x10] sm:$0xff] %v2883
        %2892 = vst [vmem:[#allocation2 + $0x18] sm:$0xff] %v2884
        %v2893 = vld [vmem:[%s297] sm:$0xff]
        %v2894 = vld [vmem:[%s297 + $0x8] sm:$0xff]
        %v2895 = vld [vmem:[%s297 + $0x10] sm:$0xff]
        %v2896 = vld [vmem:[%s297 + $0x18] sm:$0xff]
        %2901 = vrot.lane.b32.xlu0 %v2893, 112
        %v2902 = vpop.permute.xlu0 %2901
        %2903 = vrot.lane.b32.xlu0 %v2894, 112
        %v2904 = vpop.permute.xlu0 %2903
        %2905 = vrot.lane.b32.xlu0 %v2895, 112
        %v2906 = vpop.permute.xlu0 %2905
        %2907 = vrot.lane.b32.xlu0 %v2896, 112
        %v2908 = vpop.permute.xlu0 %2907
        %v2909 = vsel %vm314, %v2902, %v2904
        %v2910 = vsel %vm314, %v2904, %v2906
        %v2911 = vsel %vm314, %v2906, %v2908
        %v2917 = vmul.f32 %v2836, %v2902
        %v2918 = vmul.f32 %v2833, %v2909
        %v2919 = vmul.f32 %v2834, %v2910
        %v2920 = vmul.f32 %v2835, %v2911
        %v2921 = vmul.f32 %v2836, %v2908
        %2927 = vrot.lane.b32.xlu0 %v2917, 16
        %v2928 = vpop.permute.xlu0 %2927
        %2929 = vrot.lane.b32.xlu0 %v2918, 16
        %v2930 = vpop.permute.xlu0 %2929
        %2931 = vrot.lane.b32.xlu0 %v2919, 16
        %v2932 = vpop.permute.xlu0 %2931
        %2933 = vrot.lane.b32.xlu0 %v2920, 16
        %v2934 = vpop.permute.xlu0 %2933
        %2935 = vrot.lane.b32.xlu0 %v2921, 16
        %v2936 = vpop.permute.xlu0 %2935
        %v2937 = vsel %vm343, %v2928, %v2930
        %v2938 = vsel %vm343, %v2930, %v2932
        %v2939 = vsel %vm343, %v2932, %v2934
        %v2940 = vsel %vm343, %v2934, %v2936
        %2945 = vst [vmem:[#allocation2 + $0x20] sm:$0xff] %v2937
        %2946 = vst [vmem:[#allocation2 + $0x28] sm:$0xff] %v2938
        %2947 = vst [vmem:[#allocation2 + $0x30] sm:$0xff] %v2939
        %2948 = vst [vmem:[#allocation2 + $0x38] sm:$0xff] %v2940
        %v2949 = vld [vmem:[%s356] sm:$0xff]
        %v2950 = vld [vmem:[%s356 + $0x8] sm:$0xff]
        %v2951 = vld [vmem:[%s356 + $0x10] sm:$0xff]
        %v2952 = vld [vmem:[%s356 + $0x18] sm:$0xff]
        %2957 = vrot.lane.b32.xlu0 %v2949, 113
        %v2958 = vpop.permute.xlu0 %2957
        %2959 = vrot.lane.b32.xlu0 %v2950, 113
        %v2960 = vpop.permute.xlu0 %2959
        %2961 = vrot.lane.b32.xlu0 %v2951, 113
        %v2962 = vpop.permute.xlu0 %2961
        %2963 = vrot.lane.b32.xlu0 %v2952, 113
        %v2964 = vpop.permute.xlu0 %2963
        %v2965 = vsel %vm373, %v2958, %v2960
        %v2966 = vsel %vm373, %v2960, %v2962
        %v2967 = vsel %vm373, %v2962, %v2964
        %v2973 = vmul.f32 %v2836, %v2958
        %v2974 = vmul.f32 %v2833, %v2965
        %v2975 = vmul.f32 %v2834, %v2966
        %v2976 = vmul.f32 %v2835, %v2967
        %v2977 = vmul.f32 %v2836, %v2964
        %2983 = vrot.lane.b32.xlu0 %v2973, 15
        %v2984 = vpop.permute.xlu0 %2983
        %2985 = vrot.lane.b32.xlu0 %v2974, 15
        %v2986 = vpop.permute.xlu0 %2985
        %2987 = vrot.lane.b32.xlu0 %v2975, 15
        %v2988 = vpop.permute.xlu0 %2987
        %2989 = vrot.lane.b32.xlu0 %v2976, 15
        %v2990 = vpop.permute.xlu0 %2989
        %2991 = vrot.lane.b32.xlu0 %v2977, 15
        %v2992 = vpop.permute.xlu0 %2991
        %v2993 = vsel %vm402, %v2984, %v2986
        %v2994 = vsel %vm402, %v2986, %v2988
        %v2995 = vsel %vm402, %v2988, %v2990
        %v2996 = vsel %vm402, %v2990, %v2992
        %3001 = vst [vmem:[#allocation2 + $0x40] sm:$0xff] %v2993
        %3002 = vst [vmem:[#allocation2 + $0x48] sm:$0xff] %v2994
        %3003 = vst [vmem:[#allocation2 + $0x50] sm:$0xff] %v2995
        %3004 = vst [vmem:[#allocation2 + $0x58] sm:$0xff] %v2996
        %v3005 = vld [vmem:[%s415] sm:$0xff]
        %v3006 = vld [vmem:[%s415 + $0x8] sm:$0xff]
        %v3007 = vld [vmem:[%s415 + $0x10] sm:$0xff]
        %v3008 = vld [vmem:[%s415 + $0x18] sm:$0xff]
        %3013 = vrot.lane.b32.xlu0 %v3005, 127
        %v3014 = vpop.permute.xlu0 %3013
        %3015 = vrot.lane.b32.xlu0 %v3006, 127
        %v3016 = vpop.permute.xlu0 %3015
        %3017 = vrot.lane.b32.xlu0 %v3007, 127
        %v3018 = vpop.permute.xlu0 %3017
        %3019 = vrot.lane.b32.xlu0 %v3008, 127
        %v3020 = vpop.permute.xlu0 %3019
        %v3021 = vsel %vm432, %v3014, %v3016
        %v3022 = vsel %vm432, %v3016, %v3018
        %v3023 = vsel %vm432, %v3018, %v3020
        %v3029 = vmul.f32 %v2836, %v3014
        %v3030 = vmul.f32 %v2833, %v3021
        %v3031 = vmul.f32 %v2834, %v3022
        %v3032 = vmul.f32 %v2835, %v3023
        %v3033 = vmul.f32 %v2836, %v3020
        %3039 = vrot.lane.b32.xlu0 %v3029, 1
        %v3040 = vpop.permute.xlu0 %3039
        %3041 = vrot.lane.b32.xlu0 %v3030, 1
        %v3042 = vpop.permute.xlu0 %3041
        %3043 = vrot.lane.b32.xlu0 %v3031, 1
        %v3044 = vpop.permute.xlu0 %3043
        %3045 = vrot.lane.b32.xlu0 %v3032, 1
        %v3046 = vpop.permute.xlu0 %3045
        %3047 = vrot.lane.b32.xlu0 %v3033, 1
        %v3048 = vpop.permute.xlu0 %3047
        %v3049 = vsel %vm461, %v3040, %v3042
        %v3050 = vsel %vm461, %v3042, %v3044
        %v3051 = vsel %vm461, %v3044, %v3046
        %v3052 = vsel %vm461, %v3046, %v3048
        %3057 = vst [vmem:[#allocation2 + $0x60] sm:$0xff] %v3049
        %3058 = vst [vmem:[#allocation2 + $0x68] sm:$0xff] %v3050
        %3059 = vst [vmem:[#allocation2 + $0x70] sm:$0xff] %v3051
        %3060 = vst [vmem:[#allocation2 + $0x78] sm:$0xff] %v3052
        %3061 = vst [vmem:[#allocation2 + $0x80] sm:$0xff] %v2833
        %3062 = vst [vmem:[#allocation2 + $0x88] sm:$0xff] %v2834
        %3063 = vst [vmem:[#allocation2 + $0x90] sm:$0xff] %v2835
        %3064 = vst [vmem:[#allocation2 + $0x98] sm:$0xff] %v2836
        %v3065 = vld [vmem:[%s478] sm:$0xff]
        %v3066 = vld [vmem:[%s478 + $0x8] sm:$0xff]
        %v3067 = vld [vmem:[%s478 + $0x10] sm:$0xff]
        %v3068 = vld [vmem:[%s478 + $0x18] sm:$0xff]
        %3073 = vrot.lane.b32.xlu0 %v3065, 1
        %v3074 = vpop.permute.xlu0 %3073
        %3075 = vrot.lane.b32.xlu0 %v3066, 1
        %v3076 = vpop.permute.xlu0 %3075
        %3077 = vrot.lane.b32.xlu0 %v3067, 1
        %v3078 = vpop.permute.xlu0 %3077
        %3079 = vrot.lane.b32.xlu0 %v3068, 1
        %v3080 = vpop.permute.xlu0 %3079
        %v3081 = vsel %vm461, %v3074, %v3076
        %v3082 = vsel %vm461, %v3076, %v3078
        %v3083 = vsel %vm461, %v3078, %v3080
        %v3089 = vmul.f32 %v2833, %v3074
        %v3090 = vmul.f32 %v2834, %v3081
        %v3091 = vmul.f32 %v2835, %v3082
        %v3092 = vmul.f32 %v2836, %v3083
        %v3093 = vmul.f32 %v2833, %v3080
        %3099 = vrot.lane.b32.xlu0 %v3089, 127
        %v3100 = vpop.permute.xlu0 %3099
        %3101 = vrot.lane.b32.xlu0 %v3090, 127
        %v3102 = vpop.permute.xlu0 %3101
        %3103 = vrot.lane.b32.xlu0 %v3091, 127
        %v3104 = vpop.permute.xlu0 %3103
        %3105 = vrot.lane.b32.xlu0 %v3092, 127
        %v3106 = vpop.permute.xlu0 %3105
        %3107 = vrot.lane.b32.xlu0 %v3093, 127
        %v3108 = vpop.permute.xlu0 %3107
        %v3109 = vsel %vm432, %v3100, %v3102
        %v3110 = vsel %vm432, %v3102, %v3104
        %v3111 = vsel %vm432, %v3104, %v3106
        %v3112 = vsel %vm432, %v3106, %v3108
        %3117 = vst [vmem:[#allocation2 + $0xa0] sm:$0xff] %v3109
        %3118 = vst [vmem:[#allocation2 + $0xa8] sm:$0xff] %v3110
        %3119 = vst [vmem:[#allocation2 + $0xb0] sm:$0xff] %v3111
        %3120 = vst [vmem:[#allocation2 + $0xb8] sm:$0xff] %v3112
        %v3121 = vld [vmem:[%s535] sm:$0xff]
        %v3122 = vld [vmem:[%s535 + $0x8] sm:$0xff]
        %v3123 = vld [vmem:[%s535 + $0x10] sm:$0xff]
        %v3124 = vld [vmem:[%s535 + $0x18] sm:$0xff]
        %3129 = vrot.lane.b32.xlu0 %v3121, 15
        %v3130 = vpop.permute.xlu0 %3129
        %3131 = vrot.lane.b32.xlu0 %v3122, 15
        %v3132 = vpop.permute.xlu0 %3131
        %3133 = vrot.lane.b32.xlu0 %v3123, 15
        %v3134 = vpop.permute.xlu0 %3133
        %3135 = vrot.lane.b32.xlu0 %v3124, 15
        %v3136 = vpop.permute.xlu0 %3135
        %v3137 = vsel %vm402, %v3130, %v3132
        %v3138 = vsel %vm402, %v3132, %v3134
        %v3139 = vsel %vm402, %v3134, %v3136
        %v3145 = vmul.f32 %v2833, %v3130
        %v3146 = vmul.f32 %v2834, %v3137
        %v3147 = vmul.f32 %v2835, %v3138
        %v3148 = vmul.f32 %v2836, %v3139
        %v3149 = vmul.f32 %v2833, %v3136
        %3155 = vrot.lane.b32.xlu0 %v3145, 113
        %v3156 = vpop.permute.xlu0 %3155
        %3157 = vrot.lane.b32.xlu0 %v3146, 113
        %v3158 = vpop.permute.xlu0 %3157
        %3159 = vrot.lane.b32.xlu0 %v3147, 113
        %v3160 = vpop.permute.xlu0 %3159
        %3161 = vrot.lane.b32.xlu0 %v3148, 113
        %v3162 = vpop.permute.xlu0 %3161
        %3163 = vrot.lane.b32.xlu0 %v3149, 113
        %v3164 = vpop.permute.xlu0 %3163
        %v3165 = vsel %vm373, %v3156, %v3158
        %v3166 = vsel %vm373, %v3158, %v3160
        %v3167 = vsel %vm373, %v3160, %v3162
        %v3168 = vsel %vm373, %v3162, %v3164
        %3173 = vst [vmem:[#allocation2 + $0xc0] sm:$0xff] %v3165
        %3174 = vst [vmem:[#allocation2 + $0xc8] sm:$0xff] %v3166
        %3175 = vst [vmem:[#allocation2 + $0xd0] sm:$0xff] %v3167
        %3176 = vst [vmem:[#allocation2 + $0xd8] sm:$0xff] %v3168
        %v3177 = vld [vmem:[%s592] sm:$0xff]
        %v3178 = vld [vmem:[%s592 + $0x8] sm:$0xff]
        %v3179 = vld [vmem:[%s592 + $0x10] sm:$0xff]
        %v3180 = vld [vmem:[%s592 + $0x18] sm:$0xff]
        %3185 = vrot.lane.b32.xlu0 %v3177, 16
        %v3186 = vpop.permute.xlu0 %3185
        %3187 = vrot.lane.b32.xlu0 %v3178, 16
        %v3188 = vpop.permute.xlu0 %3187
        %3189 = vrot.lane.b32.xlu0 %v3179, 16
        %v3190 = vpop.permute.xlu0 %3189
        %3191 = vrot.lane.b32.xlu0 %v3180, 16
        %v3192 = vpop.permute.xlu0 %3191
        %v3193 = vsel %vm343, %v3186, %v3188
        %v3194 = vsel %vm343, %v3188, %v3190
        %v3195 = vsel %vm343, %v3190, %v3192
        %v3201 = vmul.f32 %v2833, %v3186
        %v3202 = vmul.f32 %v2834, %v3193
        %v3203 = vmul.f32 %v2835, %v3194
        %v3204 = vmul.f32 %v2836, %v3195
        %v3205 = vmul.f32 %v2833, %v3192
        %3211 = vrot.lane.b32.xlu0 %v3201, 112
        %v3212 = vpop.permute.xlu0 %3211
        %3213 = vrot.lane.b32.xlu0 %v3202, 112
        %v3214 = vpop.permute.xlu0 %3213
        %3215 = vrot.lane.b32.xlu0 %v3203, 112
        %v3216 = vpop.permute.xlu0 %3215
        %3217 = vrot.lane.b32.xlu0 %v3204, 112
        %v3218 = vpop.permute.xlu0 %3217
        %3219 = vrot.lane.b32.xlu0 %v3205, 112
        %v3220 = vpop.permute.xlu0 %3219
        %v3221 = vsel %vm314, %v3212, %v3214
        %v3222 = vsel %vm314, %v3214, %v3216
        %v3223 = vsel %vm314, %v3216, %v3218
        %v3224 = vsel %vm314, %v3218, %v3220
        %3229 = vst [vmem:[#allocation2 + $0xe0] sm:$0xff] %v3221
        %3230 = vst [vmem:[#allocation2 + $0xe8] sm:$0xff] %v3222
        %3231 = vst [vmem:[#allocation2 + $0xf0] sm:$0xff] %v3223
        %3232 = vst [vmem:[#allocation2 + $0xf8] sm:$0xff] %v3224
        %v3233 = vld [vmem:[%s649] sm:$0xff]
        %v3234 = vld [vmem:[%s649 + $0x8] sm:$0xff]
        %v3235 = vld [vmem:[%s649 + $0x10] sm:$0xff]
        %v3236 = vld [vmem:[%s649 + $0x18] sm:$0xff]
        %3241 = vrot.lane.b32.xlu0 %v3233, 17
        %v3242 = vpop.permute.xlu0 %3241
        %3243 = vrot.lane.b32.xlu0 %v3234, 17
        %v3244 = vpop.permute.xlu0 %3243
        %3245 = vrot.lane.b32.xlu0 %v3235, 17
        %v3246 = vpop.permute.xlu0 %3245
        %3247 = vrot.lane.b32.xlu0 %v3236, 17
        %v3248 = vpop.permute.xlu0 %3247
        %v3249 = vsel %vm284, %v3242, %v3244
        %v3250 = vsel %vm284, %v3244, %v3246
        %v3251 = vsel %vm284, %v3246, %v3248
        %v3257 = vmul.f32 %v2833, %v3242
        %v3258 = vmul.f32 %v2834, %v3249
        %v3259 = vmul.f32 %v2835, %v3250
        %v3260 = vmul.f32 %v2836, %v3251
        %v3261 = vmul.f32 %v2833, %v3248
        %3267 = vrot.lane.b32.xlu0 %v3257, 111
        %v3268 = vpop.permute.xlu0 %3267
        %3269 = vrot.lane.b32.xlu0 %v3258, 111
        %v3270 = vpop.permute.xlu0 %3269
        %3271 = vrot.lane.b32.xlu0 %v3259, 111
        %v3272 = vpop.permute.xlu0 %3271
        %3273 = vrot.lane.b32.xlu0 %v3260, 111
        %v3274 = vpop.permute.xlu0 %3273
        %3275 = vrot.lane.b32.xlu0 %v3261, 111
        %v3276 = vpop.permute.xlu0 %3275
        %v3277 = vsel %vm255, %v3268, %v3270
        %v3278 = vsel %vm255, %v3270, %v3272
        %v3279 = vsel %vm255, %v3272, %v3274
        %v3280 = vsel %vm255, %v3274, %v3276
        %3285 = vst [vmem:[#allocation2 + $0x100] sm:$0xff] %v3277
        %3286 = vst [vmem:[#allocation2 + $0x108] sm:$0xff] %v3278
        %3287 = vst [vmem:[#allocation2 + $0x110] sm:$0xff] %v3279
        %3288 = vst [vmem:[#allocation2 + $0x118] sm:$0xff] %v3280
        %s3289 = scalar_lea.vmem %s2, 32
        %v3290 = vld [vmem:[%s3289] sm:$0xff]
        %v3291 = vld [vmem:[#allocation2] sm:$0xff]
        %v3292 = vld [vmem:[#allocation2 + $0x8] sm:$0xff]
        %v3293 = vld [vmem:[#allocation2 + $0x10] sm:$0xff]
        %v3294 = vld [vmem:[#allocation2 + $0x18] sm:$0xff]
        %v3295 = vld [vmem:[#allocation2 + $0x20] sm:$0xff]
        %v3296 = vld [vmem:[#allocation2 + $0x28] sm:$0xff]
        %v3297 = vld [vmem:[#allocation2 + $0x30] sm:$0xff]
        %v3298 = vld [vmem:[#allocation2 + $0x38] sm:$0xff]
        %v3299 = vld [vmem:[#allocation2 + $0x40] sm:$0xff]
        %v3300 = vld [vmem:[#allocation2 + $0x48] sm:$0xff]
        %v3301 = vld [vmem:[#allocation2 + $0x50] sm:$0xff]
        %v3302 = vld [vmem:[#allocation2 + $0x58] sm:$0xff]
        %v3303 = vld [vmem:[#allocation2 + $0x60] sm:$0xff]
        %v3304 = vld [vmem:[#allocation2 + $0x68] sm:$0xff]
        %v3305 = vld [vmem:[#allocation2 + $0x70] sm:$0xff]
        %v3306 = vld [vmem:[#allocation2 + $0x78] sm:$0xff]
        %v3307 = vld [vmem:[#allocation2 + $0x80] sm:$0xff]
        %v3308 = vld [vmem:[#allocation2 + $0x88] sm:$0xff]
        %v3309 = vld [vmem:[#allocation2 + $0x90] sm:$0xff]
        %v3310 = vld [vmem:[#allocation2 + $0x98] sm:$0xff]
        %v3311 = vld [vmem:[#allocation2 + $0xa0] sm:$0xff]
        %v3312 = vld [vmem:[#allocation2 + $0xa8] sm:$0xff]
        %v3313 = vld [vmem:[#allocation2 + $0xb0] sm:$0xff]
        %v3314 = vld [vmem:[#allocation2 + $0xb8] sm:$0xff]
        %v3315 = vld [vmem:[#allocation2 + $0xc0] sm:$0xff]
        %v3316 = vld [vmem:[#allocation2 + $0xc8] sm:$0xff]
        %v3317 = vld [vmem:[#allocation2 + $0xd0] sm:$0xff]
        %v3318 = vld [vmem:[#allocation2 + $0xd8] sm:$0xff]
        %v3319 = vld [vmem:[#allocation2 + $0xe0] sm:$0xff]
        %v3320 = vld [vmem:[#allocation2 + $0xe8] sm:$0xff]
        %v3321 = vld [vmem:[#allocation2 + $0xf0] sm:$0xff]
        %v3322 = vld [vmem:[#allocation2 + $0xf8] sm:$0xff]
        %v3323 = vld [vmem:[#allocation2 + $0x100] sm:$0xff]
        %v3324 = vld [vmem:[#allocation2 + $0x108] sm:$0xff]
        %v3325 = vld [vmem:[#allocation2 + $0x110] sm:$0xff]
        %v3326 = vld [vmem:[#allocation2 + $0x118] sm:$0xff]
        %s3327 = scalar_lea.vmem %s3, 32
        %v3328 = vld [vmem:[%s3327] sm:$0xff]
        %3330 = vset.pattern.permute.xlu0 0
        %3331 = vperm.xlu0 %3330, %v3328
        %v3332 = vpop.permute.xlu0 %3331
        %v3335 = vsel %vm749, %v3290, 0
        %3337 = vmatprep.subr.mxu0 0.0
        %3338 = vmatpush1.msra.mxu0 0.0
        %3339 = vmatprep.subr.mxu0 0.0
        %3340 = vmatpush1.msra.mxu0 0.0
        %3341 = vmatprep.subr.mxu0 0.0
        %3342 = vmatpush1.msra.mxu0 0.0
        %3343 = vmatprep.subr.mxu0 0.0
        %3344 = vmatpush1.msra.mxu0 0.0
        %3345 = vmatprep.subr.mxu0 0.0
        %3346 = vmatpush1.msra.mxu0 0.0
        %3347 = vmatprep.subr.mxu0 0.0
        %3348 = vmatpush1.msra.mxu0 0.0
        %3349 = vmatprep.subr.mxu0 0.0
        %3350 = vmatpush1.msra.mxu0 0.0
        %3351 = vmatprep.subr.mxu0 %v3324
        %3352 = vmatpush1.msra.mxu0 %v3323
        %3353 = vmatprep.subr.mxu0 %v3320
        %3354 = vmatpush1.msra.mxu0 %v3319
        %3355 = vmatprep.subr.mxu0 %v3316
        %3356 = vmatpush1.msra.mxu0 %v3315
        %3357 = vmatprep.subr.mxu0 %v3312
        %3358 = vmatpush1.msra.mxu0 %v3311
        %3359 = vmatprep.subr.mxu0 %v3308
        %3360 = vmatpush1.msra.mxu0 %v3307
        %3361 = vmatprep.subr.mxu0 %v3304
        %3362 = vmatpush1.msra.mxu0 %v3303
        %3363 = vmatprep.subr.mxu0 %v3300
        %3364 = vmatpush1.msra.mxu0 %v3299
        %3365 = vmatprep.subr.mxu0 %v3296
        %3366 = vmatpush1.msra.mxu0 %v3295
        %3367 = vmatprep.subr.mxu0 %v3292
        %3368 = vmatpush1.msra.mxu0 %v3291
        %3369 = vmatprep.subr.mxu0 0.0
        %3370 = vmatpush2.msra.mxu0 0.0
        %3371 = vmatprep.subr.mxu0 0.0
        %3372 = vmatpush2.msra.mxu0 0.0
        %3373 = vmatprep.subr.mxu0 0.0
        %3374 = vmatpush2.msra.mxu0 0.0
        %3375 = vmatprep.subr.mxu0 0.0
        %3376 = vmatpush2.msra.mxu0 0.0
        %3377 = vmatprep.subr.mxu0 0.0
        %3378 = vmatpush2.msra.mxu0 0.0
        %3379 = vmatprep.subr.mxu0 0.0
        %3380 = vmatpush2.msra.mxu0 0.0
        %3381 = vmatprep.subr.mxu0 0.0
        %3382 = vmatpush2.msra.mxu0 0.0
        %3383 = vmatprep.subr.mxu0 0.0
        %3384 = vmatpush2.msra.mxu0 0.0
        %3385 = vmatprep.subr.mxu0 0.0
        %3386 = vmatpush2.msra.mxu0 0.0
        %3387 = vmatprep.subr.mxu0 0.0
        %3388 = vmatpush2.msra.mxu0 0.0
        %3389 = vmatprep.subr.mxu0 0.0
        %3390 = vmatpush2.msra.mxu0 0.0
        %3391 = vmatprep.subr.mxu0 0.0
        %3392 = vmatpush2.msra.mxu0 0.0
        %3393 = vmatprep.subr.mxu0 0.0
        %3394 = vmatpush2.msra.mxu0 0.0
        %3395 = vmatprep.subr.mxu0 0.0
        %3396 = vmatpush2.msra.mxu0 0.0
        %3397 = vmatprep.subr.mxu0 0.0
        %3398 = vmatpush2.msra.mxu0 0.0
        %3399 = vmatprep.subr.mxu0 0.0
        %3400 = vmatpush2.msra.mxu0 0.0
        %3401 = vmatprep.mubr.f32.mxu0 0.0
        %3402 = vmatmul.mubr.f32.gmra.mxu0 %v3335
        %v3403 = vpop.f32.mrf.mxu0
        %v3404 = vadd.f32 %v3332, %v3403
        %v3405 = vpop.f32.mrf.mxu0
        %v3406 = vadd.f32 %v3332, %v3405
        %3407 = vdwg.mxu0
        %3408 = vmatprep.subr.mxu0 0.0
        %3409 = vmatpush1.msra.mxu0 0.0
        %3410 = vmatprep.subr.mxu0 0.0
        %3411 = vmatpush1.msra.mxu0 0.0
        %3412 = vmatprep.subr.mxu0 0.0
        %3413 = vmatpush1.msra.mxu0 0.0
        %3414 = vmatprep.subr.mxu0 0.0
        %3415 = vmatpush1.msra.mxu0 0.0
        %3416 = vmatprep.subr.mxu0 0.0
        %3417 = vmatpush1.msra.mxu0 0.0
        %3418 = vmatprep.subr.mxu0 0.0
        %3419 = vmatpush1.msra.mxu0 0.0
        %3420 = vmatprep.subr.mxu0 0.0
        %3421 = vmatpush1.msra.mxu0 0.0
        %3422 = vmatprep.subr.mxu0 %v3326
        %3423 = vmatpush1.msra.mxu0 %v3325
        %3424 = vmatprep.subr.mxu0 %v3322
        %3425 = vmatpush1.msra.mxu0 %v3321
        %3426 = vmatprep.subr.mxu0 %v3318
        %3427 = vmatpush1.msra.mxu0 %v3317
        %3428 = vmatprep.subr.mxu0 %v3314
        %3429 = vmatpush1.msra.mxu0 %v3313
        %3430 = vmatprep.subr.mxu0 %v3310
        %3431 = vmatpush1.msra.mxu0 %v3309
        %3432 = vmatprep.subr.mxu0 %v3306
        %3433 = vmatpush1.msra.mxu0 %v3305
        %3434 = vmatprep.subr.mxu0 %v3302
        %3435 = vmatpush1.msra.mxu0 %v3301
        %3436 = vmatprep.subr.mxu0 %v3298
        %3437 = vmatpush1.msra.mxu0 %v3297
        %3438 = vmatprep.subr.mxu0 %v3294
        %3439 = vmatpush1.msra.mxu0 %v3293
        %3440 = vmatprep.subr.mxu0 0.0
        %3441 = vmatpush2.msra.mxu0 0.0
        %3442 = vmatprep.subr.mxu0 0.0
        %3443 = vmatpush2.msra.mxu0 0.0
        %3444 = vmatprep.subr.mxu0 0.0
        %3445 = vmatpush2.msra.mxu0 0.0
        %3446 = vmatprep.subr.mxu0 0.0
        %3447 = vmatpush2.msra.mxu0 0.0
        %3448 = vmatprep.subr.mxu0 0.0
        %3449 = vmatpush2.msra.mxu0 0.0
        %3450 = vmatprep.subr.mxu0 0.0
        %3451 = vmatpush2.msra.mxu0 0.0
        %3452 = vmatprep.subr.mxu0 0.0
        %3453 = vmatpush2.msra.mxu0 0.0
        %3454 = vmatprep.subr.mxu0 0.0
        %3455 = vmatpush2.msra.mxu0 0.0
        %3456 = vmatprep.subr.mxu0 0.0
        %3457 = vmatpush2.msra.mxu0 0.0
        %3458 = vmatprep.subr.mxu0 0.0
        %3459 = vmatpush2.msra.mxu0 0.0
        %3460 = vmatprep.subr.mxu0 0.0
        %3461 = vmatpush2.msra.mxu0 0.0
        %3462 = vmatprep.subr.mxu0 0.0
        %3463 = vmatpush2.msra.mxu0 0.0
        %3464 = vmatprep.subr.mxu0 0.0
        %3465 = vmatpush2.msra.mxu0 0.0
        %3466 = vmatprep.subr.mxu0 0.0
        %3467 = vmatpush2.msra.mxu0 0.0
        %3468 = vmatprep.subr.mxu0 0.0
        %3469 = vmatpush2.msra.mxu0 0.0
        %3470 = vmatprep.subr.mxu0 0.0
        %3471 = vmatpush2.msra.mxu0 0.0
        %3472 = vmatprep.mubr.f32.mxu0 0.0
        %3473 = vmatmul.mubr.f32.gmra.mxu0 %v3335
        %v3474 = vpop.f32.mrf.mxu0
        %v3475 = vadd.f32 %v3332, %v3474
        %v3476 = vpop.f32.mrf.mxu0
        %v3477 = vadd.f32 %v3332, %v3476
        %3478 = vdwg.mxu0
        %3479 = vst [vmem:[%s231] sm:$0xff] %v3404
        %3480 = vst [vmem:[%s231 + $0x8] sm:$0xff] %v3406
        %s3481 = scalar_lea.vmem %s231, 16 [#allocation8]
        %3482 = vst [vmem:[%s3481] sm:$0xff] %v3475
        %3483 = vst [vmem:[%s3481 + $0x8] sm:$0xff] %v3477
        %s3484 = sand.u32 %s119, 1
        %s3485 = scalar_lea.sflag [#allocation5], %s3484
        %s3486 = sand.u32 %s119, 1
        %s3487 = smul.addr %s3486, 32
        %s3488 = scalar_lea.vmem [#allocation8], %s3487
        // Predicated region
        $region45: #{tpu_custom_call.1} parent=35 // pred_check
          %p3489 = pneg %p129
        $region46: #{tpu_custom_call.1} parent=35 // pred_check_branch
          %3491 = sbr.rel (%p3489) target = $region48
        $region47: #{tpu_custom_call.1} parent=35 // pred_region
          %s3492 = smul.u32 2, %s22
          %s3494 = ssub.s32 512, 512
          %3495 = vsyncadd %s3485, %s3494
          %s3496 = smul.addr %s3492, 2
          %s3497 = smul.addr %s3496, 128
          %s3498 = scalar_lea.hbm %s4, %s3497
          %s3499 = sshll.u32 %s3488, 4
          %s3500 = int_to_ptr.vmem [resolvable:$true] %s3499
          %3505 = dma.vmem_to_hbm [thread:$0]  %s3500, 512, %s3498, %s3485, 256, 256, 16
        $region48: #{tpu_custom_call.1} parent=35 // pred_fallthru
          _
      $region36: #{tpu_custom_call.1} parent=5 // pred_fallthru
        _
      %p3506 = scmp.le.s32.totalorder 2, %s17
      // Predicated region
      $region49: #{tpu_custom_call.1} parent=5 // pred_check
        %p3507 = pneg %p3506
      $region50: #{tpu_custom_call.1} parent=5 // pred_check_branch
        %3509 = sbr.rel (%p3507) target = $region52
      $region51: #{tpu_custom_call.1} parent=5 // pred_region
        %s3510 = ssub.s32 %s17, 2
        // Predicated region
        $region53: #{tpu_custom_call.1} parent=51 // pred_check
          %p3511 = pneg %p135
        $region54: #{tpu_custom_call.1} parent=51 // pred_check_branch
          %3513 = sbr.rel (%p3511) target = $region56
        $region55: #{tpu_custom_call.1} parent=51 // pred_region
          %s3514 = sand.u32 %s120, 1
          %s3515 = scalar_lea.sflag [#allocation5], %s3514
          %s3516 = sand.u32 %s120, 1
          %s3517 = smul.addr %s3516, 32
          %s3518 = scalar_lea.vmem [#allocation8], %s3517
          %3519 = dma.done %s3515, 512
        $region56: #{tpu_custom_call.1} parent=51 // pred_fallthru
          _
      $region52: #{tpu_custom_call.1} parent=5 // pred_fallthru
        _
    $region6: #{tpu_custom_call.1} parent=1 // loop_footer
      %s21 = sadd.s32 1, %s17
    $region7: #{tpu_custom_call.1} parent=1 // loop_footer_branch
      %16 = sbr.rel target = $region3
    $region8: #{tpu_custom_call.1} parent=1 // loop_exit
      _
    %3520 = vsyncpa [#allocation4], 1
    %s3521 = scalar_lea.sflag [#allocation4], 1
    %3522 = vsyncpa %s3521, 1
    %3523 = vsyncpa [#allocation7], 1
    %3524 = vsyncpa [#allocation5], 1
    %s3525 = scalar_lea.sflag [#allocation5], 1
    %3526 = vsyncpa %s3525, 1

</llo_original>
